<compile_context>
chip_gen: v5e
topology: v5e:2x2
jax: 0.10.0
libtpu: 0.0.40
codegen_flags: <defaults>
</compile_context>

<pallas_src>
import functools

import jax
import jax.numpy as jnp
import numpy as np
from jax.experimental import pallas as pl
from jax.experimental.pallas import tpu as pltpu


# ----------------------------------------------------------------------------
# Host-side static config
# ----------------------------------------------------------------------------
def chebyshev_lobatto(n: int):
    """Nodes used by high_order_layers_torch's LagrangeBasis, ascending in [-1, 1]."""
    if n == 1:
        return [0.0]
    k = np.arange(n)
    return [float(v) for v in (-np.cos(k * np.pi / (n - 1)))]


# ----------------------------------------------------------------------------
# Elementwise basis math (shared by kernel and pure-JAX reference; layout-agnostic)
# ----------------------------------------------------------------------------
def _lagrange_basis(t, nodes):
    """n Lagrange basis polynomials at t.

    The (t - node_m) differences are computed once and shared across basis polynomials, and the
    node-difference reciprocals are folded into a single Python-float scale per basis -> fewer
    VPU multiplies than the naive per-(j, m) form.
    """
    n = len(nodes)
    if n == 1:
        return [jnp.ones_like(t)]
    diffs = [t - nodes[m] for m in range(n)]
    vals = []
    for j in range(n):
        scale = 1.0
        for m in range(n):
            if m != j:
                scale *= 1.0 / (nodes[j] - nodes[m])            # precomputed Python float
        acc = None
        for m in range(n):
            if m != j:
                acc = diffs[m] if acc is None else acc * diffs[m]
        vals.append(acc * scale)
    return vals


def _piecewise_basis_blocks(x, nodes, segments):
    """Masked piecewise-Lagrange basis blocks, s-major / j-minor order; each shaped like x."""
    n = len(nodes)
    S = segments
    u = (x + 1.0) * (0.5 * S)                                   # shared intermediate
    seg = jnp.clip(jnp.floor(u), 0.0, float(S - 1))
    t = 2.0 * (u - seg) - 1.0                                   # == S*(x - (2*seg/S - 1)) - 1
    basis = _lagrange_basis(t, nodes)
    blocks = []
    for s in range(S):
        mask = (seg == float(s)).astype(x.dtype)
        for j in range(n):
            blocks.append(mask * basis[j])                      # exact zeros outside segment s
    return blocks


# ----------------------------------------------------------------------------
# Pallas kernel: whole GenerativeNetwork forward for one batch tile
# ----------------------------------------------------------------------------
def generative_kernel(text_ref, pos_ref, w_in_ref, w_mlp_ref, out_ref, *, cfg):
    mm_dtype = cfg["mm_dtype"]
    P, P_pad = cfg["p"], cfg["p_pad"]

    # -- in-kernel layout change (replaces wrapper-side HBM transpose passes) --
    # Batch-major tiles -> feature-major (batch on the 128-wide lane axis).  The transposes land
    # on the otherwise idle XLU slot; all downstream VPU / MXU work and the final store are
    # lane-dense.
    text_t = jnp.transpose(text_ref[...])                                       # [E, TB]
    pos_bm = pos_ref[...]                                                       # [TB, P]
    if P_pad > P:
        # Zero-pad position features so every concatenated basis block is sublane-aligned;
        # basis(0) times the zero weight rows contributes exactly 0.  (At vreg granularity the
        # padded rows cost no extra VPU work: P and P_pad both fit one 8-sublane group.)
        zeros = jnp.zeros((pos_bm.shape[0], P_pad - P), pos_bm.dtype)
        pos_bm = jnp.concatenate([pos_bm, zeros], axis=1)
    pos_t = jnp.transpose(pos_bm)                                               # [P_pad, TB]

    # -- fused first layer: polynomial(text) + piecewise(position) in ONE MXU matmul --
    text_blocks = _lagrange_basis(text_t, cfg["nodes_text"])                    # 2 x [E, TB]
    pos_blocks = _piecewise_basis_blocks(pos_t, cfg["nodes"],
                                         cfg["input_segments"])                 # S*n x [P_pad, TB]
    fused0 = jnp.concatenate(text_blocks + pos_blocks, axis=0).astype(mm_dtype)  # [K_in, TB]
    x = jnp.dot(w_in_ref[...], fused0, preferred_element_type=jnp.float32)      # [W, TB] f32

    # -- MLP: one wide-K matmul per layer over the expanded masked basis --
    # fori_loop (not an unrolled Python loop) bounds the live range of the per-layer
    # [W*S*n, TB] fused operand to a single iteration -> flat VMEM as batch_tile grows.
    def mlp_layer(l, x):
        blocks = _piecewise_basis_blocks(x, cfg["nodes"], cfg["mlp_segments"])
        # [W, TB] blocks are (16,128)-aligned for bf16; casting before the concat halves the
        # vector-store traffic of materializing the fused operand.
        fused = jnp.concatenate([b.astype(mm_dtype) for b in blocks], axis=0)   # [W*S*n, TB]
        return jnp.dot(w_mlp_ref[l], fused, preferred_element_type=jnp.float32)  # [W, TB] f32

    x = jax.lax.fori_loop(0, cfg["n_mlp_layers"], mlp_layer, x)
    out_ref[...] = x.astype(out_ref.dtype)                                      # lane-dense store


# ----------------------------------------------------------------------------
# Host-side weight layout plumbing (replicates shared-endpoint slots into expanded form)
# ----------------------------------------------------------------------------
def _expand_piecewise_weight_T(w, n, segments, out_rows=None):
    """w: [(n-1)*S+1, In, Out] -> [out_rows, In*S*n]; column block (s*n+j) holds slot s*(n-1)+j,
    so shared-endpoint weights are replicated into both adjacent segments."""
    blocks = []
    for s in range(segments):
        for j in range(n):
            blocks.append(jnp.transpose(w[s * (n - 1) + j]))                    # [Out, In]
    m = jnp.concatenate(blocks, axis=1)                                         # [Out, In*S*n]
    if out_rows is not None and out_rows > m.shape[0]:
        m = jnp.pad(m, ((0, out_rows - m.shape[0]), (0, 0)))                    # zero rows -> 0 out
    return m


def _build_first_layer_weight_T(w_text, w_pos, n, input_segments, p_pad):
    """Stack polynomial(text) and piecewise(position, fan-in padded to p_pad) weights -> [W, K_in]."""
    text_blocks = [jnp.transpose(w_text[j]) for j in range(w_text.shape[0])]    # each [W, E]
    P = w_pos.shape[1]
    w_pos_pad = jnp.pad(w_pos, ((0, 0), (0, p_pad - P), (0, 0)))                # zero rows -> 0
    pos_blocks = []
    for s in range(input_segments):
        for j in range(n):
            pos_blocks.append(jnp.transpose(w_pos_pad[s * (n - 1) + j]))        # [W, p_pad]
    return jnp.concatenate(text_blocks + pos_blocks, axis=1)                    # [W, 2E + p_pad*S*n]


# ----------------------------------------------------------------------------
# Wrapper
# ----------------------------------------------------------------------------
def generative_forward(text_embedding, position, params, *, n, input_segments,
                       mlp_segments, batch_tile=1024, matmul_dtype=jnp.bfloat16):
    """GenerativeNetwork forward.  Takes the module's batch-major inputs ([B, E], [B, P]) and
    returns [B, output_size].  The feature-major relayout happens inside the kernel, so no
    wrapper-side transpose passes over HBM are needed; only the tiny final [O, B] -> [B, O]
    transpose remains (a consumer that accepts the feature-major slab could skip it too)."""
    B, E = text_embedding.shape
    _, P = position.shape
    W = params["w_text"].shape[-1]                               # mlp_width
    O = params["w_mlp"][-1].shape[-1]                            # output_size
    assert B % batch_tile == 0, "batch must be a multiple of batch_tile"
    assert batch_tile % 128 == 0, "keep the batch (lane) axis a multiple of 128"
    assert O <= W, "output_size > mlp_width not supported by the stacked-weight layout"
    # TODO(synk): support output_size > mlp_width by also zero-padding the stacked MLP fan-in.

    P_pad = max(8, -(-P // 8) * 8)

    # --- weight layout plumbing (once per parameter set, not per batch) ---
    w_in = _build_first_layer_weight_T(params["w_text"], params["w_pos"], n,
                                       input_segments, P_pad).astype(matmul_dtype)
    w_mlp = jnp.stack(
        [_expand_piecewise_weight_T(w, n, mlp_segments, out_rows=W) for w in params["w_mlp"]]
    ).astype(matmul_dtype)                                       # [L, W, W*S*n] -> one DMA

    cfg = dict(nodes_text=chebyshev_lobatto(2), nodes=chebyshev_lobatto(n),
               input_segments=input_segments, mlp_segments=mlp_segments,
               p=P, p_pad=P_pad, n_mlp_layers=len(params["w_mlp"]), mm_dtype=matmul_dtype)
    kernel = functools.partial(generative_kernel, cfg=cfg)

    out_t = pl.pallas_call(
        kernel,
        out_shape=jax.ShapeDtypeStruct((W, B), jnp.float32),
        grid=(B // batch_tile,),
        in_specs=[
            pl.BlockSpec((batch_tile, E), lambda i: (i, 0)),     # batch-major input tiles
            pl.BlockSpec((batch_tile, P), lambda i: (i, 0)),
            pl.BlockSpec(w_in.shape, lambda i: (0, 0)),          # constant-index weights
            pl.BlockSpec(w_mlp.shape, lambda i: (0, 0, 0)),
        ],
        out_specs=pl.BlockSpec((W, batch_tile), lambda i: (0, i)),  # feature-major, lane-dense
        compiler_params=pltpu.CompilerParams(
            dimension_semantics=("parallel",),
            # Explicit scoped-VMEM budget: actual use is ~batch_tile*4.5 KiB.  32 MiB raises
            # v5e's 16 MiB default, matches v7x's default, and leaves headroom to ~4K tiles.
            vmem_limit_bytes=32 * 1024 * 1024),
    )(text_embedding, position, w_in, w_mlp)

    return jnp.transpose(out_t[:O])                              # [B, O]


# ----------------------------------------------------------------------------
# Deterministic parameter init (mirrors the library's uniform(-1/in, 1/in) init)
# ----------------------------------------------------------------------------
def init_params(key, *, embedding_size, input_size, output_size, mlp_width,
                mlp_layers, input_segments, mlp_segments, n):
    def make(k, n_slots, fan_in, fan_out):
        return jax.random.uniform(k, (n_slots, fan_in, fan_out), jnp.float32,
                                  minval=-1.0 / fan_in, maxval=1.0 / fan_in)

    kp = (n - 1) * input_segments + 1
    km = (n - 1) * mlp_segments + 1
    keys = jax.random.split(key, 3 + mlp_layers + 1)
    w_text = make(keys[0], 2, embedding_size, mlp_width)
    w_pos = make(keys[1], kp, input_size, mlp_width)
    w_mlp = [make(keys[2], km, mlp_width, mlp_width)]            # MLP input layer
    for l in range(mlp_layers):                                  # hidden layers
        w_mlp.append(make(keys[3 + l], km, mlp_width, mlp_width))
    w_mlp.append(make(keys[3 + mlp_layers], km, mlp_width, output_size))  # output layer
    return dict(w_text=w_text, w_pos=w_pos, w_mlp=w_mlp)


# ----------------------------------------------------------------------------
# Pure-JAX reference: original un-fused formulation, original [slot, in, out] weights,
# batch-major layout -> validates the fused layout AND the shared-endpoint weight expansion.
# ----------------------------------------------------------------------------
_HI = jax.lax.Precision.HIGHEST


def _poly_layer_ref(x, w, nodes):
    basis = _lagrange_basis(x, nodes)
    out = None
    for j in range(len(nodes)):
        c = jnp.dot(basis[j], w[j], preferred_element_type=jnp.float32, precision=_HI)
        out = c if out is None else out + c
    return out


def _piecewise_layer_ref(x, w, nodes, segments):
    n = len(nodes)
    blocks = _piecewise_basis_blocks(x, nodes, segments)
    out = None
    for s in range(segments):
        for j in range(n):
            c = jnp.dot(blocks[s * n + j], w[s * (n - 1) + j],
                        preferred_element_type=jnp.float32, precision=_HI)
            out = c if out is None else out + c
    return out


def reference_forward(text_embedding, position, params, *, n, input_segments, mlp_segments):
    nodes_text = chebyshev_lobatto(2)
    nodes = chebyshev_lobatto(n)
    x = (_poly_layer_ref(text_embedding, params["w_text"], nodes_text)
         + _piecewise_layer_ref(position, params["w_pos"], nodes, input_segments))
    for w in params["w_mlp"]:
        x = _piecewise_layer_ref(x, w, nodes, mlp_segments)
    return x


if __name__ == "__main__":
    # Module-consistent shapes; batch = 4 * batch_tile so v7x gets >= 2 grid steps per core.
    embedding_size = 16     # text embedding width
    input_size = 2          # (x, y) position
    output_size = 3         # RGB
    mlp_width = 16
    mlp_layers = 2
    input_segments = 4
    mlp_segments = 4
    n = 3
    batch = 4096
    batch_tile = 1024

    key = jax.random.PRNGKey(0)
    k_text, k_pos, k_params = jax.random.split(key, 3)
    text_embedding = jax.random.uniform(k_text, (batch, embedding_size), jnp.float32,
                                        minval=-1.0, maxval=1.0)
    position = jax.random.uniform(k_pos, (batch, input_size), jnp.float32,
                                  minval=-1.0, maxval=1.0)
    params = init_params(k_params, embedding_size=embedding_size, input_size=input_size,
                         output_size=output_size, mlp_width=mlp_width, mlp_layers=mlp_layers,
                         input_segments=input_segments, mlp_segments=mlp_segments, n=n)

    # Default fast path: bf16 MXU operands (v6e/v7x native dtype).
    out = generative_forward(text_embedding, position, params, n=n,
                             input_segments=input_segments, mlp_segments=mlp_segments,
                             batch_tile=batch_tile)
    out = jax.block_until_ready(out)
    assert out.shape == (batch, output_size)

    # f32-operand path: exercises the identical structure (layout, slot mapping, fused matmuls)
    # with full-precision operands for a tight structural check.
    out_f32 = generative_forward(text_embedding, position, params, n=n,
                                 input_segments=input_segments, mlp_segments=mlp_segments,
                                 batch_tile=batch_tile, matmul_dtype=jnp.float32)
    out_f32 = jax.block_until_ready(out_f32)

    ref_fn = jax.jit(functools.partial(reference_forward, n=n, input_segments=input_segments,
                                       mlp_segments=mlp_segments))
    ref = jax.block_until_ready(ref_fn(text_embedding, position, params))

    # Structural check: a wrong endpoint-slot mapping / basis ordering produces O(0.1) errors,
    # so 3e-3 has ~30x margin while tolerating the default-precision MXU accumulation.
    assert bool(jnp.allclose(out_f32, ref, atol=3e-3, rtol=3e-3)), "f32 kernel mismatch vs reference"
    # bf16-operand fast path: looser tolerance for the reduced-precision operands; still far
    # below the scale of any structural bug (those are caught by the f32 check above anyway).
    assert bool(jnp.allclose(out, ref, atol=5e-2, rtol=5e-2)), "bf16 kernel mismatch vs reference"

    print("KERNEL_OK")
</pallas_src>

<mosaic_0001>
module attributes {stable_mosaic.version = 11 : i64} {
  func.func @generative_kernel(%arg0: i32, %arg1: memref<1024x16xf32, #tpu.memory_space<vmem>>, %arg2: memref<1024x2xf32, #tpu.memory_space<vmem>>, %arg3: memref<16x128xbf16, #tpu.memory_space<vmem>>, %arg4: memref<4x16x192xbf16, #tpu.memory_space<vmem>>, %arg5: memref<16x1024xf32, #tpu.memory_space<vmem>>) attributes {dimension_semantics = [#tpu.dimension_semantics<parallel>], iteration_bounds = array<i64: 4>, scalar_prefetch = 0 : i64, scratch_operands = 0 : i64, tpu.core_type = #tpu.core_type<tc>, window_params = [{transform_indices = @transform_0, window_bounds = array<i64: 1024, 16>}, {transform_indices = @transform_1, window_bounds = array<i64: 1024, 2>}, {pipeline_mode = #tpu.pipeline_mode<synchronous>, transform_indices = @transform_2, window_bounds = array<i64: 16, 128>}, {pipeline_mode = #tpu.pipeline_mode<synchronous>, transform_indices = @transform_3, window_bounds = array<i64: 4, 16, 192>}, {transform_indices = @transform_4, window_bounds = array<i64: 16, 1024>}]} {
    %c0 = arith.constant 0 : index
    %c0_0 = arith.constant 0 : index
    %0 = vector.load %arg1[%c0, %c0_0] : memref<1024x16xf32, #tpu.memory_space<vmem>>, vector<1024x16xf32>
    %1 = tpu.transpose %0, [1, 0] : vector<1024x16xf32> -> vector<16x1024xf32>
    %c0_1 = arith.constant 0 : index
    %c0_2 = arith.constant 0 : index
    %2 = vector.load %arg2[%c0_1, %c0_2] : memref<1024x2xf32, #tpu.memory_space<vmem>>, vector<1024x2xf32>
    %cst = arith.constant 0.000000e+00 : f32
    %3 = vector.broadcast %cst : f32 to vector<1024x6xf32>
    %4 = tpu.concatenate %2, %3 in 1 : vector<1024x2xf32>, vector<1024x6xf32> -> vector<1024x8xf32>
    %5 = tpu.transpose %4, [1, 0] : vector<1024x8xf32> -> vector<8x1024xf32>
    %cst_3 = arith.constant -1.000000e+00 : f32
    %6 = vector.broadcast %cst_3 : f32 to vector<16x1024xf32>
    %7 = arith.subf %1, %6 : vector<16x1024xf32>
    %cst_4 = arith.constant 1.000000e+00 : f32
    %8 = vector.broadcast %cst_4 : f32 to vector<16x1024xf32>
    %9 = arith.subf %1, %8 : vector<16x1024xf32>
    %cst_5 = arith.constant -5.000000e-01 : f32
    %10 = vector.broadcast %cst_5 : f32 to vector<16x1024xf32>
    %11 = arith.mulf %9, %10 : vector<16x1024xf32>
    %cst_6 = arith.constant 5.000000e-01 : f32
    %12 = vector.broadcast %cst_6 : f32 to vector<16x1024xf32>
    %13 = arith.mulf %7, %12 : vector<16x1024xf32>
    %cst_7 = arith.constant 1.000000e+00 : f32
    %14 = vector.broadcast %cst_7 : f32 to vector<8x1024xf32>
    %15 = arith.addf %5, %14 : vector<8x1024xf32>
    %cst_8 = arith.constant 2.000000e+00 : f32
    %16 = vector.broadcast %cst_8 : f32 to vector<8x1024xf32>
    %17 = arith.mulf %15, %16 : vector<8x1024xf32>
    %18 = math.floor %17 : vector<8x1024xf32>
    %cst_9 = arith.constant 0.000000e+00 : f32
    %cst_10 = arith.constant 3.000000e+00 : f32
    %19 = vector.broadcast %cst_9 : f32 to vector<8x1024xf32>
    %20 = arith.maximumf %19, %18 : vector<8x1024xf32>
    %21 = vector.broadcast %cst_10 : f32 to vector<8x1024xf32>
    %22 = arith.minimumf %21, %20 : vector<8x1024xf32>
    %23 = arith.subf %17, %22 : vector<8x1024xf32>
    %cst_11 = arith.constant 2.000000e+00 : f32
    %24 = vector.broadcast %cst_11 : f32 to vector<8x1024xf32>
    %25 = arith.mulf %24, %23 : vector<8x1024xf32>
    %cst_12 = arith.constant 1.000000e+00 : f32
    %26 = vector.broadcast %cst_12 : f32 to vector<8x1024xf32>
    %27 = arith.subf %25, %26 : vector<8x1024xf32>
    %cst_13 = arith.constant -1.000000e+00 : f32
    %28 = vector.broadcast %cst_13 : f32 to vector<8x1024xf32>
    %29 = arith.subf %27, %28 : vector<8x1024xf32>
    %cst_14 = arith.constant -6.12323426E-17 : f32
    %30 = vector.broadcast %cst_14 : f32 to vector<8x1024xf32>
    %31 = arith.subf %27, %30 : vector<8x1024xf32>
    %cst_15 = arith.constant 1.000000e+00 : f32
    %32 = vector.broadcast %cst_15 : f32 to vector<8x1024xf32>
    %33 = arith.subf %27, %32 : vector<8x1024xf32>
    %34 = arith.mulf %31, %33 : vector<8x1024xf32>
    %cst_16 = arith.constant 5.000000e-01 : f32
    %35 = vector.broadcast %cst_16 : f32 to vector<8x1024xf32>
    %36 = arith.mulf %34, %35 : vector<8x1024xf32>
    %37 = arith.mulf %29, %33 : vector<8x1024xf32>
    %cst_17 = arith.constant -1.000000e+00 : f32
    %38 = vector.broadcast %cst_17 : f32 to vector<8x1024xf32>
    %39 = arith.mulf %37, %38 : vector<8x1024xf32>
    %40 = arith.mulf %29, %31 : vector<8x1024xf32>
    %cst_18 = arith.constant 5.000000e-01 : f32
    %41 = vector.broadcast %cst_18 : f32 to vector<8x1024xf32>
    %42 = arith.mulf %40, %41 : vector<8x1024xf32>
    %cst_19 = arith.constant 0.000000e+00 : f32
    %43 = vector.broadcast %cst_19 : f32 to vector<8x1024xf32>
    %44 = arith.cmpf oeq, %22, %43 : vector<8x1024xf32>
    %45 = arith.extui %44 : vector<8x1024xi1> to vector<8x1024xi32>
    %46 = arith.sitofp %45 : vector<8x1024xi32> to vector<8x1024xf32>
    %47 = arith.mulf %46, %36 : vector<8x1024xf32>
    %48 = arith.mulf %46, %39 : vector<8x1024xf32>
    %49 = arith.mulf %46, %42 : vector<8x1024xf32>
    %cst_20 = arith.constant 1.000000e+00 : f32
    %50 = vector.broadcast %cst_20 : f32 to vector<8x1024xf32>
    %51 = arith.cmpf oeq, %22, %50 : vector<8x1024xf32>
    %52 = arith.extui %51 : vector<8x1024xi1> to vector<8x1024xi32>
    %53 = arith.sitofp %52 : vector<8x1024xi32> to vector<8x1024xf32>
    %54 = arith.mulf %53, %36 : vector<8x1024xf32>
    %55 = arith.mulf %53, %39 : vector<8x1024xf32>
    %56 = arith.mulf %53, %42 : vector<8x1024xf32>
    %cst_21 = arith.constant 2.000000e+00 : f32
    %57 = vector.broadcast %cst_21 : f32 to vector<8x1024xf32>
    %58 = arith.cmpf oeq, %22, %57 : vector<8x1024xf32>
    %59 = arith.extui %58 : vector<8x1024xi1> to vector<8x1024xi32>
    %60 = arith.sitofp %59 : vector<8x1024xi32> to vector<8x1024xf32>
    %61 = arith.mulf %60, %36 : vector<8x1024xf32>
    %62 = arith.mulf %60, %39 : vector<8x1024xf32>
    %63 = arith.mulf %60, %42 : vector<8x1024xf32>
    %cst_22 = arith.constant 3.000000e+00 : f32
    %64 = vector.broadcast %cst_22 : f32 to vector<8x1024xf32>
    %65 = arith.cmpf oeq, %22, %64 : vector<8x1024xf32>
    %66 = arith.extui %65 : vector<8x1024xi1> to vector<8x1024xi32>
    %67 = arith.sitofp %66 : vector<8x1024xi32> to vector<8x1024xf32>
    %68 = arith.mulf %67, %36 : vector<8x1024xf32>
    %69 = arith.mulf %67, %39 : vector<8x1024xf32>
    %70 = arith.mulf %67, %42 : vector<8x1024xf32>
    %71 = tpu.concatenate %11, %13, %47, %48, %49, %54, %55, %56, %61, %62, %63, %68, %69, %70 in 0 : vector<16x1024xf32>, vector<16x1024xf32>, vector<8x1024xf32>, vector<8x1024xf32>, vector<8x1024xf32>, vector<8x1024xf32>, vector<8x1024xf32>, vector<8x1024xf32>, vector<8x1024xf32>, vector<8x1024xf32>, vector<8x1024xf32>, vector<8x1024xf32>, vector<8x1024xf32>, vector<8x1024xf32> -> vector<128x1024xf32>
    %72 = arith.truncf %71 : vector<128x1024xf32> to vector<128x1024xbf16>
    %c0_23 = arith.constant 0 : index
    %c0_24 = arith.constant 0 : index
    %73 = vector.load %arg3[%c0_23, %c0_24] : memref<16x128xbf16, #tpu.memory_space<vmem>>, vector<16x128xbf16>
    %cst_25 = arith.constant dense<0.000000e+00> : vector<16x1024xf32>
    %74 = tpu.matmul %73, %72, %cst_25 {dimension_numbers = #tpu.dot_dimension_numbers<[1], [0], [0], [1], [0, 0, 1, 1], [], []>} : vector<16x128xbf16>, vector<128x1024xbf16>, vector<16x1024xf32> -> vector<16x1024xf32>
    %c0_i32 = arith.constant 0 : i32
    %c4_i32 = arith.constant 4 : i32
    %75 = arith.addi %c0_i32, %c4_i32 : i32
    %c1_i32 = arith.constant 1 : i32
    %76 = scf.for %arg6 = %c0_i32 to %75 step %c1_i32 iter_args(%arg7 = %74) -> (vector<16x1024xf32>)  : i32 {
      %cst_29 = arith.constant 1.000000e+00 : f32
      %78 = vector.broadcast %cst_29 : f32 to vector<16x1024xf32>
      %79 = arith.addf %arg7, %78 : vector<16x1024xf32>
      %cst_30 = arith.constant 2.000000e+00 : f32
      %80 = vector.broadcast %cst_30 : f32 to vector<16x1024xf32>
      %81 = arith.mulf %79, %80 : vector<16x1024xf32>
      %82 = math.floor %81 : vector<16x1024xf32>
      %cst_31 = arith.constant 0.000000e+00 : f32
      %cst_32 = arith.constant 3.000000e+00 : f32
      %83 = vector.broadcast %cst_31 : f32 to vector<16x1024xf32>
      %84 = arith.maximumf %83, %82 : vector<16x1024xf32>
      %85 = vector.broadcast %cst_32 : f32 to vector<16x1024xf32>
      %86 = arith.minimumf %85, %84 : vector<16x1024xf32>
      %87 = arith.subf %81, %86 : vector<16x1024xf32>
      %cst_33 = arith.constant 2.000000e+00 : f32
      %88 = vector.broadcast %cst_33 : f32 to vector<16x1024xf32>
      %89 = arith.mulf %88, %87 : vector<16x1024xf32>
      %cst_34 = arith.constant 1.000000e+00 : f32
      %90 = vector.broadcast %cst_34 : f32 to vector<16x1024xf32>
      %91 = arith.subf %89, %90 : vector<16x1024xf32>
      %cst_35 = arith.constant -1.000000e+00 : f32
      %92 = vector.broadcast %cst_35 : f32 to vector<16x1024xf32>
      %93 = arith.subf %91, %92 : vector<16x1024xf32>
      %cst_36 = arith.constant -6.12323426E-17 : f32
      %94 = vector.broadcast %cst_36 : f32 to vector<16x1024xf32>
      %95 = arith.subf %91, %94 : vector<16x1024xf32>
      %cst_37 = arith.constant 1.000000e+00 : f32
      %96 = vector.broadcast %cst_37 : f32 to vector<16x1024xf32>
      %97 = arith.subf %91, %96 : vector<16x1024xf32>
      %98 = arith.mulf %95, %97 : vector<16x1024xf32>
      %cst_38 = arith.constant 5.000000e-01 : f32
      %99 = vector.broadcast %cst_38 : f32 to vector<16x1024xf32>
      %100 = arith.mulf %98, %99 : vector<16x1024xf32>
      %101 = arith.mulf %93, %97 : vector<16x1024xf32>
      %cst_39 = arith.constant -1.000000e+00 : f32
      %102 = vector.broadcast %cst_39 : f32 to vector<16x1024xf32>
      %103 = arith.mulf %101, %102 : vector<16x1024xf32>
      %104 = arith.mulf %93, %95 : vector<16x1024xf32>
      %cst_40 = arith.constant 5.000000e-01 : f32
      %105 = vector.broadcast %cst_40 : f32 to vector<16x1024xf32>
      %106 = arith.mulf %104, %105 : vector<16x1024xf32>
      %cst_41 = arith.constant 0.000000e+00 : f32
      %107 = vector.broadcast %cst_41 : f32 to vector<16x1024xf32>
      %108 = arith.cmpf oeq, %86, %107 : vector<16x1024xf32>
      %109 = arith.extui %108 : vector<16x1024xi1> to vector<16x1024xi32>
      %110 = arith.sitofp %109 : vector<16x1024xi32> to vector<16x1024xf32>
      %111 = arith.mulf %110, %100 : vector<16x1024xf32>
      %112 = arith.mulf %110, %103 : vector<16x1024xf32>
      %113 = arith.mulf %110, %106 : vector<16x1024xf32>
      %cst_42 = arith.constant 1.000000e+00 : f32
      %114 = vector.broadcast %cst_42 : f32 to vector<16x1024xf32>
      %115 = arith.cmpf oeq, %86, %114 : vector<16x1024xf32>
      %116 = arith.extui %115 : vector<16x1024xi1> to vector<16x1024xi32>
      %117 = arith.sitofp %116 : vector<16x1024xi32> to vector<16x1024xf32>
      %118 = arith.mulf %117, %100 : vector<16x1024xf32>
      %119 = arith.mulf %117, %103 : vector<16x1024xf32>
      %120 = arith.mulf %117, %106 : vector<16x1024xf32>
      %cst_43 = arith.constant 2.000000e+00 : f32
      %121 = vector.broadcast %cst_43 : f32 to vector<16x1024xf32>
      %122 = arith.cmpf oeq, %86, %121 : vector<16x1024xf32>
      %123 = arith.extui %122 : vector<16x1024xi1> to vector<16x1024xi32>
      %124 = arith.sitofp %123 : vector<16x1024xi32> to vector<16x1024xf32>
      %125 = arith.mulf %124, %100 : vector<16x1024xf32>
      %126 = arith.mulf %124, %103 : vector<16x1024xf32>
      %127 = arith.mulf %124, %106 : vector<16x1024xf32>
      %cst_44 = arith.constant 3.000000e+00 : f32
      %128 = vector.broadcast %cst_44 : f32 to vector<16x1024xf32>
      %129 = arith.cmpf oeq, %86, %128 : vector<16x1024xf32>
      %130 = arith.extui %129 : vector<16x1024xi1> to vector<16x1024xi32>
      %131 = arith.sitofp %130 : vector<16x1024xi32> to vector<16x1024xf32>
      %132 = arith.mulf %131, %100 : vector<16x1024xf32>
      %133 = arith.mulf %131, %103 : vector<16x1024xf32>
      %134 = arith.mulf %131, %106 : vector<16x1024xf32>
      %135 = arith.truncf %111 : vector<16x1024xf32> to vector<16x1024xbf16>
      %136 = arith.truncf %112 : vector<16x1024xf32> to vector<16x1024xbf16>
      %137 = arith.truncf %113 : vector<16x1024xf32> to vector<16x1024xbf16>
      %138 = arith.truncf %118 : vector<16x1024xf32> to vector<16x1024xbf16>
      %139 = arith.truncf %119 : vector<16x1024xf32> to vector<16x1024xbf16>
      %140 = arith.truncf %120 : vector<16x1024xf32> to vector<16x1024xbf16>
      %141 = arith.truncf %125 : vector<16x1024xf32> to vector<16x1024xbf16>
      %142 = arith.truncf %126 : vector<16x1024xf32> to vector<16x1024xbf16>
      %143 = arith.truncf %127 : vector<16x1024xf32> to vector<16x1024xbf16>
      %144 = arith.truncf %132 : vector<16x1024xf32> to vector<16x1024xbf16>
      %145 = arith.truncf %133 : vector<16x1024xf32> to vector<16x1024xbf16>
      %146 = arith.truncf %134 : vector<16x1024xf32> to vector<16x1024xbf16>
      %147 = tpu.concatenate %135, %136, %137, %138, %139, %140, %141, %142, %143, %144, %145, %146 in 0 : vector<16x1024xbf16>, vector<16x1024xbf16>, vector<16x1024xbf16>, vector<16x1024xbf16>, vector<16x1024xbf16>, vector<16x1024xbf16>, vector<16x1024xbf16>, vector<16x1024xbf16>, vector<16x1024xbf16>, vector<16x1024xbf16>, vector<16x1024xbf16>, vector<16x1024xbf16> -> vector<192x1024xbf16>
      %148 = arith.index_cast %arg6 : i32 to index
      %c0_45 = arith.constant 0 : index
      %c0_46 = arith.constant 0 : index
      %149 = vector.load %arg4[%148, %c0_45, %c0_46] : memref<4x16x192xbf16, #tpu.memory_space<vmem>>, vector<1x16x192xbf16>
      %150 = vector.shape_cast %149 : vector<1x16x192xbf16> to vector<16x192xbf16>
      %cst_47 = arith.constant dense<0.000000e+00> : vector<16x1024xf32>
      %151 = tpu.matmul %150, %147, %cst_47 {dimension_numbers = #tpu.dot_dimension_numbers<[1], [0], [0], [1], [0, 0, 1, 1], [], []>} : vector<16x192xbf16>, vector<192x1024xbf16>, vector<16x1024xf32> -> vector<16x1024xf32>
      scf.yield %151 : vector<16x1024xf32>
    }
    %c4_i32_26 = arith.constant 4 : i32
    %c0_27 = arith.constant 0 : index
    %c0_28 = arith.constant 0 : index
    %77 = vector.load %arg5[%c0_27, %c0_28] : memref<16x1024xf32, #tpu.memory_space<vmem>>, vector<16x1024xf32>
    tpu.vector_store %arg5[%c0_27, %c0_28], %76 {strides = array<i32>} : memref<16x1024xf32, #tpu.memory_space<vmem>>, vector<16x1024xf32>,
    return
  }
  func.func @transform_0(%arg0: i32) -> (i32, i32) {
    %c0_i32 = arith.constant 0 : i32
    %c0_i32_0 = arith.constant 0 : i32
    return %arg0, %c0_i32 : i32, i32
  }
  func.func @transform_1(%arg0: i32) -> (i32, i32) {
    %c0_i32 = arith.constant 0 : i32
    %c0_i32_0 = arith.constant 0 : i32
    return %arg0, %c0_i32 : i32, i32
  }
  func.func @transform_2(%arg0: i32) -> (i32, i32) {
    %c0_i32 = arith.constant 0 : i32
    %c0_i32_0 = arith.constant 0 : i32
    %c0_i32_1 = arith.constant 0 : i32
    return %c0_i32, %c0_i32_0 : i32, i32
  }
  func.func @transform_3(%arg0: i32) -> (i32, i32, i32) {
    %c0_i32 = arith.constant 0 : i32
    %c0_i32_0 = arith.constant 0 : i32
    %c0_i32_1 = arith.constant 0 : i32
    %c0_i32_2 = arith.constant 0 : i32
    return %c0_i32, %c0_i32_0, %c0_i32_1 : i32, i32, i32
  }
  func.func @transform_4(%arg0: i32) -> (i32, i32) {
    %c0_i32 = arith.constant 0 : i32
    %c0_i32_0 = arith.constant 0 : i32
    return %c0_i32, %arg0 : i32, i32
  }
}

</mosaic_0001>

<llo_original>
// kernel: tpu_custom_call.1
$region0: #{tpu_custom_call.1}
  #allocation0 [shape = 'u32[]', space=smem, size = 0x4, offset = 0x4, fixed_abs, tag = 'smem constant byte address 0x4 - core index']
  #allocation1 [shape = 'u32[72,128]{1,0:T(1,128)}', space=vmem, size = 0x9000, scoped, tag = 'internal scratch']
  %s0 = inlined_call_operand.vmem [shape: f32[4096,16], index: 0, kind: input, shape index: {}]
  %s1 = inlined_call_operand.vmem [shape: f32[4096,2], index: 1, kind: input, shape index: {}]
  %s2 = inlined_call_operand.vmem [shape: bf16[16,128], index: 2, kind: input, shape index: {}]
  %s3 = inlined_call_operand.vmem [shape: bf16[4,16,192], index: 3, kind: input, shape index: {}]
  %s4 = inlined_call_operand.hbm [shape: f32[16,4096], index: 4, kind: output, shape index: {}]
  %s5 = sld [smem:[#allocation0]]
  $region56: #{tpu_custom_call.1} parent=0
    _
  %s7 = ssub.s32 1, %s5
  %s8 = scalar_select 0, %s7, %s5
  $region1: #{tpu_custom_call.1} parent=0
    #allocation2 [shape = 'u8[131072]{0}', space=vmem, size = 0x20000, scoped, tag = 'output window, operand 0']
    #allocation3 [shape = 's32[2]{0}', space=sflag, size = 0x8, scoped, tag = 'scoped memory for tpu_custom_call.1']
    %9 = vsyncpa [#allocation3], 0
    %s10 = scalar_lea.sflag [#allocation3], 1
    %11 = vsyncpa %s10, 0
    loop: start=0, step=1, limit=6
    $region2: #{tpu_custom_call.1} parent=1 // loop_pre_header
      _
    $region3: #{tpu_custom_call.1} parent=1 // loop_header
      %s13 = sphi 0, %s17
      %p14 = scmp.ge.s32.totalorder %s13, 6
      %s23 = sphi 0, %s25
      %s26 = sphi 0, %s23
      %s27 = sphi 0, %s26
      %s43 = sphi 0, %s27
      %s49 = sphi 0, %s51
      %s52 = sphi 0, %s49
      %s53 = sphi 0, %s52
      %s69 = sphi 0, %s53
      %s73 = sphi 0, %s73
      %s75 = sphi 0, %s73
      %s76 = sphi 0, %s75
      %s90 = sphi 0, %s76
      %s94 = sphi 0, %s94
      %s96 = sphi 0, %s94
      %s97 = sphi 0, %s96
      %s111 = sphi 0, %s97
      %s117 = sphi 0, %s119
      %s120 = sphi 0, %s117
      %s121 = sphi 0, %s120
      %s137 = sphi 0, %s121
    $region4: #{tpu_custom_call.1} parent=1 // loop_header_branch
      %16 = sbr.rel (%p14) target = $region8
    $region5: #{tpu_custom_call.1} parent=1 // loop_body
      %s18 = ssub.s32 %s13, 1
      %s19 = ssub.s32 %s13, 2
      %s20 = sadd.s32 %s13, 1
      %s21 = ssub.s32 %s13, %s20
      %p22 = scmp.eq.s32.totalorder %s21, 0
      %s24 = sadd.s32 %s23, 1
      %s25 = scalar_select %p22, %s23, %s24
      %p28 = pneg %p22
      %p29 = scmp.eq.s32.totalorder %s13, 3
      %p30 = por %p28, %p29
      %p31 = scmp.ne.s32.totalorder %s23, %s26
      %p32 = scmp.eq.s32.totalorder %s13, 0
      %p33 = por %p31, %p32
      %p34 = scmp.ne.s32.totalorder %s23, %s26
      %p35 = scmp.eq.s32.totalorder %s18, 3
      %p36 = por %p34, %p35
      %p37 = scmp.ne.s32.totalorder %s26, %s27
      %p38 = scmp.eq.s32.totalorder %s18, 0
      %p39 = por %p37, %p38
      %p40 = scmp.ne.s32.totalorder %s26, %s27
      %p41 = scmp.eq.s32.totalorder %s19, 3
      %p42 = por %p40, %p41
      %p44 = scmp.ne.s32.totalorder %s27, %s43
      %p45 = scmp.eq.s32.totalorder %s19, 0
      %p46 = por %p44, %p45
      %s47 = ssub.s32 %s13, %s20
      %p48 = scmp.eq.s32.totalorder %s47, 0
      %s50 = sadd.s32 %s49, 1
      %s51 = scalar_select %p48, %s49, %s50
      %p54 = pneg %p48
      %p55 = scmp.eq.s32.totalorder %s13, 3
      %p56 = por %p54, %p55
      %p57 = scmp.ne.s32.totalorder %s49, %s52
      %p58 = scmp.eq.s32.totalorder %s13, 0
      %p59 = por %p57, %p58
      %p60 = scmp.ne.s32.totalorder %s49, %s52
      %p61 = scmp.eq.s32.totalorder %s18, 3
      %p62 = por %p60, %p61
      %p63 = scmp.ne.s32.totalorder %s52, %s53
      %p64 = scmp.eq.s32.totalorder %s18, 0
      %p65 = por %p63, %p64
      %p66 = scmp.ne.s32.totalorder %s52, %s53
      %p67 = scmp.eq.s32.totalorder %s19, 3
      %p68 = por %p66, %p67
      %p70 = scmp.ne.s32.totalorder %s53, %s69
      %p71 = scmp.eq.s32.totalorder %s19, 0
      %p72 = por %p70, %p71
      %s74 = sadd.s32 %s73, 1
      %p77 = scmp.eq.s32.totalorder %s13, 3
      %p78 = scmp.ne.s32.totalorder %s73, %s75
      %p79 = scmp.eq.s32.totalorder %s13, 0
      %p80 = por %p78, %p79
      %p81 = scmp.ne.s32.totalorder %s73, %s75
      %p82 = scmp.eq.s32.totalorder %s18, 3
      %p83 = por %p81, %p82
      %p84 = scmp.ne.s32.totalorder %s75, %s76
      %p85 = scmp.eq.s32.totalorder %s18, 0
      %p86 = por %p84, %p85
      %p87 = scmp.ne.s32.totalorder %s75, %s76
      %p88 = scmp.eq.s32.totalorder %s19, 3
      %p89 = por %p87, %p88
      %p91 = scmp.ne.s32.totalorder %s76, %s90
      %p92 = scmp.eq.s32.totalorder %s19, 0
      %p93 = por %p91, %p92
      %s95 = sadd.s32 %s94, 1
      %p98 = scmp.eq.s32.totalorder %s13, 3
      %p99 = scmp.ne.s32.totalorder %s94, %s96
      %p100 = scmp.eq.s32.totalorder %s13, 0
      %p101 = por %p99, %p100
      %p102 = scmp.ne.s32.totalorder %s94, %s96
      %p103 = scmp.eq.s32.totalorder %s18, 3
      %p104 = por %p102, %p103
      %p105 = scmp.ne.s32.totalorder %s96, %s97
      %p106 = scmp.eq.s32.totalorder %s18, 0
      %p107 = por %p105, %p106
      %p108 = scmp.ne.s32.totalorder %s96, %s97
      %p109 = scmp.eq.s32.totalorder %s19, 3
      %p110 = por %p108, %p109
      %p112 = scmp.ne.s32.totalorder %s97, %s111
      %p113 = scmp.eq.s32.totalorder %s19, 0
      %p114 = por %p112, %p113
      %s115 = ssub.s32 %s13, %s20
      %p116 = scmp.eq.s32.totalorder %s115, 0
      %s118 = sadd.s32 %s117, 1
      %s119 = scalar_select %p116, %s117, %s118
      %p122 = pneg %p116
      %p123 = scmp.eq.s32.totalorder %s13, 3
      %p124 = por %p122, %p123
      %p125 = scmp.ne.s32.totalorder %s117, %s120
      %p126 = scmp.eq.s32.totalorder %s13, 0
      %p127 = por %p125, %p126
      %p128 = scmp.ne.s32.totalorder %s117, %s120
      %p129 = scmp.eq.s32.totalorder %s18, 3
      %p130 = por %p128, %p129
      %p131 = scmp.ne.s32.totalorder %s120, %s121
      %p132 = scmp.eq.s32.totalorder %s18, 0
      %p133 = por %p131, %p132
      %p134 = scmp.ne.s32.totalorder %s120, %s121
      %p135 = scmp.eq.s32.totalorder %s19, 3
      %p136 = por %p134, %p135
      %p138 = scmp.ne.s32.totalorder %s121, %s137
      %p139 = scmp.eq.s32.totalorder %s19, 0
      %p140 = por %p138, %p139
      %p141 = scmp.le.s32.totalorder 1, %s13
      %p142 = scmp.lt.s32.totalorder %s13, 5
      %p143 = pnand %p141, %p142
      %p144 = pneg %p143
      // Predicated region
      $region9: #{tpu_custom_call.1} parent=5 // pred_check
        _
      $region10: #{tpu_custom_call.1} parent=5 // pred_check_branch
        %146 = sbr.rel (%p143) target = $region12
      $region11: #{tpu_custom_call.1} parent=5 // pred_region
        %s147 = ssub.s32 %s13, 1
        // Predicated region
        $region13: #{tpu_custom_call.1} parent=11 // pred_check
          %p148 = pneg %p86
        $region14: #{tpu_custom_call.1} parent=11 // pred_check_branch
          %150 = sbr.rel (%p148) target = $region16
        $region15: #{tpu_custom_call.1} parent=11 // pred_region
          _
        $region16: #{tpu_custom_call.1} parent=11 // pred_fallthru
          _
        // Predicated region
        $region17: #{tpu_custom_call.1} parent=11 // pred_check
          %p151 = pneg %p107
        $region18: #{tpu_custom_call.1} parent=11 // pred_check_branch
          %153 = sbr.rel (%p151) target = $region20
        $region19: #{tpu_custom_call.1} parent=11 // pred_region
          _
        $region20: #{tpu_custom_call.1} parent=11 // pred_fallthru
          _
      $region12: #{tpu_custom_call.1} parent=5 // pred_fallthru
        _
      %p154 = scmp.lt.s32.totalorder %s13, 4
      // Predicated region
      $region21: #{tpu_custom_call.1} parent=5 // pred_check
        %p155 = pneg %p154
      $region22: #{tpu_custom_call.1} parent=5 // pred_check_branch
        %157 = sbr.rel (%p155) target = $region24
      $region23: #{tpu_custom_call.1} parent=5 // pred_region
        // Predicated region
        $region25: #{tpu_custom_call.1} parent=23 // pred_check
          %p158 = pneg %p33
        $region26: #{tpu_custom_call.1} parent=23 // pred_check_branch
          %160 = sbr.rel (%p158) target = $region28
        $region27: #{tpu_custom_call.1} parent=23 // pred_region
          %s161 = smul.u32 128, %s13
          %p162 = scmp.lt.s32.totalorder %s161, 511
          %s163 = scalar_select %p162, %s161, 511
          %s164 = smul.addr %s163, 8
          %s165 = scalar_lea.vmem %s0, %s164
          %s166 = smul.u32 128, %s13
        $region28: #{tpu_custom_call.1} parent=23 // pred_fallthru
          _
        // Predicated region
        $region29: #{tpu_custom_call.1} parent=23 // pred_check
          %p167 = pneg %p59
        $region30: #{tpu_custom_call.1} parent=23 // pred_check_branch
          %169 = sbr.rel (%p167) target = $region32
        $region31: #{tpu_custom_call.1} parent=23 // pred_region
          %s170 = smul.u32 128, %s13
          %p171 = scmp.lt.s32.totalorder %s170, 511
          %s172 = scalar_select %p171, %s170, 511
          %s173 = smul.addr %s172, 8
          %s174 = scalar_lea.vmem %s1, %s173
          %s175 = smul.u32 128, %s13
        $region32: #{tpu_custom_call.1} parent=23 // pred_fallthru
          _
      $region24: #{tpu_custom_call.1} parent=5 // pred_fallthru
        _
      %p176 = scmp.le.s32.totalorder 1, %s13
      %p177 = scmp.lt.s32.totalorder %s13, 5
      %p178 = pnand %p176, %p177
      %p179 = pneg %p178
      // Predicated region
      $region33: #{tpu_custom_call.1} parent=5 // pred_check
        _
      $region34: #{tpu_custom_call.1} parent=5 // pred_check_branch
        %181 = sbr.rel (%p178) target = $region36
      $region35: #{tpu_custom_call.1} parent=5 // pred_region
        %s182 = ssub.s32 %s13, 1
        %s183 = smul.u32 128, %s18
        %p184 = scmp.lt.s32.totalorder %s183, 511
        %s185 = scalar_select %p184, %s183, 511
        %s186 = smul.addr %s185, 8
        %s187 = scalar_lea.vmem %s0, %s186
        %p188 = pneg %p39
        %p189 = pneg %p36
        %s190 = smul.u32 128, %s18
        %p191 = scmp.lt.s32.totalorder %s190, 511
        %s192 = scalar_select %p191, %s190, 511
        %s193 = smul.addr %s192, 8
        %s194 = scalar_lea.vmem %s1, %s193
        %p195 = pneg %p65
        %p196 = pneg %p62
        %p197 = pneg %p86
        %p198 = pneg %p83
        %p199 = pneg %p107
        %p200 = pneg %p104
        %p201 = pneg %p133
        %p202 = pneg %p130
        %s203 = sand.u32 %s120, 1
        %s204 = scalar_lea.sflag [#allocation3], %s203
        %s205 = sand.u32 %s120, 1
        %s206 = smul.addr %s205, 128
        %s207 = scalar_lea.vmem [#allocation2], %s206
        %s208 = smul.u32 128, %s18
        %p209 = scmp.lt.s32.totalorder %s208, 511
        %s210 = scalar_select %p209, %s208, 511
        %s211 = smul.addr %s210, 8
        %s212 = scalar_lea.vmem %s0, %s211
        %s213 = smul.u32 128, %s18
        %s214 = smul.u32 128, %s18
        %p215 = scmp.lt.s32.totalorder %s214, 511
        %s216 = scalar_select %p215, %s214, 511
        %s217 = smul.addr %s216, 8
        %s218 = scalar_lea.vmem %s1, %s217
        %s219 = smul.u32 128, %s18
        %s220 = smul.u32 8, %s18
        %v222 = vld [vmem:[%s212] sm:$0xff]
        %v223 = vld [vmem:[%s212 + $0x8] sm:$0xff]
        %v224 = vld [vmem:[%s212 + $0x10] sm:$0xff]
        %v225 = vld [vmem:[%s212 + $0x18] sm:$0xff]
        %v226 = vld [vmem:[%s212 + $0x20] sm:$0xff]
        %v227 = vld [vmem:[%s212 + $0x28] sm:$0xff]
        %v228 = vld [vmem:[%s212 + $0x30] sm:$0xff]
        %v229 = vld [vmem:[%s212 + $0x38] sm:$0xff]
        %v230 = vld [vmem:[%s212 + $0x40] sm:$0xff]
        %v231 = vld [vmem:[%s212 + $0x48] sm:$0xff]
        %v232 = vld [vmem:[%s212 + $0x50] sm:$0xff]
        %v233 = vld [vmem:[%s212 + $0x58] sm:$0xff]
        %v234 = vld [vmem:[%s212 + $0x60] sm:$0xff]
        %v235 = vld [vmem:[%s212 + $0x68] sm:$0xff]
        %v236 = vld [vmem:[%s212 + $0x70] sm:$0xff]
        %v237 = vld [vmem:[%s212 + $0x78] sm:$0xff]
        %v238 = vld [vmem:[%s212 + $0x80] sm:$0xff]
        %v239 = vld [vmem:[%s212 + $0x88] sm:$0xff]
        %v240 = vld [vmem:[%s212 + $0x90] sm:$0xff]
        %v241 = vld [vmem:[%s212 + $0x98] sm:$0xff]
        %v242 = vld [vmem:[%s212 + $0xa0] sm:$0xff]
        %v243 = vld [vmem:[%s212 + $0xa8] sm:$0xff]
        %v244 = vld [vmem:[%s212 + $0xb0] sm:$0xff]
        %v245 = vld [vmem:[%s212 + $0xb8] sm:$0xff]
        %v246 = vld [vmem:[%s212 + $0xc0] sm:$0xff]
        %v247 = vld [vmem:[%s212 + $0xc8] sm:$0xff]
        %v248 = vld [vmem:[%s212 + $0xd0] sm:$0xff]
        %v249 = vld [vmem:[%s212 + $0xd8] sm:$0xff]
        %v250 = vld [vmem:[%s212 + $0xe0] sm:$0xff]
        %v251 = vld [vmem:[%s212 + $0xe8] sm:$0xff]
        %v252 = vld [vmem:[%s212 + $0xf0] sm:$0xff]
        %v253 = vld [vmem:[%s212 + $0xf8] sm:$0xff]
        %v254 = vld [vmem:[%s212 + $0x100] sm:$0xff]
        %v255 = vld [vmem:[%s212 + $0x108] sm:$0xff]
        %v256 = vld [vmem:[%s212 + $0x110] sm:$0xff]
        %v257 = vld [vmem:[%s212 + $0x118] sm:$0xff]
        %v258 = vld [vmem:[%s212 + $0x120] sm:$0xff]
        %v259 = vld [vmem:[%s212 + $0x128] sm:$0xff]
        %v260 = vld [vmem:[%s212 + $0x130] sm:$0xff]
        %v261 = vld [vmem:[%s212 + $0x138] sm:$0xff]
        %v262 = vld [vmem:[%s212 + $0x140] sm:$0xff]
        %v263 = vld [vmem:[%s212 + $0x148] sm:$0xff]
        %v264 = vld [vmem:[%s212 + $0x150] sm:$0xff]
        %v265 = vld [vmem:[%s212 + $0x158] sm:$0xff]
        %v266 = vld [vmem:[%s212 + $0x160] sm:$0xff]
        %v267 = vld [vmem:[%s212 + $0x168] sm:$0xff]
        %v268 = vld [vmem:[%s212 + $0x170] sm:$0xff]
        %v269 = vld [vmem:[%s212 + $0x178] sm:$0xff]
        %v270 = vld [vmem:[%s212 + $0x180] sm:$0xff]
        %v271 = vld [vmem:[%s212 + $0x188] sm:$0xff]
        %v272 = vld [vmem:[%s212 + $0x190] sm:$0xff]
        %v273 = vld [vmem:[%s212 + $0x198] sm:$0xff]
        %v274 = vld [vmem:[%s212 + $0x1a0] sm:$0xff]
        %v275 = vld [vmem:[%s212 + $0x1a8] sm:$0xff]
        %v276 = vld [vmem:[%s212 + $0x1b0] sm:$0xff]
        %v277 = vld [vmem:[%s212 + $0x1b8] sm:$0xff]
        %v278 = vld [vmem:[%s212 + $0x1c0] sm:$0xff]
        %v279 = vld [vmem:[%s212 + $0x1c8] sm:$0xff]
        %v280 = vld [vmem:[%s212 + $0x1d0] sm:$0xff]
        %v281 = vld [vmem:[%s212 + $0x1d8] sm:$0xff]
        %v282 = vld [vmem:[%s212 + $0x1e0] sm:$0xff]
        %v283 = vld [vmem:[%s212 + $0x1e8] sm:$0xff]
        %v284 = vld [vmem:[%s212 + $0x1f0] sm:$0xff]
        %v285 = vld [vmem:[%s212 + $0x1f8] sm:$0xff]
        %v286 = vld [vmem:[%s212 + $0x200] sm:$0xff]
        %v287 = vld [vmem:[%s212 + $0x208] sm:$0xff]
        %v288 = vld [vmem:[%s212 + $0x210] sm:$0xff]
        %v289 = vld [vmem:[%s212 + $0x218] sm:$0xff]
        %v290 = vld [vmem:[%s212 + $0x220] sm:$0xff]
        %v291 = vld [vmem:[%s212 + $0x228] sm:$0xff]
        %v292 = vld [vmem:[%s212 + $0x230] sm:$0xff]
        %v293 = vld [vmem:[%s212 + $0x238] sm:$0xff]
        %v294 = vld [vmem:[%s212 + $0x240] sm:$0xff]
        %v295 = vld [vmem:[%s212 + $0x248] sm:$0xff]
        %v296 = vld [vmem:[%s212 + $0x250] sm:$0xff]
        %v297 = vld [vmem:[%s212 + $0x258] sm:$0xff]
        %v298 = vld [vmem:[%s212 + $0x260] sm:$0xff]
        %v299 = vld [vmem:[%s212 + $0x268] sm:$0xff]
        %v300 = vld [vmem:[%s212 + $0x270] sm:$0xff]
        %v301 = vld [vmem:[%s212 + $0x278] sm:$0xff]
        %v302 = vld [vmem:[%s212 + $0x280] sm:$0xff]
        %v303 = vld [vmem:[%s212 + $0x288] sm:$0xff]
        %v304 = vld [vmem:[%s212 + $0x290] sm:$0xff]
        %v305 = vld [vmem:[%s212 + $0x298] sm:$0xff]
        %v306 = vld [vmem:[%s212 + $0x2a0] sm:$0xff]
        %v307 = vld [vmem:[%s212 + $0x2a8] sm:$0xff]
        %v308 = vld [vmem:[%s212 + $0x2b0] sm:$0xff]
        %v309 = vld [vmem:[%s212 + $0x2b8] sm:$0xff]
        %v310 = vld [vmem:[%s212 + $0x2c0] sm:$0xff]
        %v311 = vld [vmem:[%s212 + $0x2c8] sm:$0xff]
        %v312 = vld [vmem:[%s212 + $0x2d0] sm:$0xff]
        %v313 = vld [vmem:[%s212 + $0x2d8] sm:$0xff]
        %v314 = vld [vmem:[%s212 + $0x2e0] sm:$0xff]
        %v315 = vld [vmem:[%s212 + $0x2e8] sm:$0xff]
        %v316 = vld [vmem:[%s212 + $0x2f0] sm:$0xff]
        %v317 = vld [vmem:[%s212 + $0x2f8] sm:$0xff]
        %v318 = vld [vmem:[%s212 + $0x300] sm:$0xff]
        %v319 = vld [vmem:[%s212 + $0x308] sm:$0xff]
        %v320 = vld [vmem:[%s212 + $0x310] sm:$0xff]
        %v321 = vld [vmem:[%s212 + $0x318] sm:$0xff]
        %v322 = vld [vmem:[%s212 + $0x320] sm:$0xff]
        %v323 = vld [vmem:[%s212 + $0x328] sm:$0xff]
        %v324 = vld [vmem:[%s212 + $0x330] sm:$0xff]
        %v325 = vld [vmem:[%s212 + $0x338] sm:$0xff]
        %v326 = vld [vmem:[%s212 + $0x340] sm:$0xff]
        %v327 = vld [vmem:[%s212 + $0x348] sm:$0xff]
        %v328 = vld [vmem:[%s212 + $0x350] sm:$0xff]
        %v329 = vld [vmem:[%s212 + $0x358] sm:$0xff]
        %v330 = vld [vmem:[%s212 + $0x360] sm:$0xff]
        %v331 = vld [vmem:[%s212 + $0x368] sm:$0xff]
        %v332 = vld [vmem:[%s212 + $0x370] sm:$0xff]
        %v333 = vld [vmem:[%s212 + $0x378] sm:$0xff]
        %v334 = vld [vmem:[%s212 + $0x380] sm:$0xff]
        %v335 = vld [vmem:[%s212 + $0x388] sm:$0xff]
        %v336 = vld [vmem:[%s212 + $0x390] sm:$0xff]
        %v337 = vld [vmem:[%s212 + $0x398] sm:$0xff]
        %v338 = vld [vmem:[%s212 + $0x3a0] sm:$0xff]
        %v339 = vld [vmem:[%s212 + $0x3a8] sm:$0xff]
        %v340 = vld [vmem:[%s212 + $0x3b0] sm:$0xff]
        %v341 = vld [vmem:[%s212 + $0x3b8] sm:$0xff]
        %v342 = vld [vmem:[%s212 + $0x3c0] sm:$0xff]
        %v343 = vld [vmem:[%s212 + $0x3c8] sm:$0xff]
        %v344 = vld [vmem:[%s212 + $0x3d0] sm:$0xff]
        %v345 = vld [vmem:[%s212 + $0x3d8] sm:$0xff]
        %v346 = vld [vmem:[%s212 + $0x3e0] sm:$0xff]
        %v347 = vld [vmem:[%s212 + $0x3e8] sm:$0xff]
        %v348 = vld [vmem:[%s212 + $0x3f0] sm:$0xff]
        %v349 = vld [vmem:[%s212 + $0x3f8] sm:$0xff]
        %350 = vxpose.xlu0.b32.start [1/16] %v222, 128
        %351 = vxpose.xlu0.b32.cont [2/16] %v223, 128
        %352 = vxpose.xlu0.b32.cont [3/16] %v224, 128
        %353 = vxpose.xlu0.b32.cont [4/16] %v225, 128
        %354 = vxpose.xlu0.b32.cont [5/16] %v226, 128
        %355 = vxpose.xlu0.b32.cont [6/16] %v227, 128
        %356 = vxpose.xlu0.b32.cont [7/16] %v228, 128
        %357 = vxpose.xlu0.b32.cont [8/16] %v229, 128
        %358 = vxpose.xlu0.b32.cont [9/16] %v230, 128
        %359 = vxpose.xlu0.b32.cont [10/16] %v231, 128
        %360 = vxpose.xlu0.b32.cont [11/16] %v232, 128
        %361 = vxpose.xlu0.b32.cont [12/16] %v233, 128
        %362 = vxpose.xlu0.b32.cont [13/16] %v234, 128
        %363 = vxpose.xlu0.b32.cont [14/16] %v235, 128
        %364 = vxpose.xlu0.b32.cont [15/16] %v236, 128
        %365 = vxpose.xlu0.b32.end [16/16] %v237, 128
        %v366 = vpop.trf.xlu0
        %v367 = vpop.trf.xlu0
        %v368 = vpop.trf.xlu0
        %v369 = vpop.trf.xlu0
        %v370 = vpop.trf.xlu0
        %v371 = vpop.trf.xlu0
        %v372 = vpop.trf.xlu0
        %v373 = vpop.trf.xlu0
        %v374 = vpop.trf.xlu0
        %v375 = vpop.trf.xlu0
        %v376 = vpop.trf.xlu0
        %v377 = vpop.trf.xlu0
        %v378 = vpop.trf.xlu0
        %v379 = vpop.trf.xlu0
        %v380 = vpop.trf.xlu0
        %v381 = vpop.trf.xlu0
        %382 = vxpose.xlu0.b32.start [1/16] %v238, 128
        %383 = vxpose.xlu0.b32.cont [2/16] %v239, 128
        %384 = vxpose.xlu0.b32.cont [3/16] %v240, 128
        %385 = vxpose.xlu0.b32.cont [4/16] %v241, 128
        %386 = vxpose.xlu0.b32.cont [5/16] %v242, 128
        %387 = vxpose.xlu0.b32.cont [6/16] %v243, 128
        %388 = vxpose.xlu0.b32.cont [7/16] %v244, 128
        %389 = vxpose.xlu0.b32.cont [8/16] %v245, 128
        %390 = vxpose.xlu0.b32.cont [9/16] %v246, 128
        %391 = vxpose.xlu0.b32.cont [10/16] %v247, 128
        %392 = vxpose.xlu0.b32.cont [11/16] %v248, 128
        %393 = vxpose.xlu0.b32.cont [12/16] %v249, 128
        %394 = vxpose.xlu0.b32.cont [13/16] %v250, 128
        %395 = vxpose.xlu0.b32.cont [14/16] %v251, 128
        %396 = vxpose.xlu0.b32.cont [15/16] %v252, 128
        %397 = vxpose.xlu0.b32.end [16/16] %v253, 128
        %v398 = vpop.trf.xlu0
        %v399 = vpop.trf.xlu0
        %v400 = vpop.trf.xlu0
        %v401 = vpop.trf.xlu0
        %v402 = vpop.trf.xlu0
        %v403 = vpop.trf.xlu0
        %v404 = vpop.trf.xlu0
        %v405 = vpop.trf.xlu0
        %v406 = vpop.trf.xlu0
        %v407 = vpop.trf.xlu0
        %v408 = vpop.trf.xlu0
        %v409 = vpop.trf.xlu0
        %v410 = vpop.trf.xlu0
        %v411 = vpop.trf.xlu0
        %v412 = vpop.trf.xlu0
        %v413 = vpop.trf.xlu0
        %414 = vxpose.xlu0.b32.start [1/16] %v254, 128
        %415 = vxpose.xlu0.b32.cont [2/16] %v255, 128
        %416 = vxpose.xlu0.b32.cont [3/16] %v256, 128
        %417 = vxpose.xlu0.b32.cont [4/16] %v257, 128
        %418 = vxpose.xlu0.b32.cont [5/16] %v258, 128
        %419 = vxpose.xlu0.b32.cont [6/16] %v259, 128
        %420 = vxpose.xlu0.b32.cont [7/16] %v260, 128
        %421 = vxpose.xlu0.b32.cont [8/16] %v261, 128
        %422 = vxpose.xlu0.b32.cont [9/16] %v262, 128
        %423 = vxpose.xlu0.b32.cont [10/16] %v263, 128
        %424 = vxpose.xlu0.b32.cont [11/16] %v264, 128
        %425 = vxpose.xlu0.b32.cont [12/16] %v265, 128
        %426 = vxpose.xlu0.b32.cont [13/16] %v266, 128
        %427 = vxpose.xlu0.b32.cont [14/16] %v267, 128
        %428 = vxpose.xlu0.b32.cont [15/16] %v268, 128
        %429 = vxpose.xlu0.b32.end [16/16] %v269, 128
        %v430 = vpop.trf.xlu0
        %v431 = vpop.trf.xlu0
        %v432 = vpop.trf.xlu0
        %v433 = vpop.trf.xlu0
        %v434 = vpop.trf.xlu0
        %v435 = vpop.trf.xlu0
        %v436 = vpop.trf.xlu0
        %v437 = vpop.trf.xlu0
        %v438 = vpop.trf.xlu0
        %v439 = vpop.trf.xlu0
        %v440 = vpop.trf.xlu0
        %v441 = vpop.trf.xlu0
        %v442 = vpop.trf.xlu0
        %v443 = vpop.trf.xlu0
        %v444 = vpop.trf.xlu0
        %v445 = vpop.trf.xlu0
        %446 = vxpose.xlu0.b32.start [1/16] %v270, 128
        %447 = vxpose.xlu0.b32.cont [2/16] %v271, 128
        %448 = vxpose.xlu0.b32.cont [3/16] %v272, 128
        %449 = vxpose.xlu0.b32.cont [4/16] %v273, 128
        %450 = vxpose.xlu0.b32.cont [5/16] %v274, 128
        %451 = vxpose.xlu0.b32.cont [6/16] %v275, 128
        %452 = vxpose.xlu0.b32.cont [7/16] %v276, 128
        %453 = vxpose.xlu0.b32.cont [8/16] %v277, 128
        %454 = vxpose.xlu0.b32.cont [9/16] %v278, 128
        %455 = vxpose.xlu0.b32.cont [10/16] %v279, 128
        %456 = vxpose.xlu0.b32.cont [11/16] %v280, 128
        %457 = vxpose.xlu0.b32.cont [12/16] %v281, 128
        %458 = vxpose.xlu0.b32.cont [13/16] %v282, 128
        %459 = vxpose.xlu0.b32.cont [14/16] %v283, 128
        %460 = vxpose.xlu0.b32.cont [15/16] %v284, 128
        %461 = vxpose.xlu0.b32.end [16/16] %v285, 128
        %v462 = vpop.trf.xlu0
        %v463 = vpop.trf.xlu0
        %v464 = vpop.trf.xlu0
        %v465 = vpop.trf.xlu0
        %v466 = vpop.trf.xlu0
        %v467 = vpop.trf.xlu0
        %v468 = vpop.trf.xlu0
        %v469 = vpop.trf.xlu0
        %v470 = vpop.trf.xlu0
        %v471 = vpop.trf.xlu0
        %v472 = vpop.trf.xlu0
        %v473 = vpop.trf.xlu0
        %v474 = vpop.trf.xlu0
        %v475 = vpop.trf.xlu0
        %v476 = vpop.trf.xlu0
        %v477 = vpop.trf.xlu0
        %478 = vxpose.xlu0.b32.start [1/16] %v286, 128
        %479 = vxpose.xlu0.b32.cont [2/16] %v287, 128
        %480 = vxpose.xlu0.b32.cont [3/16] %v288, 128
        %481 = vxpose.xlu0.b32.cont [4/16] %v289, 128
        %482 = vxpose.xlu0.b32.cont [5/16] %v290, 128
        %483 = vxpose.xlu0.b32.cont [6/16] %v291, 128
        %484 = vxpose.xlu0.b32.cont [7/16] %v292, 128
        %485 = vxpose.xlu0.b32.cont [8/16] %v293, 128
        %486 = vxpose.xlu0.b32.cont [9/16] %v294, 128
        %487 = vxpose.xlu0.b32.cont [10/16] %v295, 128
        %488 = vxpose.xlu0.b32.cont [11/16] %v296, 128
        %489 = vxpose.xlu0.b32.cont [12/16] %v297, 128
        %490 = vxpose.xlu0.b32.cont [13/16] %v298, 128
        %491 = vxpose.xlu0.b32.cont [14/16] %v299, 128
        %492 = vxpose.xlu0.b32.cont [15/16] %v300, 128
        %493 = vxpose.xlu0.b32.end [16/16] %v301, 128
        %v494 = vpop.trf.xlu0
        %v495 = vpop.trf.xlu0
        %v496 = vpop.trf.xlu0
        %v497 = vpop.trf.xlu0
        %v498 = vpop.trf.xlu0
        %v499 = vpop.trf.xlu0
        %v500 = vpop.trf.xlu0
        %v501 = vpop.trf.xlu0
        %v502 = vpop.trf.xlu0
        %v503 = vpop.trf.xlu0
        %v504 = vpop.trf.xlu0
        %v505 = vpop.trf.xlu0
        %v506 = vpop.trf.xlu0
        %v507 = vpop.trf.xlu0
        %v508 = vpop.trf.xlu0
        %v509 = vpop.trf.xlu0
        %510 = vxpose.xlu0.b32.start [1/16] %v302, 128
        %511 = vxpose.xlu0.b32.cont [2/16] %v303, 128
        %512 = vxpose.xlu0.b32.cont [3/16] %v304, 128
        %513 = vxpose.xlu0.b32.cont [4/16] %v305, 128
        %514 = vxpose.xlu0.b32.cont [5/16] %v306, 128
        %515 = vxpose.xlu0.b32.cont [6/16] %v307, 128
        %516 = vxpose.xlu0.b32.cont [7/16] %v308, 128
        %517 = vxpose.xlu0.b32.cont [8/16] %v309, 128
        %518 = vxpose.xlu0.b32.cont [9/16] %v310, 128
        %519 = vxpose.xlu0.b32.cont [10/16] %v311, 128
        %520 = vxpose.xlu0.b32.cont [11/16] %v312, 128
        %521 = vxpose.xlu0.b32.cont [12/16] %v313, 128
        %522 = vxpose.xlu0.b32.cont [13/16] %v314, 128
        %523 = vxpose.xlu0.b32.cont [14/16] %v315, 128
        %524 = vxpose.xlu0.b32.cont [15/16] %v316, 128
        %525 = vxpose.xlu0.b32.end [16/16] %v317, 128
        %v526 = vpop.trf.xlu0
        %v527 = vpop.trf.xlu0
        %v528 = vpop.trf.xlu0
        %v529 = vpop.trf.xlu0
        %v530 = vpop.trf.xlu0
        %v531 = vpop.trf.xlu0
        %v532 = vpop.trf.xlu0
        %v533 = vpop.trf.xlu0
        %v534 = vpop.trf.xlu0
        %v535 = vpop.trf.xlu0
        %v536 = vpop.trf.xlu0
        %v537 = vpop.trf.xlu0
        %v538 = vpop.trf.xlu0
        %v539 = vpop.trf.xlu0
        %v540 = vpop.trf.xlu0
        %v541 = vpop.trf.xlu0
        %542 = vxpose.xlu0.b32.start [1/16] %v318, 128
        %543 = vxpose.xlu0.b32.cont [2/16] %v319, 128
        %544 = vxpose.xlu0.b32.cont [3/16] %v320, 128
        %545 = vxpose.xlu0.b32.cont [4/16] %v321, 128
        %546 = vxpose.xlu0.b32.cont [5/16] %v322, 128
        %547 = vxpose.xlu0.b32.cont [6/16] %v323, 128
        %548 = vxpose.xlu0.b32.cont [7/16] %v324, 128
        %549 = vxpose.xlu0.b32.cont [8/16] %v325, 128
        %550 = vxpose.xlu0.b32.cont [9/16] %v326, 128
        %551 = vxpose.xlu0.b32.cont [10/16] %v327, 128
        %552 = vxpose.xlu0.b32.cont [11/16] %v328, 128
        %553 = vxpose.xlu0.b32.cont [12/16] %v329, 128
        %554 = vxpose.xlu0.b32.cont [13/16] %v330, 128
        %555 = vxpose.xlu0.b32.cont [14/16] %v331, 128
        %556 = vxpose.xlu0.b32.cont [15/16] %v332, 128
        %557 = vxpose.xlu0.b32.end [16/16] %v333, 128
        %v558 = vpop.trf.xlu0
        %v559 = vpop.trf.xlu0
        %v560 = vpop.trf.xlu0
        %v561 = vpop.trf.xlu0
        %v562 = vpop.trf.xlu0
        %v563 = vpop.trf.xlu0
        %v564 = vpop.trf.xlu0
        %v565 = vpop.trf.xlu0
        %v566 = vpop.trf.xlu0
        %v567 = vpop.trf.xlu0
        %v568 = vpop.trf.xlu0
        %v569 = vpop.trf.xlu0
        %v570 = vpop.trf.xlu0
        %v571 = vpop.trf.xlu0
        %v572 = vpop.trf.xlu0
        %v573 = vpop.trf.xlu0
        %574 = vxpose.xlu0.b32.start [1/16] %v334, 128
        %575 = vxpose.xlu0.b32.cont [2/16] %v335, 128
        %576 = vxpose.xlu0.b32.cont [3/16] %v336, 128
        %577 = vxpose.xlu0.b32.cont [4/16] %v337, 128
        %578 = vxpose.xlu0.b32.cont [5/16] %v338, 128
        %579 = vxpose.xlu0.b32.cont [6/16] %v339, 128
        %580 = vxpose.xlu0.b32.cont [7/16] %v340, 128
        %581 = vxpose.xlu0.b32.cont [8/16] %v341, 128
        %582 = vxpose.xlu0.b32.cont [9/16] %v342, 128
        %583 = vxpose.xlu0.b32.cont [10/16] %v343, 128
        %584 = vxpose.xlu0.b32.cont [11/16] %v344, 128
        %585 = vxpose.xlu0.b32.cont [12/16] %v345, 128
        %586 = vxpose.xlu0.b32.cont [13/16] %v346, 128
        %587 = vxpose.xlu0.b32.cont [14/16] %v347, 128
        %588 = vxpose.xlu0.b32.cont [15/16] %v348, 128
        %589 = vxpose.xlu0.b32.end [16/16] %v349, 128
        %v590 = vpop.trf.xlu0
        %v591 = vpop.trf.xlu0
        %v592 = vpop.trf.xlu0
        %v593 = vpop.trf.xlu0
        %v594 = vpop.trf.xlu0
        %v595 = vpop.trf.xlu0
        %v596 = vpop.trf.xlu0
        %v597 = vpop.trf.xlu0
        %v598 = vpop.trf.xlu0
        %v599 = vpop.trf.xlu0
        %v600 = vpop.trf.xlu0
        %v601 = vpop.trf.xlu0
        %v602 = vpop.trf.xlu0
        %v603 = vpop.trf.xlu0
        %v604 = vpop.trf.xlu0
        %v605 = vpop.trf.xlu0
        %v606 = vld [vmem:[%s218] sm:$0xff]
        %v607 = vld [vmem:[%s218 + $0x8] sm:$0xff]
        %v608 = vld [vmem:[%s218 + $0x10] sm:$0xff]
        %v609 = vld [vmem:[%s218 + $0x18] sm:$0xff]
        %v610 = vld [vmem:[%s218 + $0x20] sm:$0xff]
        %v611 = vld [vmem:[%s218 + $0x28] sm:$0xff]
        %v612 = vld [vmem:[%s218 + $0x30] sm:$0xff]
        %v613 = vld [vmem:[%s218 + $0x38] sm:$0xff]
        %v614 = vld [vmem:[%s218 + $0x40] sm:$0xff]
        %v615 = vld [vmem:[%s218 + $0x48] sm:$0xff]
        %v616 = vld [vmem:[%s218 + $0x50] sm:$0xff]
        %v617 = vld [vmem:[%s218 + $0x58] sm:$0xff]
        %v618 = vld [vmem:[%s218 + $0x60] sm:$0xff]
        %v619 = vld [vmem:[%s218 + $0x68] sm:$0xff]
        %v620 = vld [vmem:[%s218 + $0x70] sm:$0xff]
        %v621 = vld [vmem:[%s218 + $0x78] sm:$0xff]
        %v622 = vld [vmem:[%s218 + $0x80] sm:$0xff]
        %v623 = vld [vmem:[%s218 + $0x88] sm:$0xff]
        %v624 = vld [vmem:[%s218 + $0x90] sm:$0xff]
        %v625 = vld [vmem:[%s218 + $0x98] sm:$0xff]
        %v626 = vld [vmem:[%s218 + $0xa0] sm:$0xff]
        %v627 = vld [vmem:[%s218 + $0xa8] sm:$0xff]
        %v628 = vld [vmem:[%s218 + $0xb0] sm:$0xff]
        %v629 = vld [vmem:[%s218 + $0xb8] sm:$0xff]
        %v630 = vld [vmem:[%s218 + $0xc0] sm:$0xff]
        %v631 = vld [vmem:[%s218 + $0xc8] sm:$0xff]
        %v632 = vld [vmem:[%s218 + $0xd0] sm:$0xff]
        %v633 = vld [vmem:[%s218 + $0xd8] sm:$0xff]
        %v634 = vld [vmem:[%s218 + $0xe0] sm:$0xff]
        %v635 = vld [vmem:[%s218 + $0xe8] sm:$0xff]
        %v636 = vld [vmem:[%s218 + $0xf0] sm:$0xff]
        %v637 = vld [vmem:[%s218 + $0xf8] sm:$0xff]
        %v638 = vld [vmem:[%s218 + $0x100] sm:$0xff]
        %v639 = vld [vmem:[%s218 + $0x108] sm:$0xff]
        %v640 = vld [vmem:[%s218 + $0x110] sm:$0xff]
        %v641 = vld [vmem:[%s218 + $0x118] sm:$0xff]
        %v642 = vld [vmem:[%s218 + $0x120] sm:$0xff]
        %v643 = vld [vmem:[%s218 + $0x128] sm:$0xff]
        %v644 = vld [vmem:[%s218 + $0x130] sm:$0xff]
        %v645 = vld [vmem:[%s218 + $0x138] sm:$0xff]
        %v646 = vld [vmem:[%s218 + $0x140] sm:$0xff]
        %v647 = vld [vmem:[%s218 + $0x148] sm:$0xff]
        %v648 = vld [vmem:[%s218 + $0x150] sm:$0xff]
        %v649 = vld [vmem:[%s218 + $0x158] sm:$0xff]
        %v650 = vld [vmem:[%s218 + $0x160] sm:$0xff]
        %v651 = vld [vmem:[%s218 + $0x168] sm:$0xff]
        %v652 = vld [vmem:[%s218 + $0x170] sm:$0xff]
        %v653 = vld [vmem:[%s218 + $0x178] sm:$0xff]
        %v654 = vld [vmem:[%s218 + $0x180] sm:$0xff]
        %v655 = vld [vmem:[%s218 + $0x188] sm:$0xff]
        %v656 = vld [vmem:[%s218 + $0x190] sm:$0xff]
        %v657 = vld [vmem:[%s218 + $0x198] sm:$0xff]
        %v658 = vld [vmem:[%s218 + $0x1a0] sm:$0xff]
        %v659 = vld [vmem:[%s218 + $0x1a8] sm:$0xff]
        %v660 = vld [vmem:[%s218 + $0x1b0] sm:$0xff]
        %v661 = vld [vmem:[%s218 + $0x1b8] sm:$0xff]
        %v662 = vld [vmem:[%s218 + $0x1c0] sm:$0xff]
        %v663 = vld [vmem:[%s218 + $0x1c8] sm:$0xff]
        %v664 = vld [vmem:[%s218 + $0x1d0] sm:$0xff]
        %v665 = vld [vmem:[%s218 + $0x1d8] sm:$0xff]
        %v666 = vld [vmem:[%s218 + $0x1e0] sm:$0xff]
        %v667 = vld [vmem:[%s218 + $0x1e8] sm:$0xff]
        %v668 = vld [vmem:[%s218 + $0x1f0] sm:$0xff]
        %v669 = vld [vmem:[%s218 + $0x1f8] sm:$0xff]
        %v670 = vld [vmem:[%s218 + $0x200] sm:$0xff]
        %v671 = vld [vmem:[%s218 + $0x208] sm:$0xff]
        %v672 = vld [vmem:[%s218 + $0x210] sm:$0xff]
        %v673 = vld [vmem:[%s218 + $0x218] sm:$0xff]
        %v674 = vld [vmem:[%s218 + $0x220] sm:$0xff]
        %v675 = vld [vmem:[%s218 + $0x228] sm:$0xff]
        %v676 = vld [vmem:[%s218 + $0x230] sm:$0xff]
        %v677 = vld [vmem:[%s218 + $0x238] sm:$0xff]
        %v678 = vld [vmem:[%s218 + $0x240] sm:$0xff]
        %v679 = vld [vmem:[%s218 + $0x248] sm:$0xff]
        %v680 = vld [vmem:[%s218 + $0x250] sm:$0xff]
        %v681 = vld [vmem:[%s218 + $0x258] sm:$0xff]
        %v682 = vld [vmem:[%s218 + $0x260] sm:$0xff]
        %v683 = vld [vmem:[%s218 + $0x268] sm:$0xff]
        %v684 = vld [vmem:[%s218 + $0x270] sm:$0xff]
        %v685 = vld [vmem:[%s218 + $0x278] sm:$0xff]
        %v686 = vld [vmem:[%s218 + $0x280] sm:$0xff]
        %v687 = vld [vmem:[%s218 + $0x288] sm:$0xff]
        %v688 = vld [vmem:[%s218 + $0x290] sm:$0xff]
        %v689 = vld [vmem:[%s218 + $0x298] sm:$0xff]
        %v690 = vld [vmem:[%s218 + $0x2a0] sm:$0xff]
        %v691 = vld [vmem:[%s218 + $0x2a8] sm:$0xff]
        %v692 = vld [vmem:[%s218 + $0x2b0] sm:$0xff]
        %v693 = vld [vmem:[%s218 + $0x2b8] sm:$0xff]
        %v694 = vld [vmem:[%s218 + $0x2c0] sm:$0xff]
        %v695 = vld [vmem:[%s218 + $0x2c8] sm:$0xff]
        %v696 = vld [vmem:[%s218 + $0x2d0] sm:$0xff]
        %v697 = vld [vmem:[%s218 + $0x2d8] sm:$0xff]
        %v698 = vld [vmem:[%s218 + $0x2e0] sm:$0xff]
        %v699 = vld [vmem:[%s218 + $0x2e8] sm:$0xff]
        %v700 = vld [vmem:[%s218 + $0x2f0] sm:$0xff]
        %v701 = vld [vmem:[%s218 + $0x2f8] sm:$0xff]
        %v702 = vld [vmem:[%s218 + $0x300] sm:$0xff]
        %v703 = vld [vmem:[%s218 + $0x308] sm:$0xff]
        %v704 = vld [vmem:[%s218 + $0x310] sm:$0xff]
        %v705 = vld [vmem:[%s218 + $0x318] sm:$0xff]
        %v706 = vld [vmem:[%s218 + $0x320] sm:$0xff]
        %v707 = vld [vmem:[%s218 + $0x328] sm:$0xff]
        %v708 = vld [vmem:[%s218 + $0x330] sm:$0xff]
        %v709 = vld [vmem:[%s218 + $0x338] sm:$0xff]
        %v710 = vld [vmem:[%s218 + $0x340] sm:$0xff]
        %v711 = vld [vmem:[%s218 + $0x348] sm:$0xff]
        %v712 = vld [vmem:[%s218 + $0x350] sm:$0xff]
        %v713 = vld [vmem:[%s218 + $0x358] sm:$0xff]
        %v714 = vld [vmem:[%s218 + $0x360] sm:$0xff]
        %v715 = vld [vmem:[%s218 + $0x368] sm:$0xff]
        %v716 = vld [vmem:[%s218 + $0x370] sm:$0xff]
        %v717 = vld [vmem:[%s218 + $0x378] sm:$0xff]
        %v718 = vld [vmem:[%s218 + $0x380] sm:$0xff]
        %v719 = vld [vmem:[%s218 + $0x388] sm:$0xff]
        %v720 = vld [vmem:[%s218 + $0x390] sm:$0xff]
        %v721 = vld [vmem:[%s218 + $0x398] sm:$0xff]
        %v722 = vld [vmem:[%s218 + $0x3a0] sm:$0xff]
        %v723 = vld [vmem:[%s218 + $0x3a8] sm:$0xff]
        %v724 = vld [vmem:[%s218 + $0x3b0] sm:$0xff]
        %v725 = vld [vmem:[%s218 + $0x3b8] sm:$0xff]
        %v726 = vld [vmem:[%s218 + $0x3c0] sm:$0xff]
        %v727 = vld [vmem:[%s218 + $0x3c8] sm:$0xff]
        %v728 = vld [vmem:[%s218 + $0x3d0] sm:$0xff]
        %v729 = vld [vmem:[%s218 + $0x3d8] sm:$0xff]
        %v730 = vld [vmem:[%s218 + $0x3e0] sm:$0xff]
        %v731 = vld [vmem:[%s218 + $0x3e8] sm:$0xff]
        %v732 = vld [vmem:[%s218 + $0x3f0] sm:$0xff]
        %v733 = vld [vmem:[%s218 + $0x3f8] sm:$0xff]
        %vm734 = vcmask 15360
        %v735 = vsel %vm734, %v606, 0.0
        %v736 = vsel %vm734, %v607, 0.0
        %v737 = vsel %vm734, %v608, 0.0
        %v738 = vsel %vm734, %v609, 0.0
        %v739 = vsel %vm734, %v610, 0.0
        %v740 = vsel %vm734, %v611, 0.0
        %v741 = vsel %vm734, %v612, 0.0
        %v742 = vsel %vm734, %v613, 0.0
        %v743 = vsel %vm734, %v614, 0.0
        %v744 = vsel %vm734, %v615, 0.0
        %v745 = vsel %vm734, %v616, 0.0
        %v746 = vsel %vm734, %v617, 0.0
        %v747 = vsel %vm734, %v618, 0.0
        %v748 = vsel %vm734, %v619, 0.0
        %v749 = vsel %vm734, %v620, 0.0
        %v750 = vsel %vm734, %v621, 0.0
        %v751 = vsel %vm734, %v622, 0.0
        %v752 = vsel %vm734, %v623, 0.0
        %v753 = vsel %vm734, %v624, 0.0
        %v754 = vsel %vm734, %v625, 0.0
        %v755 = vsel %vm734, %v626, 0.0
        %v756 = vsel %vm734, %v627, 0.0
        %v757 = vsel %vm734, %v628, 0.0
        %v758 = vsel %vm734, %v629, 0.0
        %v759 = vsel %vm734, %v630, 0.0
        %v760 = vsel %vm734, %v631, 0.0
        %v761 = vsel %vm734, %v632, 0.0
        %v762 = vsel %vm734, %v633, 0.0
        %v763 = vsel %vm734, %v634, 0.0
        %v764 = vsel %vm734, %v635, 0.0
        %v765 = vsel %vm734, %v636, 0.0
        %v766 = vsel %vm734, %v637, 0.0
        %v767 = vsel %vm734, %v638, 0.0
        %v768 = vsel %vm734, %v639, 0.0
        %v769 = vsel %vm734, %v640, 0.0
        %v770 = vsel %vm734, %v641, 0.0
        %v771 = vsel %vm734, %v642, 0.0
        %v772 = vsel %vm734, %v643, 0.0
        %v773 = vsel %vm734, %v644, 0.0
        %v774 = vsel %vm734, %v645, 0.0
        %v775 = vsel %vm734, %v646, 0.0
        %v776 = vsel %vm734, %v647, 0.0
        %v777 = vsel %vm734, %v648, 0.0
        %v778 = vsel %vm734, %v649, 0.0
        %v779 = vsel %vm734, %v650, 0.0
        %v780 = vsel %vm734, %v651, 0.0
        %v781 = vsel %vm734, %v652, 0.0
        %v782 = vsel %vm734, %v653, 0.0
        %v783 = vsel %vm734, %v654, 0.0
        %v784 = vsel %vm734, %v655, 0.0
        %v785 = vsel %vm734, %v656, 0.0
        %v786 = vsel %vm734, %v657, 0.0
        %v787 = vsel %vm734, %v658, 0.0
        %v788 = vsel %vm734, %v659, 0.0
        %v789 = vsel %vm734, %v660, 0.0
        %v790 = vsel %vm734, %v661, 0.0
        %v791 = vsel %vm734, %v662, 0.0
        %v792 = vsel %vm734, %v663, 0.0
        %v793 = vsel %vm734, %v664, 0.0
        %v794 = vsel %vm734, %v665, 0.0
        %v795 = vsel %vm734, %v666, 0.0
        %v796 = vsel %vm734, %v667, 0.0
        %v797 = vsel %vm734, %v668, 0.0
        %v798 = vsel %vm734, %v669, 0.0
        %v799 = vsel %vm734, %v670, 0.0
        %v800 = vsel %vm734, %v671, 0.0
        %v801 = vsel %vm734, %v672, 0.0
        %v802 = vsel %vm734, %v673, 0.0
        %v803 = vsel %vm734, %v674, 0.0
        %v804 = vsel %vm734, %v675, 0.0
        %v805 = vsel %vm734, %v676, 0.0
        %v806 = vsel %vm734, %v677, 0.0
        %v807 = vsel %vm734, %v678, 0.0
        %v808 = vsel %vm734, %v679, 0.0
        %v809 = vsel %vm734, %v680, 0.0
        %v810 = vsel %vm734, %v681, 0.0
        %v811 = vsel %vm734, %v682, 0.0
        %v812 = vsel %vm734, %v683, 0.0
        %v813 = vsel %vm734, %v684, 0.0
        %v814 = vsel %vm734, %v685, 0.0
        %v815 = vsel %vm734, %v686, 0.0
        %v816 = vsel %vm734, %v687, 0.0
        %v817 = vsel %vm734, %v688, 0.0
        %v818 = vsel %vm734, %v689, 0.0
        %v819 = vsel %vm734, %v690, 0.0
        %v820 = vsel %vm734, %v691, 0.0
        %v821 = vsel %vm734, %v692, 0.0
        %v822 = vsel %vm734, %v693, 0.0
        %v823 = vsel %vm734, %v694, 0.0
        %v824 = vsel %vm734, %v695, 0.0
        %v825 = vsel %vm734, %v696, 0.0
        %v826 = vsel %vm734, %v697, 0.0
        %v827 = vsel %vm734, %v698, 0.0
        %v828 = vsel %vm734, %v699, 0.0
        %v829 = vsel %vm734, %v700, 0.0
        %v830 = vsel %vm734, %v701, 0.0
        %v831 = vsel %vm734, %v702, 0.0
        %v832 = vsel %vm734, %v703, 0.0
        %v833 = vsel %vm734, %v704, 0.0
        %v834 = vsel %vm734, %v705, 0.0
        %v835 = vsel %vm734, %v706, 0.0
        %v836 = vsel %vm734, %v707, 0.0
        %v837 = vsel %vm734, %v708, 0.0
        %v838 = vsel %vm734, %v709, 0.0
        %v839 = vsel %vm734, %v710, 0.0
        %v840 = vsel %vm734, %v711, 0.0
        %v841 = vsel %vm734, %v712, 0.0
        %v842 = vsel %vm734, %v713, 0.0
        %v843 = vsel %vm734, %v714, 0.0
        %v844 = vsel %vm734, %v715, 0.0
        %v845 = vsel %vm734, %v716, 0.0
        %v846 = vsel %vm734, %v717, 0.0
        %v847 = vsel %vm734, %v718, 0.0
        %v848 = vsel %vm734, %v719, 0.0
        %v849 = vsel %vm734, %v720, 0.0
        %v850 = vsel %vm734, %v721, 0.0
        %v851 = vsel %vm734, %v722, 0.0
        %v852 = vsel %vm734, %v723, 0.0
        %v853 = vsel %vm734, %v724, 0.0
        %v854 = vsel %vm734, %v725, 0.0
        %v855 = vsel %vm734, %v726, 0.0
        %v856 = vsel %vm734, %v727, 0.0
        %v857 = vsel %vm734, %v728, 0.0
        %v858 = vsel %vm734, %v729, 0.0
        %v859 = vsel %vm734, %v730, 0.0
        %v860 = vsel %vm734, %v731, 0.0
        %v861 = vsel %vm734, %v732, 0.0
        %v862 = vsel %vm734, %v733, 0.0
        %863 = vxpose.xlu0.b32.start [1/16] %v735, 128
        %864 = vxpose.xlu0.b32.cont [2/16] %v736, 128
        %865 = vxpose.xlu0.b32.cont [3/16] %v737, 128
        %866 = vxpose.xlu0.b32.cont [4/16] %v738, 128
        %867 = vxpose.xlu0.b32.cont [5/16] %v739, 128
        %868 = vxpose.xlu0.b32.cont [6/16] %v740, 128
        %869 = vxpose.xlu0.b32.cont [7/16] %v741, 128
        %870 = vxpose.xlu0.b32.cont [8/16] %v742, 128
        %871 = vxpose.xlu0.b32.cont [9/16] %v743, 128
        %872 = vxpose.xlu0.b32.cont [10/16] %v744, 128
        %873 = vxpose.xlu0.b32.cont [11/16] %v745, 128
        %874 = vxpose.xlu0.b32.cont [12/16] %v746, 128
        %875 = vxpose.xlu0.b32.cont [13/16] %v747, 128
        %876 = vxpose.xlu0.b32.cont [14/16] %v748, 128
        %877 = vxpose.xlu0.b32.cont [15/16] %v749, 128
        %878 = vxpose.xlu0.b32.end [16/16] %v750, 128
        %v879 = vpop.trf.xlu0
        %v880 = vpop.trf.xlu0
        %v881 = vpop.trf.xlu0
        %v882 = vpop.trf.xlu0
        %v883 = vpop.trf.xlu0
        %v884 = vpop.trf.xlu0
        %v885 = vpop.trf.xlu0
        %v886 = vpop.trf.xlu0
        %v887 = vpop.trf.xlu0
        %v888 = vpop.trf.xlu0
        %v889 = vpop.trf.xlu0
        %v890 = vpop.trf.xlu0
        %v891 = vpop.trf.xlu0
        %v892 = vpop.trf.xlu0
        %v893 = vpop.trf.xlu0
        %v894 = vpop.trf.xlu0
        %895 = vxpose.xlu0.b32.start [1/16] %v751, 128
        %896 = vxpose.xlu0.b32.cont [2/16] %v752, 128
        %897 = vxpose.xlu0.b32.cont [3/16] %v753, 128
        %898 = vxpose.xlu0.b32.cont [4/16] %v754, 128
        %899 = vxpose.xlu0.b32.cont [5/16] %v755, 128
        %900 = vxpose.xlu0.b32.cont [6/16] %v756, 128
        %901 = vxpose.xlu0.b32.cont [7/16] %v757, 128
        %902 = vxpose.xlu0.b32.cont [8/16] %v758, 128
        %903 = vxpose.xlu0.b32.cont [9/16] %v759, 128
        %904 = vxpose.xlu0.b32.cont [10/16] %v760, 128
        %905 = vxpose.xlu0.b32.cont [11/16] %v761, 128
        %906 = vxpose.xlu0.b32.cont [12/16] %v762, 128
        %907 = vxpose.xlu0.b32.cont [13/16] %v763, 128
        %908 = vxpose.xlu0.b32.cont [14/16] %v764, 128
        %909 = vxpose.xlu0.b32.cont [15/16] %v765, 128
        %910 = vxpose.xlu0.b32.end [16/16] %v766, 128
        %v911 = vpop.trf.xlu0
        %v912 = vpop.trf.xlu0
        %v913 = vpop.trf.xlu0
        %v914 = vpop.trf.xlu0
        %v915 = vpop.trf.xlu0
        %v916 = vpop.trf.xlu0
        %v917 = vpop.trf.xlu0
        %v918 = vpop.trf.xlu0
        %v919 = vpop.trf.xlu0
        %v920 = vpop.trf.xlu0
        %v921 = vpop.trf.xlu0
        %v922 = vpop.trf.xlu0
        %v923 = vpop.trf.xlu0
        %v924 = vpop.trf.xlu0
        %v925 = vpop.trf.xlu0
        %v926 = vpop.trf.xlu0
        %927 = vxpose.xlu0.b32.start [1/16] %v767, 128
        %928 = vxpose.xlu0.b32.cont [2/16] %v768, 128
        %929 = vxpose.xlu0.b32.cont [3/16] %v769, 128
        %930 = vxpose.xlu0.b32.cont [4/16] %v770, 128
        %931 = vxpose.xlu0.b32.cont [5/16] %v771, 128
        %932 = vxpose.xlu0.b32.cont [6/16] %v772, 128
        %933 = vxpose.xlu0.b32.cont [7/16] %v773, 128
        %934 = vxpose.xlu0.b32.cont [8/16] %v774, 128
        %935 = vxpose.xlu0.b32.cont [9/16] %v775, 128
        %936 = vxpose.xlu0.b32.cont [10/16] %v776, 128
        %937 = vxpose.xlu0.b32.cont [11/16] %v777, 128
        %938 = vxpose.xlu0.b32.cont [12/16] %v778, 128
        %939 = vxpose.xlu0.b32.cont [13/16] %v779, 128
        %940 = vxpose.xlu0.b32.cont [14/16] %v780, 128
        %941 = vxpose.xlu0.b32.cont [15/16] %v781, 128
        %942 = vxpose.xlu0.b32.end [16/16] %v782, 128
        %v943 = vpop.trf.xlu0
        %v944 = vpop.trf.xlu0
        %v945 = vpop.trf.xlu0
        %v946 = vpop.trf.xlu0
        %v947 = vpop.trf.xlu0
        %v948 = vpop.trf.xlu0
        %v949 = vpop.trf.xlu0
        %v950 = vpop.trf.xlu0
        %v951 = vpop.trf.xlu0
        %v952 = vpop.trf.xlu0
        %v953 = vpop.trf.xlu0
        %v954 = vpop.trf.xlu0
        %v955 = vpop.trf.xlu0
        %v956 = vpop.trf.xlu0
        %v957 = vpop.trf.xlu0
        %v958 = vpop.trf.xlu0
        %959 = vxpose.xlu0.b32.start [1/16] %v783, 128
        %960 = vxpose.xlu0.b32.cont [2/16] %v784, 128
        %961 = vxpose.xlu0.b32.cont [3/16] %v785, 128
        %962 = vxpose.xlu0.b32.cont [4/16] %v786, 128
        %963 = vxpose.xlu0.b32.cont [5/16] %v787, 128
        %964 = vxpose.xlu0.b32.cont [6/16] %v788, 128
        %965 = vxpose.xlu0.b32.cont [7/16] %v789, 128
        %966 = vxpose.xlu0.b32.cont [8/16] %v790, 128
        %967 = vxpose.xlu0.b32.cont [9/16] %v791, 128
        %968 = vxpose.xlu0.b32.cont [10/16] %v792, 128
        %969 = vxpose.xlu0.b32.cont [11/16] %v793, 128
        %970 = vxpose.xlu0.b32.cont [12/16] %v794, 128
        %971 = vxpose.xlu0.b32.cont [13/16] %v795, 128
        %972 = vxpose.xlu0.b32.cont [14/16] %v796, 128
        %973 = vxpose.xlu0.b32.cont [15/16] %v797, 128
        %974 = vxpose.xlu0.b32.end [16/16] %v798, 128
        %v975 = vpop.trf.xlu0
        %v976 = vpop.trf.xlu0
        %v977 = vpop.trf.xlu0
        %v978 = vpop.trf.xlu0
        %v979 = vpop.trf.xlu0
        %v980 = vpop.trf.xlu0
        %v981 = vpop.trf.xlu0
        %v982 = vpop.trf.xlu0
        %v983 = vpop.trf.xlu0
        %v984 = vpop.trf.xlu0
        %v985 = vpop.trf.xlu0
        %v986 = vpop.trf.xlu0
        %v987 = vpop.trf.xlu0
        %v988 = vpop.trf.xlu0
        %v989 = vpop.trf.xlu0
        %v990 = vpop.trf.xlu0
        %991 = vxpose.xlu0.b32.start [1/16] %v799, 128
        %992 = vxpose.xlu0.b32.cont [2/16] %v800, 128
        %993 = vxpose.xlu0.b32.cont [3/16] %v801, 128
        %994 = vxpose.xlu0.b32.cont [4/16] %v802, 128
        %995 = vxpose.xlu0.b32.cont [5/16] %v803, 128
        %996 = vxpose.xlu0.b32.cont [6/16] %v804, 128
        %997 = vxpose.xlu0.b32.cont [7/16] %v805, 128
        %998 = vxpose.xlu0.b32.cont [8/16] %v806, 128
        %999 = vxpose.xlu0.b32.cont [9/16] %v807, 128
        %1000 = vxpose.xlu0.b32.cont [10/16] %v808, 128
        %1001 = vxpose.xlu0.b32.cont [11/16] %v809, 128
        %1002 = vxpose.xlu0.b32.cont [12/16] %v810, 128
        %1003 = vxpose.xlu0.b32.cont [13/16] %v811, 128
        %1004 = vxpose.xlu0.b32.cont [14/16] %v812, 128
        %1005 = vxpose.xlu0.b32.cont [15/16] %v813, 128
        %1006 = vxpose.xlu0.b32.end [16/16] %v814, 128
        %v1007 = vpop.trf.xlu0
        %v1008 = vpop.trf.xlu0
        %v1009 = vpop.trf.xlu0
        %v1010 = vpop.trf.xlu0
        %v1011 = vpop.trf.xlu0
        %v1012 = vpop.trf.xlu0
        %v1013 = vpop.trf.xlu0
        %v1014 = vpop.trf.xlu0
        %v1015 = vpop.trf.xlu0
        %v1016 = vpop.trf.xlu0
        %v1017 = vpop.trf.xlu0
        %v1018 = vpop.trf.xlu0
        %v1019 = vpop.trf.xlu0
        %v1020 = vpop.trf.xlu0
        %v1021 = vpop.trf.xlu0
        %v1022 = vpop.trf.xlu0
        %1023 = vxpose.xlu0.b32.start [1/16] %v815, 128
        %1024 = vxpose.xlu0.b32.cont [2/16] %v816, 128
        %1025 = vxpose.xlu0.b32.cont [3/16] %v817, 128
        %1026 = vxpose.xlu0.b32.cont [4/16] %v818, 128
        %1027 = vxpose.xlu0.b32.cont [5/16] %v819, 128
        %1028 = vxpose.xlu0.b32.cont [6/16] %v820, 128
        %1029 = vxpose.xlu0.b32.cont [7/16] %v821, 128
        %1030 = vxpose.xlu0.b32.cont [8/16] %v822, 128
        %1031 = vxpose.xlu0.b32.cont [9/16] %v823, 128
        %1032 = vxpose.xlu0.b32.cont [10/16] %v824, 128
        %1033 = vxpose.xlu0.b32.cont [11/16] %v825, 128
        %1034 = vxpose.xlu0.b32.cont [12/16] %v826, 128
        %1035 = vxpose.xlu0.b32.cont [13/16] %v827, 128
        %1036 = vxpose.xlu0.b32.cont [14/16] %v828, 128
        %1037 = vxpose.xlu0.b32.cont [15/16] %v829, 128
        %1038 = vxpose.xlu0.b32.end [16/16] %v830, 128
        %v1039 = vpop.trf.xlu0
        %v1040 = vpop.trf.xlu0
        %v1041 = vpop.trf.xlu0
        %v1042 = vpop.trf.xlu0
        %v1043 = vpop.trf.xlu0
        %v1044 = vpop.trf.xlu0
        %v1045 = vpop.trf.xlu0
        %v1046 = vpop.trf.xlu0
        %v1047 = vpop.trf.xlu0
        %v1048 = vpop.trf.xlu0
        %v1049 = vpop.trf.xlu0
        %v1050 = vpop.trf.xlu0
        %v1051 = vpop.trf.xlu0
        %v1052 = vpop.trf.xlu0
        %v1053 = vpop.trf.xlu0
        %v1054 = vpop.trf.xlu0
        %1055 = vxpose.xlu0.b32.start [1/16] %v831, 128
        %1056 = vxpose.xlu0.b32.cont [2/16] %v832, 128
        %1057 = vxpose.xlu0.b32.cont [3/16] %v833, 128
        %1058 = vxpose.xlu0.b32.cont [4/16] %v834, 128
        %1059 = vxpose.xlu0.b32.cont [5/16] %v835, 128
        %1060 = vxpose.xlu0.b32.cont [6/16] %v836, 128
        %1061 = vxpose.xlu0.b32.cont [7/16] %v837, 128
        %1062 = vxpose.xlu0.b32.cont [8/16] %v838, 128
        %1063 = vxpose.xlu0.b32.cont [9/16] %v839, 128
        %1064 = vxpose.xlu0.b32.cont [10/16] %v840, 128
        %1065 = vxpose.xlu0.b32.cont [11/16] %v841, 128
        %1066 = vxpose.xlu0.b32.cont [12/16] %v842, 128
        %1067 = vxpose.xlu0.b32.cont [13/16] %v843, 128
        %1068 = vxpose.xlu0.b32.cont [14/16] %v844, 128
        %1069 = vxpose.xlu0.b32.cont [15/16] %v845, 128
        %1070 = vxpose.xlu0.b32.end [16/16] %v846, 128
        %v1071 = vpop.trf.xlu0
        %v1072 = vpop.trf.xlu0
        %v1073 = vpop.trf.xlu0
        %v1074 = vpop.trf.xlu0
        %v1075 = vpop.trf.xlu0
        %v1076 = vpop.trf.xlu0
        %v1077 = vpop.trf.xlu0
        %v1078 = vpop.trf.xlu0
        %v1079 = vpop.trf.xlu0
        %v1080 = vpop.trf.xlu0
        %v1081 = vpop.trf.xlu0
        %v1082 = vpop.trf.xlu0
        %v1083 = vpop.trf.xlu0
        %v1084 = vpop.trf.xlu0
        %v1085 = vpop.trf.xlu0
        %v1086 = vpop.trf.xlu0
        %1087 = vxpose.xlu0.b32.start [1/16] %v847, 128
        %1088 = vxpose.xlu0.b32.cont [2/16] %v848, 128
        %1089 = vxpose.xlu0.b32.cont [3/16] %v849, 128
        %1090 = vxpose.xlu0.b32.cont [4/16] %v850, 128
        %1091 = vxpose.xlu0.b32.cont [5/16] %v851, 128
        %1092 = vxpose.xlu0.b32.cont [6/16] %v852, 128
        %1093 = vxpose.xlu0.b32.cont [7/16] %v853, 128
        %1094 = vxpose.xlu0.b32.cont [8/16] %v854, 128
        %1095 = vxpose.xlu0.b32.cont [9/16] %v855, 128
        %1096 = vxpose.xlu0.b32.cont [10/16] %v856, 128
        %1097 = vxpose.xlu0.b32.cont [11/16] %v857, 128
        %1098 = vxpose.xlu0.b32.cont [12/16] %v858, 128
        %1099 = vxpose.xlu0.b32.cont [13/16] %v859, 128
        %1100 = vxpose.xlu0.b32.cont [14/16] %v860, 128
        %1101 = vxpose.xlu0.b32.cont [15/16] %v861, 128
        %1102 = vxpose.xlu0.b32.end [16/16] %v862, 128
        %v1103 = vpop.trf.xlu0
        %v1104 = vpop.trf.xlu0
        %v1105 = vpop.trf.xlu0
        %v1106 = vpop.trf.xlu0
        %v1107 = vpop.trf.xlu0
        %v1108 = vpop.trf.xlu0
        %v1109 = vpop.trf.xlu0
        %v1110 = vpop.trf.xlu0
        %v1111 = vpop.trf.xlu0
        %v1112 = vpop.trf.xlu0
        %v1113 = vpop.trf.xlu0
        %v1114 = vpop.trf.xlu0
        %v1115 = vpop.trf.xlu0
        %v1116 = vpop.trf.xlu0
        %v1117 = vpop.trf.xlu0
        %v1118 = vpop.trf.xlu0
        %v1119 = vsub.f32 %v366, -1.0
        %v1120 = vsub.f32 %v398, -1.0
        %v1121 = vsub.f32 %v430, -1.0
        %v1122 = vsub.f32 %v462, -1.0
        %v1123 = vsub.f32 %v494, -1.0
        %v1124 = vsub.f32 %v526, -1.0
        %v1125 = vsub.f32 %v558, -1.0
        %v1126 = vsub.f32 %v590, -1.0
        %v1127 = vsub.f32 %v367, -1.0
        %v1128 = vsub.f32 %v399, -1.0
        %v1129 = vsub.f32 %v431, -1.0
        %v1130 = vsub.f32 %v463, -1.0
        %v1131 = vsub.f32 %v495, -1.0
        %v1132 = vsub.f32 %v527, -1.0
        %v1133 = vsub.f32 %v559, -1.0
        %v1134 = vsub.f32 %v591, -1.0
        %v1135 = vsub.f32 %v366, 1.0
        %v1136 = vsub.f32 %v398, 1.0
        %v1137 = vsub.f32 %v430, 1.0
        %v1138 = vsub.f32 %v462, 1.0
        %v1139 = vsub.f32 %v494, 1.0
        %v1140 = vsub.f32 %v526, 1.0
        %v1141 = vsub.f32 %v558, 1.0
        %v1142 = vsub.f32 %v590, 1.0
        %v1143 = vsub.f32 %v367, 1.0
        %v1144 = vsub.f32 %v399, 1.0
        %v1145 = vsub.f32 %v431, 1.0
        %v1146 = vsub.f32 %v463, 1.0
        %v1147 = vsub.f32 %v495, 1.0
        %v1148 = vsub.f32 %v527, 1.0
        %v1149 = vsub.f32 %v559, 1.0
        %v1150 = vsub.f32 %v591, 1.0
        %v1151 = vmul.f32 %v1135, -0.5
        %v1152 = vmul.f32 %v1136, -0.5
        %v1153 = vmul.f32 %v1137, -0.5
        %v1154 = vmul.f32 %v1138, -0.5
        %v1155 = vmul.f32 %v1139, -0.5
        %v1156 = vmul.f32 %v1140, -0.5
        %v1157 = vmul.f32 %v1141, -0.5
        %v1158 = vmul.f32 %v1142, -0.5
        %v1159 = vmul.f32 %v1143, -0.5
        %v1160 = vmul.f32 %v1144, -0.5
        %v1161 = vmul.f32 %v1145, -0.5
        %v1162 = vmul.f32 %v1146, -0.5
        %v1163 = vmul.f32 %v1147, -0.5
        %v1164 = vmul.f32 %v1148, -0.5
        %v1165 = vmul.f32 %v1149, -0.5
        %v1166 = vmul.f32 %v1150, -0.5
        %v1167 = vmul.f32 %v1119, 0.5
        %v1168 = vmul.f32 %v1120, 0.5
        %v1169 = vmul.f32 %v1121, 0.5
        %v1170 = vmul.f32 %v1122, 0.5
        %v1171 = vmul.f32 %v1123, 0.5
        %v1172 = vmul.f32 %v1124, 0.5
        %v1173 = vmul.f32 %v1125, 0.5
        %v1174 = vmul.f32 %v1126, 0.5
        %v1175 = vmul.f32 %v1127, 0.5
        %v1176 = vmul.f32 %v1128, 0.5
        %v1177 = vmul.f32 %v1129, 0.5
        %v1178 = vmul.f32 %v1130, 0.5
        %v1179 = vmul.f32 %v1131, 0.5
        %v1180 = vmul.f32 %v1132, 0.5
        %v1181 = vmul.f32 %v1133, 0.5
        %v1182 = vmul.f32 %v1134, 0.5
        %v1183 = vadd.f32 %v879, 1.0
        %v1184 = vadd.f32 %v911, 1.0
        %v1185 = vadd.f32 %v943, 1.0
        %v1186 = vadd.f32 %v975, 1.0
        %v1187 = vadd.f32 %v1007, 1.0
        %v1188 = vadd.f32 %v1039, 1.0
        %v1189 = vadd.f32 %v1071, 1.0
        %v1190 = vadd.f32 %v1103, 1.0
        %v1191 = vmul.f32 %v1183, 2.0
        %v1192 = vmul.f32 %v1184, 2.0
        %v1193 = vmul.f32 %v1185, 2.0
        %v1194 = vmul.f32 %v1186, 2.0
        %v1195 = vmul.f32 %v1187, 2.0
        %v1196 = vmul.f32 %v1188, 2.0
        %v1197 = vmul.f32 %v1189, 2.0
        %v1198 = vmul.f32 %v1190, 2.0
        %v1199 = vfloor.f32 %v1191
        %v1200 = vfloor.f32 %v1192
        %v1201 = vfloor.f32 %v1193
        %v1202 = vfloor.f32 %v1194
        %v1203 = vfloor.f32 %v1195
        %v1204 = vfloor.f32 %v1196
        %v1205 = vfloor.f32 %v1197
        %v1206 = vfloor.f32 %v1198
        %v1207 = vmax.f32 %v1199, 0.0
        %v1208 = vmax.f32 %v1200, 0.0
        %v1209 = vmax.f32 %v1201, 0.0
        %v1210 = vmax.f32 %v1202, 0.0
        %v1211 = vmax.f32 %v1203, 0.0
        %v1212 = vmax.f32 %v1204, 0.0
        %v1213 = vmax.f32 %v1205, 0.0
        %v1214 = vmax.f32 %v1206, 0.0
        %v1215 = vmin.f32 %v1207, 3.0
        %v1216 = vmin.f32 %v1208, 3.0
        %v1217 = vmin.f32 %v1209, 3.0
        %v1218 = vmin.f32 %v1210, 3.0
        %v1219 = vmin.f32 %v1211, 3.0
        %v1220 = vmin.f32 %v1212, 3.0
        %v1221 = vmin.f32 %v1213, 3.0
        %v1222 = vmin.f32 %v1214, 3.0
        %v1223 = vsub.f32 %v1191, %v1215
        %v1224 = vsub.f32 %v1192, %v1216
        %v1225 = vsub.f32 %v1193, %v1217
        %v1226 = vsub.f32 %v1194, %v1218
        %v1227 = vsub.f32 %v1195, %v1219
        %v1228 = vsub.f32 %v1196, %v1220
        %v1229 = vsub.f32 %v1197, %v1221
        %v1230 = vsub.f32 %v1198, %v1222
        %v1231 = vmul.f32 %v1223, 2.0
        %v1232 = vmul.f32 %v1224, 2.0
        %v1233 = vmul.f32 %v1225, 2.0
        %v1234 = vmul.f32 %v1226, 2.0
        %v1235 = vmul.f32 %v1227, 2.0
        %v1236 = vmul.f32 %v1228, 2.0
        %v1237 = vmul.f32 %v1229, 2.0
        %v1238 = vmul.f32 %v1230, 2.0
        %v1239 = vsub.f32 %v1231, 1.0
        %v1240 = vsub.f32 %v1232, 1.0
        %v1241 = vsub.f32 %v1233, 1.0
        %v1242 = vsub.f32 %v1234, 1.0
        %v1243 = vsub.f32 %v1235, 1.0
        %v1244 = vsub.f32 %v1236, 1.0
        %v1245 = vsub.f32 %v1237, 1.0
        %v1246 = vsub.f32 %v1238, 1.0
        %v1247 = vsub.f32 %v1239, -1.0
        %v1248 = vsub.f32 %v1240, -1.0
        %v1249 = vsub.f32 %v1241, -1.0
        %v1250 = vsub.f32 %v1242, -1.0
        %v1251 = vsub.f32 %v1243, -1.0
        %v1252 = vsub.f32 %v1244, -1.0
        %v1253 = vsub.f32 %v1245, -1.0
        %v1254 = vsub.f32 %v1246, -1.0
        %v1255 = vsub.f32 %v1239, -6.123234e-17
        %v1256 = vsub.f32 %v1240, -6.123234e-17
        %v1257 = vsub.f32 %v1241, -6.123234e-17
        %v1258 = vsub.f32 %v1242, -6.123234e-17
        %v1259 = vsub.f32 %v1243, -6.123234e-17
        %v1260 = vsub.f32 %v1244, -6.123234e-17
        %v1261 = vsub.f32 %v1245, -6.123234e-17
        %v1262 = vsub.f32 %v1246, -6.123234e-17
        %v1263 = vsub.f32 %v1239, 1.0
        %v1264 = vsub.f32 %v1240, 1.0
        %v1265 = vsub.f32 %v1241, 1.0
        %v1266 = vsub.f32 %v1242, 1.0
        %v1267 = vsub.f32 %v1243, 1.0
        %v1268 = vsub.f32 %v1244, 1.0
        %v1269 = vsub.f32 %v1245, 1.0
        %v1270 = vsub.f32 %v1246, 1.0
        %v1271 = vmul.f32 %v1255, %v1263
        %v1272 = vmul.f32 %v1256, %v1264
        %v1273 = vmul.f32 %v1257, %v1265
        %v1274 = vmul.f32 %v1258, %v1266
        %v1275 = vmul.f32 %v1259, %v1267
        %v1276 = vmul.f32 %v1260, %v1268
        %v1277 = vmul.f32 %v1261, %v1269
        %v1278 = vmul.f32 %v1262, %v1270
        %v1279 = vmul.f32 %v1271, 0.5
        %v1280 = vmul.f32 %v1272, 0.5
        %v1281 = vmul.f32 %v1273, 0.5
        %v1282 = vmul.f32 %v1274, 0.5
        %v1283 = vmul.f32 %v1275, 0.5
        %v1284 = vmul.f32 %v1276, 0.5
        %v1285 = vmul.f32 %v1277, 0.5
        %v1286 = vmul.f32 %v1278, 0.5
        %v1287 = vmul.f32 %v1247, %v1263
        %v1288 = vmul.f32 %v1248, %v1264
        %v1289 = vmul.f32 %v1249, %v1265
        %v1290 = vmul.f32 %v1250, %v1266
        %v1291 = vmul.f32 %v1251, %v1267
        %v1292 = vmul.f32 %v1252, %v1268
        %v1293 = vmul.f32 %v1253, %v1269
        %v1294 = vmul.f32 %v1254, %v1270
        %v1295 = vmul.f32 %v1287, -1.0
        %v1296 = vmul.f32 %v1288, -1.0
        %v1297 = vmul.f32 %v1289, -1.0
        %v1298 = vmul.f32 %v1290, -1.0
        %v1299 = vmul.f32 %v1291, -1.0
        %v1300 = vmul.f32 %v1292, -1.0
        %v1301 = vmul.f32 %v1293, -1.0
        %v1302 = vmul.f32 %v1294, -1.0
        %v1303 = vmul.f32 %v1247, %v1255
        %v1304 = vmul.f32 %v1248, %v1256
        %v1305 = vmul.f32 %v1249, %v1257
        %v1306 = vmul.f32 %v1250, %v1258
        %v1307 = vmul.f32 %v1251, %v1259
        %v1308 = vmul.f32 %v1252, %v1260
        %v1309 = vmul.f32 %v1253, %v1261
        %v1310 = vmul.f32 %v1254, %v1262
        %v1311 = vmul.f32 %v1303, 0.5
        %v1312 = vmul.f32 %v1304, 0.5
        %v1313 = vmul.f32 %v1305, 0.5
        %v1314 = vmul.f32 %v1306, 0.5
        %v1315 = vmul.f32 %v1307, 0.5
        %v1316 = vmul.f32 %v1308, 0.5
        %v1317 = vmul.f32 %v1309, 0.5
        %v1318 = vmul.f32 %v1310, 0.5
        %vm1319 = vcmp.eq.f32.partialorder %v1215, 0.0
        %vm1320 = vcmp.eq.f32.partialorder %v1216, 0.0
        %vm1321 = vcmp.eq.f32.partialorder %v1217, 0.0
        %vm1322 = vcmp.eq.f32.partialorder %v1218, 0.0
        %vm1323 = vcmp.eq.f32.partialorder %v1219, 0.0
        %vm1324 = vcmp.eq.f32.partialorder %v1220, 0.0
        %vm1325 = vcmp.eq.f32.partialorder %v1221, 0.0
        %vm1326 = vcmp.eq.f32.partialorder %v1222, 0.0
        %v1327 = vsel %vm1319, 1, 0
        %v1328 = vsel %vm1320, 1, 0
        %v1329 = vsel %vm1321, 1, 0
        %v1330 = vsel %vm1322, 1, 0
        %v1331 = vsel %vm1323, 1, 0
        %v1332 = vsel %vm1324, 1, 0
        %v1333 = vsel %vm1325, 1, 0
        %v1334 = vsel %vm1326, 1, 0
        %v1335 = vcvt.s32.f32 %v1327
        %v1336 = vcvt.s32.f32 %v1328
        %v1337 = vcvt.s32.f32 %v1329
        %v1338 = vcvt.s32.f32 %v1330
        %v1339 = vcvt.s32.f32 %v1331
        %v1340 = vcvt.s32.f32 %v1332
        %v1341 = vcvt.s32.f32 %v1333
        %v1342 = vcvt.s32.f32 %v1334
        %v1343 = vmul.f32 %v1335, %v1279
        %v1344 = vmul.f32 %v1336, %v1280
        %v1345 = vmul.f32 %v1337, %v1281
        %v1346 = vmul.f32 %v1338, %v1282
        %v1347 = vmul.f32 %v1339, %v1283
        %v1348 = vmul.f32 %v1340, %v1284
        %v1349 = vmul.f32 %v1341, %v1285
        %v1350 = vmul.f32 %v1342, %v1286
        %v1351 = vmul.f32 %v1335, %v1295
        %v1352 = vmul.f32 %v1336, %v1296
        %v1353 = vmul.f32 %v1337, %v1297
        %v1354 = vmul.f32 %v1338, %v1298
        %v1355 = vmul.f32 %v1339, %v1299
        %v1356 = vmul.f32 %v1340, %v1300
        %v1357 = vmul.f32 %v1341, %v1301
        %v1358 = vmul.f32 %v1342, %v1302
        %v1359 = vmul.f32 %v1335, %v1311
        %v1360 = vmul.f32 %v1336, %v1312
        %v1361 = vmul.f32 %v1337, %v1313
        %v1362 = vmul.f32 %v1338, %v1314
        %v1363 = vmul.f32 %v1339, %v1315
        %v1364 = vmul.f32 %v1340, %v1316
        %v1365 = vmul.f32 %v1341, %v1317
        %v1366 = vmul.f32 %v1342, %v1318
        %vm1367 = vcmp.eq.f32.partialorder %v1215, 1.0
        %vm1368 = vcmp.eq.f32.partialorder %v1216, 1.0
        %vm1369 = vcmp.eq.f32.partialorder %v1217, 1.0
        %vm1370 = vcmp.eq.f32.partialorder %v1218, 1.0
        %vm1371 = vcmp.eq.f32.partialorder %v1219, 1.0
        %vm1372 = vcmp.eq.f32.partialorder %v1220, 1.0
        %vm1373 = vcmp.eq.f32.partialorder %v1221, 1.0
        %vm1374 = vcmp.eq.f32.partialorder %v1222, 1.0
        %v1375 = vsel %vm1367, 1, 0
        %v1376 = vsel %vm1368, 1, 0
        %v1377 = vsel %vm1369, 1, 0
        %v1378 = vsel %vm1370, 1, 0
        %v1379 = vsel %vm1371, 1, 0
        %v1380 = vsel %vm1372, 1, 0
        %v1381 = vsel %vm1373, 1, 0
        %v1382 = vsel %vm1374, 1, 0
        %v1383 = vcvt.s32.f32 %v1375
        %v1384 = vcvt.s32.f32 %v1376
        %v1385 = vcvt.s32.f32 %v1377
        %v1386 = vcvt.s32.f32 %v1378
        %v1387 = vcvt.s32.f32 %v1379
        %v1388 = vcvt.s32.f32 %v1380
        %v1389 = vcvt.s32.f32 %v1381
        %v1390 = vcvt.s32.f32 %v1382
        %v1391 = vmul.f32 %v1383, %v1279
        %v1392 = vmul.f32 %v1384, %v1280
        %v1393 = vmul.f32 %v1385, %v1281
        %v1394 = vmul.f32 %v1386, %v1282
        %v1395 = vmul.f32 %v1387, %v1283
        %v1396 = vmul.f32 %v1388, %v1284
        %v1397 = vmul.f32 %v1389, %v1285
        %v1398 = vmul.f32 %v1390, %v1286
        %v1399 = vmul.f32 %v1383, %v1295
        %v1400 = vmul.f32 %v1384, %v1296
        %v1401 = vmul.f32 %v1385, %v1297
        %v1402 = vmul.f32 %v1386, %v1298
        %v1403 = vmul.f32 %v1387, %v1299
        %v1404 = vmul.f32 %v1388, %v1300
        %v1405 = vmul.f32 %v1389, %v1301
        %v1406 = vmul.f32 %v1390, %v1302
        %v1407 = vmul.f32 %v1383, %v1311
        %v1408 = vmul.f32 %v1384, %v1312
        %v1409 = vmul.f32 %v1385, %v1313
        %v1410 = vmul.f32 %v1386, %v1314
        %v1411 = vmul.f32 %v1387, %v1315
        %v1412 = vmul.f32 %v1388, %v1316
        %v1413 = vmul.f32 %v1389, %v1317
        %v1414 = vmul.f32 %v1390, %v1318
        %vm1415 = vcmp.eq.f32.partialorder %v1215, 2.0
        %vm1416 = vcmp.eq.f32.partialorder %v1216, 2.0
        %vm1417 = vcmp.eq.f32.partialorder %v1217, 2.0
        %vm1418 = vcmp.eq.f32.partialorder %v1218, 2.0
        %vm1419 = vcmp.eq.f32.partialorder %v1219, 2.0
        %vm1420 = vcmp.eq.f32.partialorder %v1220, 2.0
        %vm1421 = vcmp.eq.f32.partialorder %v1221, 2.0
        %vm1422 = vcmp.eq.f32.partialorder %v1222, 2.0
        %v1423 = vsel %vm1415, 1, 0
        %v1424 = vsel %vm1416, 1, 0
        %v1425 = vsel %vm1417, 1, 0
        %v1426 = vsel %vm1418, 1, 0
        %v1427 = vsel %vm1419, 1, 0
        %v1428 = vsel %vm1420, 1, 0
        %v1429 = vsel %vm1421, 1, 0
        %v1430 = vsel %vm1422, 1, 0
        %v1431 = vcvt.s32.f32 %v1423
        %v1432 = vcvt.s32.f32 %v1424
        %v1433 = vcvt.s32.f32 %v1425
        %v1434 = vcvt.s32.f32 %v1426
        %v1435 = vcvt.s32.f32 %v1427
        %v1436 = vcvt.s32.f32 %v1428
        %v1437 = vcvt.s32.f32 %v1429
        %v1438 = vcvt.s32.f32 %v1430
        %v1439 = vmul.f32 %v1431, %v1279
        %v1440 = vmul.f32 %v1432, %v1280
        %v1441 = vmul.f32 %v1433, %v1281
        %v1442 = vmul.f32 %v1434, %v1282
        %v1443 = vmul.f32 %v1435, %v1283
        %v1444 = vmul.f32 %v1436, %v1284
        %v1445 = vmul.f32 %v1437, %v1285
        %v1446 = vmul.f32 %v1438, %v1286
        %v1447 = vmul.f32 %v1431, %v1295
        %v1448 = vmul.f32 %v1432, %v1296
        %v1449 = vmul.f32 %v1433, %v1297
        %v1450 = vmul.f32 %v1434, %v1298
        %v1451 = vmul.f32 %v1435, %v1299
        %v1452 = vmul.f32 %v1436, %v1300
        %v1453 = vmul.f32 %v1437, %v1301
        %v1454 = vmul.f32 %v1438, %v1302
        %v1455 = vmul.f32 %v1431, %v1311
        %v1456 = vmul.f32 %v1432, %v1312
        %v1457 = vmul.f32 %v1433, %v1313
        %v1458 = vmul.f32 %v1434, %v1314
        %v1459 = vmul.f32 %v1435, %v1315
        %v1460 = vmul.f32 %v1436, %v1316
        %v1461 = vmul.f32 %v1437, %v1317
        %v1462 = vmul.f32 %v1438, %v1318
        %vm1463 = vcmp.eq.f32.partialorder %v1215, 3.0
        %vm1464 = vcmp.eq.f32.partialorder %v1216, 3.0
        %vm1465 = vcmp.eq.f32.partialorder %v1217, 3.0
        %vm1466 = vcmp.eq.f32.partialorder %v1218, 3.0
        %vm1467 = vcmp.eq.f32.partialorder %v1219, 3.0
        %vm1468 = vcmp.eq.f32.partialorder %v1220, 3.0
        %vm1469 = vcmp.eq.f32.partialorder %v1221, 3.0
        %vm1470 = vcmp.eq.f32.partialorder %v1222, 3.0
        %v1471 = vsel %vm1463, 1, 0
        %v1472 = vsel %vm1464, 1, 0
        %v1473 = vsel %vm1465, 1, 0
        %v1474 = vsel %vm1466, 1, 0
        %v1475 = vsel %vm1467, 1, 0
        %v1476 = vsel %vm1468, 1, 0
        %v1477 = vsel %vm1469, 1, 0
        %v1478 = vsel %vm1470, 1, 0
        %v1479 = vcvt.s32.f32 %v1471
        %v1480 = vcvt.s32.f32 %v1472
        %v1481 = vcvt.s32.f32 %v1473
        %v1482 = vcvt.s32.f32 %v1474
        %v1483 = vcvt.s32.f32 %v1475
        %v1484 = vcvt.s32.f32 %v1476
        %v1485 = vcvt.s32.f32 %v1477
        %v1486 = vcvt.s32.f32 %v1478
        %v1487 = vmul.f32 %v1479, %v1279
        %v1488 = vmul.f32 %v1480, %v1280
        %v1489 = vmul.f32 %v1481, %v1281
        %v1490 = vmul.f32 %v1482, %v1282
        %v1491 = vmul.f32 %v1483, %v1283
        %v1492 = vmul.f32 %v1484, %v1284
        %v1493 = vmul.f32 %v1485, %v1285
        %v1494 = vmul.f32 %v1486, %v1286
        %v1495 = vmul.f32 %v1479, %v1295
        %v1496 = vmul.f32 %v1480, %v1296
        %v1497 = vmul.f32 %v1481, %v1297
        %v1498 = vmul.f32 %v1482, %v1298
        %v1499 = vmul.f32 %v1483, %v1299
        %v1500 = vmul.f32 %v1484, %v1300
        %v1501 = vmul.f32 %v1485, %v1301
        %v1502 = vmul.f32 %v1486, %v1302
        %v1503 = vmul.f32 %v1479, %v1311
        %v1504 = vmul.f32 %v1480, %v1312
        %v1505 = vmul.f32 %v1481, %v1313
        %v1506 = vmul.f32 %v1482, %v1314
        %v1507 = vmul.f32 %v1483, %v1315
        %v1508 = vmul.f32 %v1484, %v1316
        %v1509 = vmul.f32 %v1485, %v1317
        %v1510 = vmul.f32 %v1486, %v1318
        %v1511 = vpack.c.bf16 %v1159, %v1151
        %v1512 = vpack.c.bf16 %v1160, %v1152
        %v1513 = vpack.c.bf16 %v1161, %v1153
        %v1514 = vpack.c.bf16 %v1162, %v1154
        %v1515 = vpack.c.bf16 %v1163, %v1155
        %v1516 = vpack.c.bf16 %v1164, %v1156
        %v1517 = vpack.c.bf16 %v1165, %v1157
        %v1518 = vpack.c.bf16 %v1166, %v1158
        %v1519 = vpack.c.bf16 %v1175, %v1167
        %v1520 = vpack.c.bf16 %v1176, %v1168
        %v1521 = vpack.c.bf16 %v1177, %v1169
        %v1522 = vpack.c.bf16 %v1178, %v1170
        %v1523 = vpack.c.bf16 %v1179, %v1171
        %v1524 = vpack.c.bf16 %v1180, %v1172
        %v1525 = vpack.c.bf16 %v1181, %v1173
        %v1526 = vpack.c.bf16 %v1182, %v1174
        %v1527 = vpack.c.bf16 %v1351, %v1343
        %v1528 = vpack.c.bf16 %v1352, %v1344
        %v1529 = vpack.c.bf16 %v1353, %v1345
        %v1530 = vpack.c.bf16 %v1354, %v1346
        %v1531 = vpack.c.bf16 %v1355, %v1347
        %v1532 = vpack.c.bf16 %v1356, %v1348
        %v1533 = vpack.c.bf16 %v1357, %v1349
        %v1534 = vpack.c.bf16 %v1358, %v1350
        %v1535 = vpack.c.bf16 %v1391, %v1359
        %v1536 = vpack.c.bf16 %v1392, %v1360
        %v1537 = vpack.c.bf16 %v1393, %v1361
        %v1538 = vpack.c.bf16 %v1394, %v1362
        %v1539 = vpack.c.bf16 %v1395, %v1363
        %v1540 = vpack.c.bf16 %v1396, %v1364
        %v1541 = vpack.c.bf16 %v1397, %v1365
        %v1542 = vpack.c.bf16 %v1398, %v1366
        %v1543 = vpack.c.bf16 %v1407, %v1399
        %v1544 = vpack.c.bf16 %v1408, %v1400
        %v1545 = vpack.c.bf16 %v1409, %v1401
        %v1546 = vpack.c.bf16 %v1410, %v1402
        %v1547 = vpack.c.bf16 %v1411, %v1403
        %v1548 = vpack.c.bf16 %v1412, %v1404
        %v1549 = vpack.c.bf16 %v1413, %v1405
        %v1550 = vpack.c.bf16 %v1414, %v1406
        %v1551 = vpack.c.bf16 %v1447, %v1439
        %v1552 = vpack.c.bf16 %v1448, %v1440
        %v1553 = vpack.c.bf16 %v1449, %v1441
        %v1554 = vpack.c.bf16 %v1450, %v1442
        %v1555 = vpack.c.bf16 %v1451, %v1443
        %v1556 = vpack.c.bf16 %v1452, %v1444
        %v1557 = vpack.c.bf16 %v1453, %v1445
        %v1558 = vpack.c.bf16 %v1454, %v1446
        %v1559 = vpack.c.bf16 %v1487, %v1455
        %v1560 = vpack.c.bf16 %v1488, %v1456
        %v1561 = vpack.c.bf16 %v1489, %v1457
        %v1562 = vpack.c.bf16 %v1490, %v1458
        %v1563 = vpack.c.bf16 %v1491, %v1459
        %v1564 = vpack.c.bf16 %v1492, %v1460
        %v1565 = vpack.c.bf16 %v1493, %v1461
        %v1566 = vpack.c.bf16 %v1494, %v1462
        %v1567 = vpack.c.bf16 %v1503, %v1495
        %v1568 = vpack.c.bf16 %v1504, %v1496
        %v1569 = vpack.c.bf16 %v1505, %v1497
        %v1570 = vpack.c.bf16 %v1506, %v1498
        %v1571 = vpack.c.bf16 %v1507, %v1499
        %v1572 = vpack.c.bf16 %v1508, %v1500
        %v1573 = vpack.c.bf16 %v1509, %v1501
        %v1574 = vpack.c.bf16 %v1510, %v1502
        %v1575 = vld [vmem:[%s2] sm:$0xf]
        %v1576 = vld [vmem:[%s2 + $0x4] sm:$0xf]
        %v1579 = vunpack.c.l.b16 %v1575
        %v1580 = vunpack.c.l.b16 %v1576
        %v1581 = vpack.c.b16 %v1580, %v1579
        %1583 = vmatpush.bf16.msra.mxu0 %v1567
        %1584 = vmatpush.bf16.msra.mxu0 %v1559
        %1585 = vmatpush.bf16.msra.mxu0 %v1551
        %1586 = vmatpush.bf16.msra.mxu0 %v1543
        %1587 = vmatpush.bf16.msra.mxu0 %v1535
        %1588 = vmatpush.bf16.msra.mxu0 %v1527
        %1589 = vmatpush.bf16.msra.mxu0 %v1519
        %1590 = vmatpush.bf16.msra.mxu0 %v1511
        %1591 = vmatmul.bf16.gmra.mxu0 %v1581
        %v1592 = vpop.f32.mrf.mxu0
        %v1593 = vadd.f32 0.0, %v1592
        %v1594 = vpop.f32.mrf.mxu0
        %v1595 = vadd.f32 0.0, %v1594
        %1596 = vdwg.mxu0
        %1597 = vmatpush.bf16.msra.mxu0 %v1568
        %1598 = vmatpush.bf16.msra.mxu0 %v1560
        %1599 = vmatpush.bf16.msra.mxu0 %v1552
        %1600 = vmatpush.bf16.msra.mxu0 %v1544
        %1601 = vmatpush.bf16.msra.mxu0 %v1536
        %1602 = vmatpush.bf16.msra.mxu0 %v1528
        %1603 = vmatpush.bf16.msra.mxu0 %v1520
        %1604 = vmatpush.bf16.msra.mxu0 %v1512
        %1605 = vmatmul.bf16.gmra.mxu0 %v1581
        %v1606 = vpop.f32.mrf.mxu0
        %v1607 = vadd.f32 0.0, %v1606
        %v1608 = vpop.f32.mrf.mxu0
        %v1609 = vadd.f32 0.0, %v1608
        %1610 = vdwg.mxu0
        %1611 = vmatpush.bf16.msra.mxu0 %v1569
        %1612 = vmatpush.bf16.msra.mxu0 %v1561
        %1613 = vmatpush.bf16.msra.mxu0 %v1553
        %1614 = vmatpush.bf16.msra.mxu0 %v1545
        %1615 = vmatpush.bf16.msra.mxu0 %v1537
        %1616 = vmatpush.bf16.msra.mxu0 %v1529
        %1617 = vmatpush.bf16.msra.mxu0 %v1521
        %1618 = vmatpush.bf16.msra.mxu0 %v1513
        %1619 = vmatmul.bf16.gmra.mxu0 %v1581
        %v1620 = vpop.f32.mrf.mxu0
        %v1621 = vadd.f32 0.0, %v1620
        %v1622 = vpop.f32.mrf.mxu0
        %v1623 = vadd.f32 0.0, %v1622
        %1624 = vdwg.mxu0
        %1625 = vmatpush.bf16.msra.mxu0 %v1570
        %1626 = vmatpush.bf16.msra.mxu0 %v1562
        %1627 = vmatpush.bf16.msra.mxu0 %v1554
        %1628 = vmatpush.bf16.msra.mxu0 %v1546
        %1629 = vmatpush.bf16.msra.mxu0 %v1538
        %1630 = vmatpush.bf16.msra.mxu0 %v1530
        %1631 = vmatpush.bf16.msra.mxu0 %v1522
        %1632 = vmatpush.bf16.msra.mxu0 %v1514
        %1633 = vmatmul.bf16.gmra.mxu0 %v1581
        %v1634 = vpop.f32.mrf.mxu0
        %v1635 = vadd.f32 0.0, %v1634
        %v1636 = vpop.f32.mrf.mxu0
        %v1637 = vadd.f32 0.0, %v1636
        %1638 = vdwg.mxu0
        %1639 = vmatpush.bf16.msra.mxu0 %v1571
        %1640 = vmatpush.bf16.msra.mxu0 %v1563
        %1641 = vmatpush.bf16.msra.mxu0 %v1555
        %1642 = vmatpush.bf16.msra.mxu0 %v1547
        %1643 = vmatpush.bf16.msra.mxu0 %v1539
        %1644 = vmatpush.bf16.msra.mxu0 %v1531
        %1645 = vmatpush.bf16.msra.mxu0 %v1523
        %1646 = vmatpush.bf16.msra.mxu0 %v1515
        %1647 = vmatmul.bf16.gmra.mxu0 %v1581
        %v1648 = vpop.f32.mrf.mxu0
        %v1649 = vadd.f32 0.0, %v1648
        %v1650 = vpop.f32.mrf.mxu0
        %v1651 = vadd.f32 0.0, %v1650
        %1652 = vdwg.mxu0
        %1653 = vmatpush.bf16.msra.mxu0 %v1572
        %1654 = vmatpush.bf16.msra.mxu0 %v1564
        %1655 = vmatpush.bf16.msra.mxu0 %v1556
        %1656 = vmatpush.bf16.msra.mxu0 %v1548
        %1657 = vmatpush.bf16.msra.mxu0 %v1540
        %1658 = vmatpush.bf16.msra.mxu0 %v1532
        %1659 = vmatpush.bf16.msra.mxu0 %v1524
        %1660 = vmatpush.bf16.msra.mxu0 %v1516
        %1661 = vmatmul.bf16.gmra.mxu0 %v1581
        %v1662 = vpop.f32.mrf.mxu0
        %v1663 = vadd.f32 0.0, %v1662
        %v1664 = vpop.f32.mrf.mxu0
        %v1665 = vadd.f32 0.0, %v1664
        %1666 = vdwg.mxu0
        %1667 = vmatpush.bf16.msra.mxu0 %v1573
        %1668 = vmatpush.bf16.msra.mxu0 %v1565
        %1669 = vmatpush.bf16.msra.mxu0 %v1557
        %1670 = vmatpush.bf16.msra.mxu0 %v1549
        %1671 = vmatpush.bf16.msra.mxu0 %v1541
        %1672 = vmatpush.bf16.msra.mxu0 %v1533
        %1673 = vmatpush.bf16.msra.mxu0 %v1525
        %1674 = vmatpush.bf16.msra.mxu0 %v1517
        %1675 = vmatmul.bf16.gmra.mxu0 %v1581
        %v1676 = vpop.f32.mrf.mxu0
        %v1677 = vadd.f32 0.0, %v1676
        %v1678 = vpop.f32.mrf.mxu0
        %v1679 = vadd.f32 0.0, %v1678
        %1680 = vdwg.mxu0
        %1681 = vmatpush.bf16.msra.mxu0 %v1574
        %1682 = vmatpush.bf16.msra.mxu0 %v1566
        %1683 = vmatpush.bf16.msra.mxu0 %v1558
        %1684 = vmatpush.bf16.msra.mxu0 %v1550
        %1685 = vmatpush.bf16.msra.mxu0 %v1542
        %1686 = vmatpush.bf16.msra.mxu0 %v1534
        %1687 = vmatpush.bf16.msra.mxu0 %v1526
        %1688 = vmatpush.bf16.msra.mxu0 %v1518
        %1689 = vmatmul.bf16.gmra.mxu0 %v1581
        %v1690 = vpop.f32.mrf.mxu0
        %v1691 = vadd.f32 0.0, %v1690
        %v1692 = vpop.f32.mrf.mxu0
        %v1693 = vadd.f32 0.0, %v1692
        %1694 = vdwg.mxu0
        loop: start=0, step=1, limit=4
        $region37: #{tpu_custom_call.1} parent=35 // loop_pre_header
          _
        $region38: #{tpu_custom_call.1} parent=35 // loop_header
          %s1696 = sphi 0, %s1700
          %p1697 = scmp.ge.s32.totalorder %s1696, 4
          %v1701 = vphi %v1593, %v2991
          %v1702 = vphi %v1607, %v3019
          %v1703 = vphi %v1621, %v3047
          %v1704 = vphi %v1635, %v3075
          %v1705 = vphi %v1649, %v3103
          %v1706 = vphi %v1663, %v3131
          %v1707 = vphi %v1677, %v3159
          %v1708 = vphi %v1691, %v3187
          %v1709 = vphi %v1595, %v2993
          %v1710 = vphi %v1609, %v3021
          %v1711 = vphi %v1623, %v3049
          %v1712 = vphi %v1637, %v3077
          %v1713 = vphi %v1651, %v3105
          %v1714 = vphi %v1665, %v3133
          %v1715 = vphi %v1679, %v3161
          %v1716 = vphi %v1693, %v3189
        $region39: #{tpu_custom_call.1} parent=35 // loop_header_branch
          %1699 = sbr.rel (%p1697) target = $region43
        $region40: #{tpu_custom_call.1} parent=35 // loop_body
          %v1717 = vadd.f32 %v1701, 1.0
          %v1718 = vadd.f32 %v1702, 1.0
          %v1719 = vadd.f32 %v1703, 1.0
          %v1720 = vadd.f32 %v1704, 1.0
          %v1721 = vadd.f32 %v1705, 1.0
          %v1722 = vadd.f32 %v1706, 1.0
          %v1723 = vadd.f32 %v1707, 1.0
          %v1724 = vadd.f32 %v1708, 1.0
          %v1725 = vadd.f32 %v1709, 1.0
          %v1726 = vadd.f32 %v1710, 1.0
          %v1727 = vadd.f32 %v1711, 1.0
          %v1728 = vadd.f32 %v1712, 1.0
          %v1729 = vadd.f32 %v1713, 1.0
          %v1730 = vadd.f32 %v1714, 1.0
          %v1731 = vadd.f32 %v1715, 1.0
          %v1732 = vadd.f32 %v1716, 1.0
          %v1733 = vmul.f32 %v1717, 2.0
          %v1734 = vmul.f32 %v1718, 2.0
          %v1735 = vmul.f32 %v1719, 2.0
          %v1736 = vmul.f32 %v1720, 2.0
          %v1737 = vmul.f32 %v1721, 2.0
          %v1738 = vmul.f32 %v1722, 2.0
          %v1739 = vmul.f32 %v1723, 2.0
          %v1740 = vmul.f32 %v1724, 2.0
          %v1741 = vmul.f32 %v1725, 2.0
          %v1742 = vmul.f32 %v1726, 2.0
          %v1743 = vmul.f32 %v1727, 2.0
          %v1744 = vmul.f32 %v1728, 2.0
          %v1745 = vmul.f32 %v1729, 2.0
          %v1746 = vmul.f32 %v1730, 2.0
          %v1747 = vmul.f32 %v1731, 2.0
          %v1748 = vmul.f32 %v1732, 2.0
          %v1749 = vfloor.f32 %v1733
          %v1750 = vfloor.f32 %v1734
          %v1751 = vfloor.f32 %v1735
          %v1752 = vfloor.f32 %v1736
          %v1753 = vfloor.f32 %v1737
          %v1754 = vfloor.f32 %v1738
          %v1755 = vfloor.f32 %v1739
          %v1756 = vfloor.f32 %v1740
          %v1757 = vfloor.f32 %v1741
          %v1758 = vfloor.f32 %v1742
          %v1759 = vfloor.f32 %v1743
          %v1760 = vfloor.f32 %v1744
          %v1761 = vfloor.f32 %v1745
          %v1762 = vfloor.f32 %v1746
          %v1763 = vfloor.f32 %v1747
          %v1764 = vfloor.f32 %v1748
          %v1765 = vmax.f32 %v1749, 0.0
          %v1766 = vmax.f32 %v1750, 0.0
          %v1767 = vmax.f32 %v1751, 0.0
          %v1768 = vmax.f32 %v1752, 0.0
          %v1769 = vmax.f32 %v1753, 0.0
          %v1770 = vmax.f32 %v1754, 0.0
          %v1771 = vmax.f32 %v1755, 0.0
          %v1772 = vmax.f32 %v1756, 0.0
          %v1773 = vmax.f32 %v1757, 0.0
          %v1774 = vmax.f32 %v1758, 0.0
          %v1775 = vmax.f32 %v1759, 0.0
          %v1776 = vmax.f32 %v1760, 0.0
          %v1777 = vmax.f32 %v1761, 0.0
          %v1778 = vmax.f32 %v1762, 0.0
          %v1779 = vmax.f32 %v1763, 0.0
          %v1780 = vmax.f32 %v1764, 0.0
          %v1781 = vmin.f32 %v1765, 3.0
          %v1782 = vmin.f32 %v1766, 3.0
          %v1783 = vmin.f32 %v1767, 3.0
          %v1784 = vmin.f32 %v1768, 3.0
          %v1785 = vmin.f32 %v1769, 3.0
          %v1786 = vmin.f32 %v1770, 3.0
          %v1787 = vmin.f32 %v1771, 3.0
          %v1788 = vmin.f32 %v1772, 3.0
          %v1789 = vmin.f32 %v1773, 3.0
          %v1790 = vmin.f32 %v1774, 3.0
          %v1791 = vmin.f32 %v1775, 3.0
          %v1792 = vmin.f32 %v1776, 3.0
          %v1793 = vmin.f32 %v1777, 3.0
          %v1794 = vmin.f32 %v1778, 3.0
          %v1795 = vmin.f32 %v1779, 3.0
          %v1796 = vmin.f32 %v1780, 3.0
          %v1797 = vsub.f32 %v1733, %v1781
          %v1798 = vsub.f32 %v1734, %v1782
          %v1799 = vsub.f32 %v1735, %v1783
          %v1800 = vsub.f32 %v1736, %v1784
          %v1801 = vsub.f32 %v1737, %v1785
          %v1802 = vsub.f32 %v1738, %v1786
          %v1803 = vsub.f32 %v1739, %v1787
          %v1804 = vsub.f32 %v1740, %v1788
          %v1805 = vsub.f32 %v1741, %v1789
          %v1806 = vsub.f32 %v1742, %v1790
          %v1807 = vsub.f32 %v1743, %v1791
          %v1808 = vsub.f32 %v1744, %v1792
          %v1809 = vsub.f32 %v1745, %v1793
          %v1810 = vsub.f32 %v1746, %v1794
          %v1811 = vsub.f32 %v1747, %v1795
          %v1812 = vsub.f32 %v1748, %v1796
          %v1813 = vmul.f32 %v1797, 2.0
          %v1814 = vmul.f32 %v1798, 2.0
          %v1815 = vmul.f32 %v1799, 2.0
          %v1816 = vmul.f32 %v1800, 2.0
          %v1817 = vmul.f32 %v1801, 2.0
          %v1818 = vmul.f32 %v1802, 2.0
          %v1819 = vmul.f32 %v1803, 2.0
          %v1820 = vmul.f32 %v1804, 2.0
          %v1821 = vmul.f32 %v1805, 2.0
          %v1822 = vmul.f32 %v1806, 2.0
          %v1823 = vmul.f32 %v1807, 2.0
          %v1824 = vmul.f32 %v1808, 2.0
          %v1825 = vmul.f32 %v1809, 2.0
          %v1826 = vmul.f32 %v1810, 2.0
          %v1827 = vmul.f32 %v1811, 2.0
          %v1828 = vmul.f32 %v1812, 2.0
          %v1829 = vsub.f32 %v1813, 1.0
          %v1830 = vsub.f32 %v1814, 1.0
          %v1831 = vsub.f32 %v1815, 1.0
          %v1832 = vsub.f32 %v1816, 1.0
          %v1833 = vsub.f32 %v1817, 1.0
          %v1834 = vsub.f32 %v1818, 1.0
          %v1835 = vsub.f32 %v1819, 1.0
          %v1836 = vsub.f32 %v1820, 1.0
          %v1837 = vsub.f32 %v1821, 1.0
          %v1838 = vsub.f32 %v1822, 1.0
          %v1839 = vsub.f32 %v1823, 1.0
          %v1840 = vsub.f32 %v1824, 1.0
          %v1841 = vsub.f32 %v1825, 1.0
          %v1842 = vsub.f32 %v1826, 1.0
          %v1843 = vsub.f32 %v1827, 1.0
          %v1844 = vsub.f32 %v1828, 1.0
          %v1845 = vsub.f32 %v1829, -1.0
          %v1846 = vsub.f32 %v1830, -1.0
          %v1847 = vsub.f32 %v1831, -1.0
          %v1848 = vsub.f32 %v1832, -1.0
          %v1849 = vsub.f32 %v1833, -1.0
          %v1850 = vsub.f32 %v1834, -1.0
          %v1851 = vsub.f32 %v1835, -1.0
          %v1852 = vsub.f32 %v1836, -1.0
          %v1853 = vsub.f32 %v1837, -1.0
          %v1854 = vsub.f32 %v1838, -1.0
          %v1855 = vsub.f32 %v1839, -1.0
          %v1856 = vsub.f32 %v1840, -1.0
          %v1857 = vsub.f32 %v1841, -1.0
          %v1858 = vsub.f32 %v1842, -1.0
          %v1859 = vsub.f32 %v1843, -1.0
          %v1860 = vsub.f32 %v1844, -1.0
          %v1861 = vsub.f32 %v1829, -6.123234e-17
          %v1862 = vsub.f32 %v1830, -6.123234e-17
          %v1863 = vsub.f32 %v1831, -6.123234e-17
          %v1864 = vsub.f32 %v1832, -6.123234e-17
          %v1865 = vsub.f32 %v1833, -6.123234e-17
          %v1866 = vsub.f32 %v1834, -6.123234e-17
          %v1867 = vsub.f32 %v1835, -6.123234e-17
          %v1868 = vsub.f32 %v1836, -6.123234e-17
          %v1869 = vsub.f32 %v1837, -6.123234e-17
          %v1870 = vsub.f32 %v1838, -6.123234e-17
          %v1871 = vsub.f32 %v1839, -6.123234e-17
          %v1872 = vsub.f32 %v1840, -6.123234e-17
          %v1873 = vsub.f32 %v1841, -6.123234e-17
          %v1874 = vsub.f32 %v1842, -6.123234e-17
          %v1875 = vsub.f32 %v1843, -6.123234e-17
          %v1876 = vsub.f32 %v1844, -6.123234e-17
          %v1877 = vsub.f32 %v1829, 1.0
          %v1878 = vsub.f32 %v1830, 1.0
          %v1879 = vsub.f32 %v1831, 1.0
          %v1880 = vsub.f32 %v1832, 1.0
          %v1881 = vsub.f32 %v1833, 1.0
          %v1882 = vsub.f32 %v1834, 1.0
          %v1883 = vsub.f32 %v1835, 1.0
          %v1884 = vsub.f32 %v1836, 1.0
          %v1885 = vsub.f32 %v1837, 1.0
          %v1886 = vsub.f32 %v1838, 1.0
          %v1887 = vsub.f32 %v1839, 1.0
          %v1888 = vsub.f32 %v1840, 1.0
          %v1889 = vsub.f32 %v1841, 1.0
          %v1890 = vsub.f32 %v1842, 1.0
          %v1891 = vsub.f32 %v1843, 1.0
          %v1892 = vsub.f32 %v1844, 1.0
          %v1893 = vmul.f32 %v1861, %v1877
          %v1894 = vmul.f32 %v1862, %v1878
          %v1895 = vmul.f32 %v1863, %v1879
          %v1896 = vmul.f32 %v1864, %v1880
          %v1897 = vmul.f32 %v1865, %v1881
          %v1898 = vmul.f32 %v1866, %v1882
          %v1899 = vmul.f32 %v1867, %v1883
          %v1900 = vmul.f32 %v1868, %v1884
          %v1901 = vmul.f32 %v1869, %v1885
          %v1902 = vmul.f32 %v1870, %v1886
          %v1903 = vmul.f32 %v1871, %v1887
          %v1904 = vmul.f32 %v1872, %v1888
          %v1905 = vmul.f32 %v1873, %v1889
          %v1906 = vmul.f32 %v1874, %v1890
          %v1907 = vmul.f32 %v1875, %v1891
          %v1908 = vmul.f32 %v1876, %v1892
          %v1909 = vmul.f32 %v1893, 0.5
          %v1910 = vmul.f32 %v1894, 0.5
          %v1911 = vmul.f32 %v1895, 0.5
          %v1912 = vmul.f32 %v1896, 0.5
          %v1913 = vmul.f32 %v1897, 0.5
          %v1914 = vmul.f32 %v1898, 0.5
          %v1915 = vmul.f32 %v1899, 0.5
          %v1916 = vmul.f32 %v1900, 0.5
          %v1917 = vmul.f32 %v1901, 0.5
          %v1918 = vmul.f32 %v1902, 0.5
          %v1919 = vmul.f32 %v1903, 0.5
          %v1920 = vmul.f32 %v1904, 0.5
          %v1921 = vmul.f32 %v1905, 0.5
          %v1922 = vmul.f32 %v1906, 0.5
          %v1923 = vmul.f32 %v1907, 0.5
          %v1924 = vmul.f32 %v1908, 0.5
          %v1925 = vmul.f32 %v1845, %v1877
          %v1926 = vmul.f32 %v1846, %v1878
          %v1927 = vmul.f32 %v1847, %v1879
          %v1928 = vmul.f32 %v1848, %v1880
          %v1929 = vmul.f32 %v1849, %v1881
          %v1930 = vmul.f32 %v1850, %v1882
          %v1931 = vmul.f32 %v1851, %v1883
          %v1932 = vmul.f32 %v1852, %v1884
          %v1933 = vmul.f32 %v1853, %v1885
          %v1934 = vmul.f32 %v1854, %v1886
          %v1935 = vmul.f32 %v1855, %v1887
          %v1936 = vmul.f32 %v1856, %v1888
          %v1937 = vmul.f32 %v1857, %v1889
          %v1938 = vmul.f32 %v1858, %v1890
          %v1939 = vmul.f32 %v1859, %v1891
          %v1940 = vmul.f32 %v1860, %v1892
          %v1941 = vmul.f32 %v1925, -1.0
          %v1942 = vmul.f32 %v1926, -1.0
          %v1943 = vmul.f32 %v1927, -1.0
          %v1944 = vmul.f32 %v1928, -1.0
          %v1945 = vmul.f32 %v1929, -1.0
          %v1946 = vmul.f32 %v1930, -1.0
          %v1947 = vmul.f32 %v1931, -1.0
          %v1948 = vmul.f32 %v1932, -1.0
          %v1949 = vmul.f32 %v1933, -1.0
          %v1950 = vmul.f32 %v1934, -1.0
          %v1951 = vmul.f32 %v1935, -1.0
          %v1952 = vmul.f32 %v1936, -1.0
          %v1953 = vmul.f32 %v1937, -1.0
          %v1954 = vmul.f32 %v1938, -1.0
          %v1955 = vmul.f32 %v1939, -1.0
          %v1956 = vmul.f32 %v1940, -1.0
          %v1957 = vmul.f32 %v1845, %v1861
          %v1958 = vmul.f32 %v1846, %v1862
          %v1959 = vmul.f32 %v1847, %v1863
          %v1960 = vmul.f32 %v1848, %v1864
          %v1961 = vmul.f32 %v1849, %v1865
          %v1962 = vmul.f32 %v1850, %v1866
          %v1963 = vmul.f32 %v1851, %v1867
          %v1964 = vmul.f32 %v1852, %v1868
          %v1965 = vmul.f32 %v1853, %v1869
          %v1966 = vmul.f32 %v1854, %v1870
          %v1967 = vmul.f32 %v1855, %v1871
          %v1968 = vmul.f32 %v1856, %v1872
          %v1969 = vmul.f32 %v1857, %v1873
          %v1970 = vmul.f32 %v1858, %v1874
          %v1971 = vmul.f32 %v1859, %v1875
          %v1972 = vmul.f32 %v1860, %v1876
          %v1973 = vmul.f32 %v1957, 0.5
          %v1974 = vmul.f32 %v1958, 0.5
          %v1975 = vmul.f32 %v1959, 0.5
          %v1976 = vmul.f32 %v1960, 0.5
          %v1977 = vmul.f32 %v1961, 0.5
          %v1978 = vmul.f32 %v1962, 0.5
          %v1979 = vmul.f32 %v1963, 0.5
          %v1980 = vmul.f32 %v1964, 0.5
          %v1981 = vmul.f32 %v1965, 0.5
          %v1982 = vmul.f32 %v1966, 0.5
          %v1983 = vmul.f32 %v1967, 0.5
          %v1984 = vmul.f32 %v1968, 0.5
          %v1985 = vmul.f32 %v1969, 0.5
          %v1986 = vmul.f32 %v1970, 0.5
          %v1987 = vmul.f32 %v1971, 0.5
          %v1988 = vmul.f32 %v1972, 0.5
          %vm1989 = vcmp.eq.f32.partialorder %v1781, 0.0
          %vm1990 = vcmp.eq.f32.partialorder %v1782, 0.0
          %vm1991 = vcmp.eq.f32.partialorder %v1783, 0.0
          %vm1992 = vcmp.eq.f32.partialorder %v1784, 0.0
          %vm1993 = vcmp.eq.f32.partialorder %v1785, 0.0
          %vm1994 = vcmp.eq.f32.partialorder %v1786, 0.0
          %vm1995 = vcmp.eq.f32.partialorder %v1787, 0.0
          %vm1996 = vcmp.eq.f32.partialorder %v1788, 0.0
          %vm1997 = vcmp.eq.f32.partialorder %v1789, 0.0
          %vm1998 = vcmp.eq.f32.partialorder %v1790, 0.0
          %vm1999 = vcmp.eq.f32.partialorder %v1791, 0.0
          %vm2000 = vcmp.eq.f32.partialorder %v1792, 0.0
          %vm2001 = vcmp.eq.f32.partialorder %v1793, 0.0
          %vm2002 = vcmp.eq.f32.partialorder %v1794, 0.0
          %vm2003 = vcmp.eq.f32.partialorder %v1795, 0.0
          %vm2004 = vcmp.eq.f32.partialorder %v1796, 0.0
          %v2005 = vsel %vm1989, 1, 0
          %v2006 = vsel %vm1990, 1, 0
          %v2007 = vsel %vm1991, 1, 0
          %v2008 = vsel %vm1992, 1, 0
          %v2009 = vsel %vm1993, 1, 0
          %v2010 = vsel %vm1994, 1, 0
          %v2011 = vsel %vm1995, 1, 0
          %v2012 = vsel %vm1996, 1, 0
          %v2013 = vsel %vm1997, 1, 0
          %v2014 = vsel %vm1998, 1, 0
          %v2015 = vsel %vm1999, 1, 0
          %v2016 = vsel %vm2000, 1, 0
          %v2017 = vsel %vm2001, 1, 0
          %v2018 = vsel %vm2002, 1, 0
          %v2019 = vsel %vm2003, 1, 0
          %v2020 = vsel %vm2004, 1, 0
          %v2021 = vcvt.s32.f32 %v2005
          %v2022 = vcvt.s32.f32 %v2006
          %v2023 = vcvt.s32.f32 %v2007
          %v2024 = vcvt.s32.f32 %v2008
          %v2025 = vcvt.s32.f32 %v2009
          %v2026 = vcvt.s32.f32 %v2010
          %v2027 = vcvt.s32.f32 %v2011
          %v2028 = vcvt.s32.f32 %v2012
          %v2029 = vcvt.s32.f32 %v2013
          %v2030 = vcvt.s32.f32 %v2014
          %v2031 = vcvt.s32.f32 %v2015
          %v2032 = vcvt.s32.f32 %v2016
          %v2033 = vcvt.s32.f32 %v2017
          %v2034 = vcvt.s32.f32 %v2018
          %v2035 = vcvt.s32.f32 %v2019
          %v2036 = vcvt.s32.f32 %v2020
          %v2037 = vmul.f32 %v2021, %v1909
          %v2038 = vmul.f32 %v2022, %v1910
          %v2039 = vmul.f32 %v2023, %v1911
          %v2040 = vmul.f32 %v2024, %v1912
          %v2041 = vmul.f32 %v2025, %v1913
          %v2042 = vmul.f32 %v2026, %v1914
          %v2043 = vmul.f32 %v2027, %v1915
          %v2044 = vmul.f32 %v2028, %v1916
          %v2045 = vmul.f32 %v2029, %v1917
          %v2046 = vmul.f32 %v2030, %v1918
          %v2047 = vmul.f32 %v2031, %v1919
          %v2048 = vmul.f32 %v2032, %v1920
          %v2049 = vmul.f32 %v2033, %v1921
          %v2050 = vmul.f32 %v2034, %v1922
          %v2051 = vmul.f32 %v2035, %v1923
          %v2052 = vmul.f32 %v2036, %v1924
          %v2053 = vmul.f32 %v2021, %v1941
          %v2054 = vmul.f32 %v2022, %v1942
          %v2055 = vmul.f32 %v2023, %v1943
          %v2056 = vmul.f32 %v2024, %v1944
          %v2057 = vmul.f32 %v2025, %v1945
          %v2058 = vmul.f32 %v2026, %v1946
          %v2059 = vmul.f32 %v2027, %v1947
          %v2060 = vmul.f32 %v2028, %v1948
          %v2061 = vmul.f32 %v2029, %v1949
          %v2062 = vmul.f32 %v2030, %v1950
          %v2063 = vmul.f32 %v2031, %v1951
          %v2064 = vmul.f32 %v2032, %v1952
          %v2065 = vmul.f32 %v2033, %v1953
          %v2066 = vmul.f32 %v2034, %v1954
          %v2067 = vmul.f32 %v2035, %v1955
          %v2068 = vmul.f32 %v2036, %v1956
          %v2069 = vmul.f32 %v2021, %v1973
          %v2070 = vmul.f32 %v2022, %v1974
          %v2071 = vmul.f32 %v2023, %v1975
          %v2072 = vmul.f32 %v2024, %v1976
          %v2073 = vmul.f32 %v2025, %v1977
          %v2074 = vmul.f32 %v2026, %v1978
          %v2075 = vmul.f32 %v2027, %v1979
          %v2076 = vmul.f32 %v2028, %v1980
          %v2077 = vmul.f32 %v2029, %v1981
          %v2078 = vmul.f32 %v2030, %v1982
          %v2079 = vmul.f32 %v2031, %v1983
          %v2080 = vmul.f32 %v2032, %v1984
          %v2081 = vmul.f32 %v2033, %v1985
          %v2082 = vmul.f32 %v2034, %v1986
          %v2083 = vmul.f32 %v2035, %v1987
          %v2084 = vmul.f32 %v2036, %v1988
          %vm2085 = vcmp.eq.f32.partialorder %v1781, 1.0
          %vm2086 = vcmp.eq.f32.partialorder %v1782, 1.0
          %vm2087 = vcmp.eq.f32.partialorder %v1783, 1.0
          %vm2088 = vcmp.eq.f32.partialorder %v1784, 1.0
          %vm2089 = vcmp.eq.f32.partialorder %v1785, 1.0
          %vm2090 = vcmp.eq.f32.partialorder %v1786, 1.0
          %vm2091 = vcmp.eq.f32.partialorder %v1787, 1.0
          %vm2092 = vcmp.eq.f32.partialorder %v1788, 1.0
          %vm2093 = vcmp.eq.f32.partialorder %v1789, 1.0
          %vm2094 = vcmp.eq.f32.partialorder %v1790, 1.0
          %vm2095 = vcmp.eq.f32.partialorder %v1791, 1.0
          %vm2096 = vcmp.eq.f32.partialorder %v1792, 1.0
          %vm2097 = vcmp.eq.f32.partialorder %v1793, 1.0
          %vm2098 = vcmp.eq.f32.partialorder %v1794, 1.0
          %vm2099 = vcmp.eq.f32.partialorder %v1795, 1.0
          %vm2100 = vcmp.eq.f32.partialorder %v1796, 1.0
          %v2101 = vsel %vm2085, 1, 0
          %v2102 = vsel %vm2086, 1, 0
          %v2103 = vsel %vm2087, 1, 0
          %v2104 = vsel %vm2088, 1, 0
          %v2105 = vsel %vm2089, 1, 0
          %v2106 = vsel %vm2090, 1, 0
          %v2107 = vsel %vm2091, 1, 0
          %v2108 = vsel %vm2092, 1, 0
          %v2109 = vsel %vm2093, 1, 0
          %v2110 = vsel %vm2094, 1, 0
          %v2111 = vsel %vm2095, 1, 0
          %v2112 = vsel %vm2096, 1, 0
          %v2113 = vsel %vm2097, 1, 0
          %v2114 = vsel %vm2098, 1, 0
          %v2115 = vsel %vm2099, 1, 0
          %v2116 = vsel %vm2100, 1, 0
          %v2117 = vcvt.s32.f32 %v2101
          %v2118 = vcvt.s32.f32 %v2102
          %v2119 = vcvt.s32.f32 %v2103
          %v2120 = vcvt.s32.f32 %v2104
          %v2121 = vcvt.s32.f32 %v2105
          %v2122 = vcvt.s32.f32 %v2106
          %v2123 = vcvt.s32.f32 %v2107
          %v2124 = vcvt.s32.f32 %v2108
          %v2125 = vcvt.s32.f32 %v2109
          %v2126 = vcvt.s32.f32 %v2110
          %v2127 = vcvt.s32.f32 %v2111
          %v2128 = vcvt.s32.f32 %v2112
          %v2129 = vcvt.s32.f32 %v2113
          %v2130 = vcvt.s32.f32 %v2114
          %v2131 = vcvt.s32.f32 %v2115
          %v2132 = vcvt.s32.f32 %v2116
          %v2133 = vmul.f32 %v2117, %v1909
          %v2134 = vmul.f32 %v2118, %v1910
          %v2135 = vmul.f32 %v2119, %v1911
          %v2136 = vmul.f32 %v2120, %v1912
          %v2137 = vmul.f32 %v2121, %v1913
          %v2138 = vmul.f32 %v2122, %v1914
          %v2139 = vmul.f32 %v2123, %v1915
          %v2140 = vmul.f32 %v2124, %v1916
          %v2141 = vmul.f32 %v2125, %v1917
          %v2142 = vmul.f32 %v2126, %v1918
          %v2143 = vmul.f32 %v2127, %v1919
          %v2144 = vmul.f32 %v2128, %v1920
          %v2145 = vmul.f32 %v2129, %v1921
          %v2146 = vmul.f32 %v2130, %v1922
          %v2147 = vmul.f32 %v2131, %v1923
          %v2148 = vmul.f32 %v2132, %v1924
          %v2149 = vmul.f32 %v2117, %v1941
          %v2150 = vmul.f32 %v2118, %v1942
          %v2151 = vmul.f32 %v2119, %v1943
          %v2152 = vmul.f32 %v2120, %v1944
          %v2153 = vmul.f32 %v2121, %v1945
          %v2154 = vmul.f32 %v2122, %v1946
          %v2155 = vmul.f32 %v2123, %v1947
          %v2156 = vmul.f32 %v2124, %v1948
          %v2157 = vmul.f32 %v2125, %v1949
          %v2158 = vmul.f32 %v2126, %v1950
          %v2159 = vmul.f32 %v2127, %v1951
          %v2160 = vmul.f32 %v2128, %v1952
          %v2161 = vmul.f32 %v2129, %v1953
          %v2162 = vmul.f32 %v2130, %v1954
          %v2163 = vmul.f32 %v2131, %v1955
          %v2164 = vmul.f32 %v2132, %v1956
          %v2165 = vmul.f32 %v2117, %v1973
          %v2166 = vmul.f32 %v2118, %v1974
          %v2167 = vmul.f32 %v2119, %v1975
          %v2168 = vmul.f32 %v2120, %v1976
          %v2169 = vmul.f32 %v2121, %v1977
          %v2170 = vmul.f32 %v2122, %v1978
          %v2171 = vmul.f32 %v2123, %v1979
          %v2172 = vmul.f32 %v2124, %v1980
          %v2173 = vmul.f32 %v2125, %v1981
          %v2174 = vmul.f32 %v2126, %v1982
          %v2175 = vmul.f32 %v2127, %v1983
          %v2176 = vmul.f32 %v2128, %v1984
          %v2177 = vmul.f32 %v2129, %v1985
          %v2178 = vmul.f32 %v2130, %v1986
          %v2179 = vmul.f32 %v2131, %v1987
          %v2180 = vmul.f32 %v2132, %v1988
          %vm2181 = vcmp.eq.f32.partialorder %v1781, 2.0
          %vm2182 = vcmp.eq.f32.partialorder %v1782, 2.0
          %vm2183 = vcmp.eq.f32.partialorder %v1783, 2.0
          %vm2184 = vcmp.eq.f32.partialorder %v1784, 2.0
          %vm2185 = vcmp.eq.f32.partialorder %v1785, 2.0
          %vm2186 = vcmp.eq.f32.partialorder %v1786, 2.0
          %vm2187 = vcmp.eq.f32.partialorder %v1787, 2.0
          %vm2188 = vcmp.eq.f32.partialorder %v1788, 2.0
          %vm2189 = vcmp.eq.f32.partialorder %v1789, 2.0
          %vm2190 = vcmp.eq.f32.partialorder %v1790, 2.0
          %vm2191 = vcmp.eq.f32.partialorder %v1791, 2.0
          %vm2192 = vcmp.eq.f32.partialorder %v1792, 2.0
          %vm2193 = vcmp.eq.f32.partialorder %v1793, 2.0
          %vm2194 = vcmp.eq.f32.partialorder %v1794, 2.0
          %vm2195 = vcmp.eq.f32.partialorder %v1795, 2.0
          %vm2196 = vcmp.eq.f32.partialorder %v1796, 2.0
          %v2197 = vsel %vm2181, 1, 0
          %v2198 = vsel %vm2182, 1, 0
          %v2199 = vsel %vm2183, 1, 0
          %v2200 = vsel %vm2184, 1, 0
          %v2201 = vsel %vm2185, 1, 0
          %v2202 = vsel %vm2186, 1, 0
          %v2203 = vsel %vm2187, 1, 0
          %v2204 = vsel %vm2188, 1, 0
          %v2205 = vsel %vm2189, 1, 0
          %v2206 = vsel %vm2190, 1, 0
          %v2207 = vsel %vm2191, 1, 0
          %v2208 = vsel %vm2192, 1, 0
          %v2209 = vsel %vm2193, 1, 0
          %v2210 = vsel %vm2194, 1, 0
          %v2211 = vsel %vm2195, 1, 0
          %v2212 = vsel %vm2196, 1, 0
          %v2213 = vcvt.s32.f32 %v2197
          %v2214 = vcvt.s32.f32 %v2198
          %v2215 = vcvt.s32.f32 %v2199
          %v2216 = vcvt.s32.f32 %v2200
          %v2217 = vcvt.s32.f32 %v2201
          %v2218 = vcvt.s32.f32 %v2202
          %v2219 = vcvt.s32.f32 %v2203
          %v2220 = vcvt.s32.f32 %v2204
          %v2221 = vcvt.s32.f32 %v2205
          %v2222 = vcvt.s32.f32 %v2206
          %v2223 = vcvt.s32.f32 %v2207
          %v2224 = vcvt.s32.f32 %v2208
          %v2225 = vcvt.s32.f32 %v2209
          %v2226 = vcvt.s32.f32 %v2210
          %v2227 = vcvt.s32.f32 %v2211
          %v2228 = vcvt.s32.f32 %v2212
          %v2229 = vmul.f32 %v2213, %v1909
          %v2230 = vmul.f32 %v2214, %v1910
          %v2231 = vmul.f32 %v2215, %v1911
          %v2232 = vmul.f32 %v2216, %v1912
          %v2233 = vmul.f32 %v2217, %v1913
          %v2234 = vmul.f32 %v2218, %v1914
          %v2235 = vmul.f32 %v2219, %v1915
          %v2236 = vmul.f32 %v2220, %v1916
          %v2237 = vmul.f32 %v2221, %v1917
          %v2238 = vmul.f32 %v2222, %v1918
          %v2239 = vmul.f32 %v2223, %v1919
          %v2240 = vmul.f32 %v2224, %v1920
          %v2241 = vmul.f32 %v2225, %v1921
          %v2242 = vmul.f32 %v2226, %v1922
          %v2243 = vmul.f32 %v2227, %v1923
          %v2244 = vmul.f32 %v2228, %v1924
          %v2245 = vmul.f32 %v2213, %v1941
          %v2246 = vmul.f32 %v2214, %v1942
          %v2247 = vmul.f32 %v2215, %v1943
          %v2248 = vmul.f32 %v2216, %v1944
          %v2249 = vmul.f32 %v2217, %v1945
          %v2250 = vmul.f32 %v2218, %v1946
          %v2251 = vmul.f32 %v2219, %v1947
          %v2252 = vmul.f32 %v2220, %v1948
          %v2253 = vmul.f32 %v2221, %v1949
          %v2254 = vmul.f32 %v2222, %v1950
          %v2255 = vmul.f32 %v2223, %v1951
          %v2256 = vmul.f32 %v2224, %v1952
          %v2257 = vmul.f32 %v2225, %v1953
          %v2258 = vmul.f32 %v2226, %v1954
          %v2259 = vmul.f32 %v2227, %v1955
          %v2260 = vmul.f32 %v2228, %v1956
          %v2261 = vmul.f32 %v2213, %v1973
          %v2262 = vmul.f32 %v2214, %v1974
          %v2263 = vmul.f32 %v2215, %v1975
          %v2264 = vmul.f32 %v2216, %v1976
          %v2265 = vmul.f32 %v2217, %v1977
          %v2266 = vmul.f32 %v2218, %v1978
          %v2267 = vmul.f32 %v2219, %v1979
          %v2268 = vmul.f32 %v2220, %v1980
          %v2269 = vmul.f32 %v2221, %v1981
          %v2270 = vmul.f32 %v2222, %v1982
          %v2271 = vmul.f32 %v2223, %v1983
          %v2272 = vmul.f32 %v2224, %v1984
          %v2273 = vmul.f32 %v2225, %v1985
          %v2274 = vmul.f32 %v2226, %v1986
          %v2275 = vmul.f32 %v2227, %v1987
          %v2276 = vmul.f32 %v2228, %v1988
          %vm2277 = vcmp.eq.f32.partialorder %v1781, 3.0
          %vm2278 = vcmp.eq.f32.partialorder %v1782, 3.0
          %vm2279 = vcmp.eq.f32.partialorder %v1783, 3.0
          %vm2280 = vcmp.eq.f32.partialorder %v1784, 3.0
          %vm2281 = vcmp.eq.f32.partialorder %v1785, 3.0
          %vm2282 = vcmp.eq.f32.partialorder %v1786, 3.0
          %vm2283 = vcmp.eq.f32.partialorder %v1787, 3.0
          %vm2284 = vcmp.eq.f32.partialorder %v1788, 3.0
          %vm2285 = vcmp.eq.f32.partialorder %v1789, 3.0
          %vm2286 = vcmp.eq.f32.partialorder %v1790, 3.0
          %vm2287 = vcmp.eq.f32.partialorder %v1791, 3.0
          %vm2288 = vcmp.eq.f32.partialorder %v1792, 3.0
          %vm2289 = vcmp.eq.f32.partialorder %v1793, 3.0
          %vm2290 = vcmp.eq.f32.partialorder %v1794, 3.0
          %vm2291 = vcmp.eq.f32.partialorder %v1795, 3.0
          %vm2292 = vcmp.eq.f32.partialorder %v1796, 3.0
          %v2293 = vsel %vm2277, 1, 0
          %v2294 = vsel %vm2278, 1, 0
          %v2295 = vsel %vm2279, 1, 0
          %v2296 = vsel %vm2280, 1, 0
          %v2297 = vsel %vm2281, 1, 0
          %v2298 = vsel %vm2282, 1, 0
          %v2299 = vsel %vm2283, 1, 0
          %v2300 = vsel %vm2284, 1, 0
          %v2301 = vsel %vm2285, 1, 0
          %v2302 = vsel %vm2286, 1, 0
          %v2303 = vsel %vm2287, 1, 0
          %v2304 = vsel %vm2288, 1, 0
          %v2305 = vsel %vm2289, 1, 0
          %v2306 = vsel %vm2290, 1, 0
          %v2307 = vsel %vm2291, 1, 0
          %v2308 = vsel %vm2292, 1, 0
          %v2309 = vcvt.s32.f32 %v2293
          %v2310 = vcvt.s32.f32 %v2294
          %v2311 = vcvt.s32.f32 %v2295
          %v2312 = vcvt.s32.f32 %v2296
          %v2313 = vcvt.s32.f32 %v2297
          %v2314 = vcvt.s32.f32 %v2298
          %v2315 = vcvt.s32.f32 %v2299
          %v2316 = vcvt.s32.f32 %v2300
          %v2317 = vcvt.s32.f32 %v2301
          %v2318 = vcvt.s32.f32 %v2302
          %v2319 = vcvt.s32.f32 %v2303
          %v2320 = vcvt.s32.f32 %v2304
          %v2321 = vcvt.s32.f32 %v2305
          %v2322 = vcvt.s32.f32 %v2306
          %v2323 = vcvt.s32.f32 %v2307
          %v2324 = vcvt.s32.f32 %v2308
          %v2325 = vmul.f32 %v2309, %v1909
          %v2326 = vmul.f32 %v2310, %v1910
          %v2327 = vmul.f32 %v2311, %v1911
          %v2328 = vmul.f32 %v2312, %v1912
          %v2329 = vmul.f32 %v2313, %v1913
          %v2330 = vmul.f32 %v2314, %v1914
          %v2331 = vmul.f32 %v2315, %v1915
          %v2332 = vmul.f32 %v2316, %v1916
          %v2333 = vmul.f32 %v2317, %v1917
          %v2334 = vmul.f32 %v2318, %v1918
          %v2335 = vmul.f32 %v2319, %v1919
          %v2336 = vmul.f32 %v2320, %v1920
          %v2337 = vmul.f32 %v2321, %v1921
          %v2338 = vmul.f32 %v2322, %v1922
          %v2339 = vmul.f32 %v2323, %v1923
          %v2340 = vmul.f32 %v2324, %v1924
          %v2341 = vmul.f32 %v2309, %v1941
          %v2342 = vmul.f32 %v2310, %v1942
          %v2343 = vmul.f32 %v2311, %v1943
          %v2344 = vmul.f32 %v2312, %v1944
          %v2345 = vmul.f32 %v2313, %v1945
          %v2346 = vmul.f32 %v2314, %v1946
          %v2347 = vmul.f32 %v2315, %v1947
          %v2348 = vmul.f32 %v2316, %v1948
          %v2349 = vmul.f32 %v2317, %v1949
          %v2350 = vmul.f32 %v2318, %v1950
          %v2351 = vmul.f32 %v2319, %v1951
          %v2352 = vmul.f32 %v2320, %v1952
          %v2353 = vmul.f32 %v2321, %v1953
          %v2354 = vmul.f32 %v2322, %v1954
          %v2355 = vmul.f32 %v2323, %v1955
          %v2356 = vmul.f32 %v2324, %v1956
          %v2357 = vmul.f32 %v2309, %v1973
          %v2358 = vmul.f32 %v2310, %v1974
          %v2359 = vmul.f32 %v2311, %v1975
          %v2360 = vmul.f32 %v2312, %v1976
          %v2361 = vmul.f32 %v2313, %v1977
          %v2362 = vmul.f32 %v2314, %v1978
          %v2363 = vmul.f32 %v2315, %v1979
          %v2364 = vmul.f32 %v2316, %v1980
          %v2365 = vmul.f32 %v2317, %v1981
          %v2366 = vmul.f32 %v2318, %v1982
          %v2367 = vmul.f32 %v2319, %v1983
          %v2368 = vmul.f32 %v2320, %v1984
          %v2369 = vmul.f32 %v2321, %v1985
          %v2370 = vmul.f32 %v2322, %v1986
          %v2371 = vmul.f32 %v2323, %v1987
          %v2372 = vmul.f32 %v2324, %v1988
          %v2373 = vpack.c.bf16 %v2038, %v2037
          %v2374 = vpack.c.bf16 %v2040, %v2039
          %v2375 = vpack.c.bf16 %v2042, %v2041
          %v2376 = vpack.c.bf16 %v2044, %v2043
          %v2377 = vpack.c.bf16 %v2046, %v2045
          %v2378 = vpack.c.bf16 %v2048, %v2047
          %v2379 = vpack.c.bf16 %v2050, %v2049
          %v2380 = vpack.c.bf16 %v2052, %v2051
          %v2381 = vpack.c.bf16 %v2054, %v2053
          %v2382 = vpack.c.bf16 %v2056, %v2055
          %v2383 = vpack.c.bf16 %v2058, %v2057
          %v2384 = vpack.c.bf16 %v2060, %v2059
          %v2385 = vpack.c.bf16 %v2062, %v2061
          %v2386 = vpack.c.bf16 %v2064, %v2063
          %v2387 = vpack.c.bf16 %v2066, %v2065
          %v2388 = vpack.c.bf16 %v2068, %v2067
          %v2389 = vpack.c.bf16 %v2070, %v2069
          %v2390 = vpack.c.bf16 %v2072, %v2071
          %v2391 = vpack.c.bf16 %v2074, %v2073
          %v2392 = vpack.c.bf16 %v2076, %v2075
          %v2393 = vpack.c.bf16 %v2078, %v2077
          %v2394 = vpack.c.bf16 %v2080, %v2079
          %v2395 = vpack.c.bf16 %v2082, %v2081
          %v2396 = vpack.c.bf16 %v2084, %v2083
          %v2397 = vpack.c.bf16 %v2134, %v2133
          %v2398 = vpack.c.bf16 %v2136, %v2135
          %v2399 = vpack.c.bf16 %v2138, %v2137
          %v2400 = vpack.c.bf16 %v2140, %v2139
          %v2401 = vpack.c.bf16 %v2142, %v2141
          %v2402 = vpack.c.bf16 %v2144, %v2143
          %v2403 = vpack.c.bf16 %v2146, %v2145
          %v2404 = vpack.c.bf16 %v2148, %v2147
          %v2405 = vpack.c.bf16 %v2150, %v2149
          %v2406 = vpack.c.bf16 %v2152, %v2151
          %v2407 = vpack.c.bf16 %v2154, %v2153
          %v2408 = vpack.c.bf16 %v2156, %v2155
          %v2409 = vpack.c.bf16 %v2158, %v2157
          %v2410 = vpack.c.bf16 %v2160, %v2159
          %v2411 = vpack.c.bf16 %v2162, %v2161
          %v2412 = vpack.c.bf16 %v2164, %v2163
          %v2413 = vpack.c.bf16 %v2166, %v2165
          %v2414 = vpack.c.bf16 %v2168, %v2167
          %v2415 = vpack.c.bf16 %v2170, %v2169
          %v2416 = vpack.c.bf16 %v2172, %v2171
          %v2417 = vpack.c.bf16 %v2174, %v2173
          %v2418 = vpack.c.bf16 %v2176, %v2175
          %v2419 = vpack.c.bf16 %v2178, %v2177
          %v2420 = vpack.c.bf16 %v2180, %v2179
          %v2421 = vpack.c.bf16 %v2230, %v2229
          %v2422 = vpack.c.bf16 %v2232, %v2231
          %v2423 = vpack.c.bf16 %v2234, %v2233
          %v2424 = vpack.c.bf16 %v2236, %v2235
          %v2425 = vpack.c.bf16 %v2238, %v2237
          %v2426 = vpack.c.bf16 %v2240, %v2239
          %v2427 = vpack.c.bf16 %v2242, %v2241
          %v2428 = vpack.c.bf16 %v2244, %v2243
          %v2429 = vpack.c.bf16 %v2246, %v2245
          %v2430 = vpack.c.bf16 %v2248, %v2247
          %v2431 = vpack.c.bf16 %v2250, %v2249
          %v2432 = vpack.c.bf16 %v2252, %v2251
          %v2433 = vpack.c.bf16 %v2254, %v2253
          %v2434 = vpack.c.bf16 %v2256, %v2255
          %v2435 = vpack.c.bf16 %v2258, %v2257
          %v2436 = vpack.c.bf16 %v2260, %v2259
          %v2437 = vpack.c.bf16 %v2262, %v2261
          %v2438 = vpack.c.bf16 %v2264, %v2263
          %v2439 = vpack.c.bf16 %v2266, %v2265
          %v2440 = vpack.c.bf16 %v2268, %v2267
          %v2441 = vpack.c.bf16 %v2270, %v2269
          %v2442 = vpack.c.bf16 %v2272, %v2271
          %v2443 = vpack.c.bf16 %v2274, %v2273
          %v2444 = vpack.c.bf16 %v2276, %v2275
          %v2445 = vpack.c.bf16 %v2326, %v2325
          %v2446 = vpack.c.bf16 %v2328, %v2327
          %v2447 = vpack.c.bf16 %v2330, %v2329
          %v2448 = vpack.c.bf16 %v2332, %v2331
          %v2449 = vpack.c.bf16 %v2334, %v2333
          %v2450 = vpack.c.bf16 %v2336, %v2335
          %v2451 = vpack.c.bf16 %v2338, %v2337
          %v2452 = vpack.c.bf16 %v2340, %v2339
          %v2453 = vpack.c.bf16 %v2342, %v2341
          %v2454 = vpack.c.bf16 %v2344, %v2343
          %v2455 = vpack.c.bf16 %v2346, %v2345
          %v2456 = vpack.c.bf16 %v2348, %v2347
          %v2457 = vpack.c.bf16 %v2350, %v2349
          %v2458 = vpack.c.bf16 %v2352, %v2351
          %v2459 = vpack.c.bf16 %v2354, %v2353
          %v2460 = vpack.c.bf16 %v2356, %v2355
          %v2461 = vpack.c.bf16 %v2358, %v2357
          %v2462 = vpack.c.bf16 %v2360, %v2359
          %v2463 = vpack.c.bf16 %v2362, %v2361
          %v2464 = vpack.c.bf16 %v2364, %v2363
          %v2465 = vpack.c.bf16 %v2366, %v2365
          %v2466 = vpack.c.bf16 %v2368, %v2367
          %v2467 = vpack.c.bf16 %v2370, %v2369
          %v2468 = vpack.c.bf16 %v2372, %v2371
          %v2477 = vunpack.c.l.b16 %v2373
          %v2478 = vunpack.c.h.b16 %v2373
          %v2479 = vunpack.c.l.b16 %v2374
          %v2480 = vunpack.c.h.b16 %v2374
          %v2481 = vunpack.c.l.b16 %v2375
          %v2482 = vunpack.c.h.b16 %v2375
          %v2483 = vunpack.c.l.b16 %v2376
          %v2484 = vunpack.c.h.b16 %v2376
          %v2485 = vunpack.c.l.b16 %v2377
          %v2486 = vunpack.c.h.b16 %v2377
          %v2487 = vunpack.c.l.b16 %v2378
          %v2488 = vunpack.c.h.b16 %v2378
          %v2489 = vunpack.c.l.b16 %v2379
          %v2490 = vunpack.c.h.b16 %v2379
          %v2491 = vunpack.c.l.b16 %v2380
          %v2492 = vunpack.c.h.b16 %v2380
          %v2493 = vpack.c.b16 %v2485, %v2477
          %v2494 = vpack.c.b16 %v2486, %v2478
          %v2495 = vpack.c.b16 %v2487, %v2479
          %v2496 = vpack.c.b16 %v2488, %v2480
          %v2497 = vpack.c.b16 %v2489, %v2481
          %v2498 = vpack.c.b16 %v2490, %v2482
          %v2499 = vpack.c.b16 %v2491, %v2483
          %v2500 = vpack.c.b16 %v2492, %v2484
          %v2517 = vunpack.c.l.b16 %v2381
          %v2518 = vunpack.c.h.b16 %v2381
          %v2519 = vunpack.c.l.b16 %v2382
          %v2520 = vunpack.c.h.b16 %v2382
          %v2521 = vunpack.c.l.b16 %v2383
          %v2522 = vunpack.c.h.b16 %v2383
          %v2523 = vunpack.c.l.b16 %v2384
          %v2524 = vunpack.c.h.b16 %v2384
          %v2525 = vunpack.c.l.b16 %v2385
          %v2526 = vunpack.c.h.b16 %v2385
          %v2527 = vunpack.c.l.b16 %v2386
          %v2528 = vunpack.c.h.b16 %v2386
          %v2529 = vunpack.c.l.b16 %v2387
          %v2530 = vunpack.c.h.b16 %v2387
          %v2531 = vunpack.c.l.b16 %v2388
          %v2532 = vunpack.c.h.b16 %v2388
          %v2533 = vpack.c.b16 %v2525, %v2517
          %v2534 = vpack.c.b16 %v2526, %v2518
          %v2535 = vpack.c.b16 %v2527, %v2519
          %v2536 = vpack.c.b16 %v2528, %v2520
          %v2537 = vpack.c.b16 %v2529, %v2521
          %v2538 = vpack.c.b16 %v2530, %v2522
          %v2539 = vpack.c.b16 %v2531, %v2523
          %v2540 = vpack.c.b16 %v2532, %v2524
          %v2557 = vunpack.c.l.b16 %v2389
          %v2558 = vunpack.c.h.b16 %v2389
          %v2559 = vunpack.c.l.b16 %v2390
          %v2560 = vunpack.c.h.b16 %v2390
          %v2561 = vunpack.c.l.b16 %v2391
          %v2562 = vunpack.c.h.b16 %v2391
          %v2563 = vunpack.c.l.b16 %v2392
          %v2564 = vunpack.c.h.b16 %v2392
          %v2565 = vunpack.c.l.b16 %v2393
          %v2566 = vunpack.c.h.b16 %v2393
          %v2567 = vunpack.c.l.b16 %v2394
          %v2568 = vunpack.c.h.b16 %v2394
          %v2569 = vunpack.c.l.b16 %v2395
          %v2570 = vunpack.c.h.b16 %v2395
          %v2571 = vunpack.c.l.b16 %v2396
          %v2572 = vunpack.c.h.b16 %v2396
          %v2573 = vpack.c.b16 %v2565, %v2557
          %v2574 = vpack.c.b16 %v2566, %v2558
          %v2575 = vpack.c.b16 %v2567, %v2559
          %v2576 = vpack.c.b16 %v2568, %v2560
          %v2577 = vpack.c.b16 %v2569, %v2561
          %v2578 = vpack.c.b16 %v2570, %v2562
          %v2579 = vpack.c.b16 %v2571, %v2563
          %v2580 = vpack.c.b16 %v2572, %v2564
          %v2597 = vunpack.c.l.b16 %v2397
          %v2598 = vunpack.c.h.b16 %v2397
          %v2599 = vunpack.c.l.b16 %v2398
          %v2600 = vunpack.c.h.b16 %v2398
          %v2601 = vunpack.c.l.b16 %v2399
          %v2602 = vunpack.c.h.b16 %v2399
          %v2603 = vunpack.c.l.b16 %v2400
          %v2604 = vunpack.c.h.b16 %v2400
          %v2605 = vunpack.c.l.b16 %v2401
          %v2606 = vunpack.c.h.b16 %v2401
          %v2607 = vunpack.c.l.b16 %v2402
          %v2608 = vunpack.c.h.b16 %v2402
          %v2609 = vunpack.c.l.b16 %v2403
          %v2610 = vunpack.c.h.b16 %v2403
          %v2611 = vunpack.c.l.b16 %v2404
          %v2612 = vunpack.c.h.b16 %v2404
          %v2613 = vpack.c.b16 %v2605, %v2597
          %v2614 = vpack.c.b16 %v2606, %v2598
          %v2615 = vpack.c.b16 %v2607, %v2599
          %v2616 = vpack.c.b16 %v2608, %v2600
          %v2617 = vpack.c.b16 %v2609, %v2601
          %v2618 = vpack.c.b16 %v2610, %v2602
          %v2619 = vpack.c.b16 %v2611, %v2603
          %v2620 = vpack.c.b16 %v2612, %v2604
          %v2637 = vunpack.c.l.b16 %v2405
          %v2638 = vunpack.c.h.b16 %v2405
          %v2639 = vunpack.c.l.b16 %v2406
          %v2640 = vunpack.c.h.b16 %v2406
          %v2641 = vunpack.c.l.b16 %v2407
          %v2642 = vunpack.c.h.b16 %v2407
          %v2643 = vunpack.c.l.b16 %v2408
          %v2644 = vunpack.c.h.b16 %v2408
          %v2645 = vunpack.c.l.b16 %v2409
          %v2646 = vunpack.c.h.b16 %v2409
          %v2647 = vunpack.c.l.b16 %v2410
          %v2648 = vunpack.c.h.b16 %v2410
          %v2649 = vunpack.c.l.b16 %v2411
          %v2650 = vunpack.c.h.b16 %v2411
          %v2651 = vunpack.c.l.b16 %v2412
          %v2652 = vunpack.c.h.b16 %v2412
          %v2653 = vpack.c.b16 %v2645, %v2637
          %v2654 = vpack.c.b16 %v2646, %v2638
          %v2655 = vpack.c.b16 %v2647, %v2639
          %v2656 = vpack.c.b16 %v2648, %v2640
          %v2657 = vpack.c.b16 %v2649, %v2641
          %v2658 = vpack.c.b16 %v2650, %v2642
          %v2659 = vpack.c.b16 %v2651, %v2643
          %v2660 = vpack.c.b16 %v2652, %v2644
          %v2677 = vunpack.c.l.b16 %v2413
          %v2678 = vunpack.c.h.b16 %v2413
          %v2679 = vunpack.c.l.b16 %v2414
          %v2680 = vunpack.c.h.b16 %v2414
          %v2681 = vunpack.c.l.b16 %v2415
          %v2682 = vunpack.c.h.b16 %v2415
          %v2683 = vunpack.c.l.b16 %v2416
          %v2684 = vunpack.c.h.b16 %v2416
          %v2685 = vunpack.c.l.b16 %v2417
          %v2686 = vunpack.c.h.b16 %v2417
          %v2687 = vunpack.c.l.b16 %v2418
          %v2688 = vunpack.c.h.b16 %v2418
          %v2689 = vunpack.c.l.b16 %v2419
          %v2690 = vunpack.c.h.b16 %v2419
          %v2691 = vunpack.c.l.b16 %v2420
          %v2692 = vunpack.c.h.b16 %v2420
          %v2693 = vpack.c.b16 %v2685, %v2677
          %v2694 = vpack.c.b16 %v2686, %v2678
          %v2695 = vpack.c.b16 %v2687, %v2679
          %v2696 = vpack.c.b16 %v2688, %v2680
          %v2697 = vpack.c.b16 %v2689, %v2681
          %v2698 = vpack.c.b16 %v2690, %v2682
          %v2699 = vpack.c.b16 %v2691, %v2683
          %v2700 = vpack.c.b16 %v2692, %v2684
          %v2717 = vunpack.c.l.b16 %v2421
          %v2718 = vunpack.c.h.b16 %v2421
          %v2719 = vunpack.c.l.b16 %v2422
          %v2720 = vunpack.c.h.b16 %v2422
          %v2721 = vunpack.c.l.b16 %v2423
          %v2722 = vunpack.c.h.b16 %v2423
          %v2723 = vunpack.c.l.b16 %v2424
          %v2724 = vunpack.c.h.b16 %v2424
          %v2725 = vunpack.c.l.b16 %v2425
          %v2726 = vunpack.c.h.b16 %v2425
          %v2727 = vunpack.c.l.b16 %v2426
          %v2728 = vunpack.c.h.b16 %v2426
          %v2729 = vunpack.c.l.b16 %v2427
          %v2730 = vunpack.c.h.b16 %v2427
          %v2731 = vunpack.c.l.b16 %v2428
          %v2732 = vunpack.c.h.b16 %v2428
          %v2733 = vpack.c.b16 %v2725, %v2717
          %v2734 = vpack.c.b16 %v2726, %v2718
          %v2735 = vpack.c.b16 %v2727, %v2719
          %v2736 = vpack.c.b16 %v2728, %v2720
          %v2737 = vpack.c.b16 %v2729, %v2721
          %v2738 = vpack.c.b16 %v2730, %v2722
          %v2739 = vpack.c.b16 %v2731, %v2723
          %v2740 = vpack.c.b16 %v2732, %v2724
          %v2757 = vunpack.c.l.b16 %v2429
          %v2758 = vunpack.c.h.b16 %v2429
          %v2759 = vunpack.c.l.b16 %v2430
          %v2760 = vunpack.c.h.b16 %v2430
          %v2761 = vunpack.c.l.b16 %v2431
          %v2762 = vunpack.c.h.b16 %v2431
          %v2763 = vunpack.c.l.b16 %v2432
          %v2764 = vunpack.c.h.b16 %v2432
          %v2765 = vunpack.c.l.b16 %v2433
          %v2766 = vunpack.c.h.b16 %v2433
          %v2767 = vunpack.c.l.b16 %v2434
          %v2768 = vunpack.c.h.b16 %v2434
          %v2769 = vunpack.c.l.b16 %v2435
          %v2770 = vunpack.c.h.b16 %v2435
          %v2771 = vunpack.c.l.b16 %v2436
          %v2772 = vunpack.c.h.b16 %v2436
          %v2773 = vpack.c.b16 %v2765, %v2757
          %v2774 = vpack.c.b16 %v2766, %v2758
          %v2775 = vpack.c.b16 %v2767, %v2759
          %v2776 = vpack.c.b16 %v2768, %v2760
          %v2777 = vpack.c.b16 %v2769, %v2761
          %v2778 = vpack.c.b16 %v2770, %v2762
          %v2779 = vpack.c.b16 %v2771, %v2763
          %v2780 = vpack.c.b16 %v2772, %v2764
          %v2797 = vunpack.c.l.b16 %v2437
          %v2798 = vunpack.c.h.b16 %v2437
          %v2799 = vunpack.c.l.b16 %v2438
          %v2800 = vunpack.c.h.b16 %v2438
          %v2801 = vunpack.c.l.b16 %v2439
          %v2802 = vunpack.c.h.b16 %v2439
          %v2803 = vunpack.c.l.b16 %v2440
          %v2804 = vunpack.c.h.b16 %v2440
          %v2805 = vunpack.c.l.b16 %v2441
          %v2806 = vunpack.c.h.b16 %v2441
          %v2807 = vunpack.c.l.b16 %v2442
          %v2808 = vunpack.c.h.b16 %v2442
          %v2809 = vunpack.c.l.b16 %v2443
          %v2810 = vunpack.c.h.b16 %v2443
          %v2811 = vunpack.c.l.b16 %v2444
          %v2812 = vunpack.c.h.b16 %v2444
          %v2813 = vpack.c.b16 %v2805, %v2797
          %v2814 = vpack.c.b16 %v2806, %v2798
          %v2815 = vpack.c.b16 %v2807, %v2799
          %v2816 = vpack.c.b16 %v2808, %v2800
          %v2817 = vpack.c.b16 %v2809, %v2801
          %v2818 = vpack.c.b16 %v2810, %v2802
          %v2819 = vpack.c.b16 %v2811, %v2803
          %v2820 = vpack.c.b16 %v2812, %v2804
          %v2837 = vunpack.c.l.b16 %v2445
          %v2838 = vunpack.c.h.b16 %v2445
          %v2839 = vunpack.c.l.b16 %v2446
          %v2840 = vunpack.c.h.b16 %v2446
          %v2841 = vunpack.c.l.b16 %v2447
          %v2842 = vunpack.c.h.b16 %v2447
          %v2843 = vunpack.c.l.b16 %v2448
          %v2844 = vunpack.c.h.b16 %v2448
          %v2845 = vunpack.c.l.b16 %v2449
          %v2846 = vunpack.c.h.b16 %v2449
          %v2847 = vunpack.c.l.b16 %v2450
          %v2848 = vunpack.c.h.b16 %v2450
          %v2849 = vunpack.c.l.b16 %v2451
          %v2850 = vunpack.c.h.b16 %v2451
          %v2851 = vunpack.c.l.b16 %v2452
          %v2852 = vunpack.c.h.b16 %v2452
          %v2853 = vpack.c.b16 %v2845, %v2837
          %v2854 = vpack.c.b16 %v2846, %v2838
          %v2855 = vpack.c.b16 %v2847, %v2839
          %v2856 = vpack.c.b16 %v2848, %v2840
          %v2857 = vpack.c.b16 %v2849, %v2841
          %v2858 = vpack.c.b16 %v2850, %v2842
          %v2859 = vpack.c.b16 %v2851, %v2843
          %v2860 = vpack.c.b16 %v2852, %v2844
          %v2877 = vunpack.c.l.b16 %v2453
          %v2878 = vunpack.c.h.b16 %v2453
          %v2879 = vunpack.c.l.b16 %v2454
          %v2880 = vunpack.c.h.b16 %v2454
          %v2881 = vunpack.c.l.b16 %v2455
          %v2882 = vunpack.c.h.b16 %v2455
          %v2883 = vunpack.c.l.b16 %v2456
          %v2884 = vunpack.c.h.b16 %v2456
          %v2885 = vunpack.c.l.b16 %v2457
          %v2886 = vunpack.c.h.b16 %v2457
          %v2887 = vunpack.c.l.b16 %v2458
          %v2888 = vunpack.c.h.b16 %v2458
          %v2889 = vunpack.c.l.b16 %v2459
          %v2890 = vunpack.c.h.b16 %v2459
          %v2891 = vunpack.c.l.b16 %v2460
          %v2892 = vunpack.c.h.b16 %v2460
          %v2893 = vpack.c.b16 %v2885, %v2877
          %v2894 = vpack.c.b16 %v2886, %v2878
          %v2895 = vpack.c.b16 %v2887, %v2879
          %v2896 = vpack.c.b16 %v2888, %v2880
          %v2897 = vpack.c.b16 %v2889, %v2881
          %v2898 = vpack.c.b16 %v2890, %v2882
          %v2899 = vpack.c.b16 %v2891, %v2883
          %v2900 = vpack.c.b16 %v2892, %v2884
          %v2917 = vunpack.c.l.b16 %v2461
          %v2918 = vunpack.c.h.b16 %v2461
          %v2919 = vunpack.c.l.b16 %v2462
          %v2920 = vunpack.c.h.b16 %v2462
          %v2921 = vunpack.c.l.b16 %v2463
          %v2922 = vunpack.c.h.b16 %v2463
          %v2923 = vunpack.c.l.b16 %v2464
          %v2924 = vunpack.c.h.b16 %v2464
          %v2925 = vunpack.c.l.b16 %v2465
          %v2926 = vunpack.c.h.b16 %v2465
          %v2927 = vunpack.c.l.b16 %v2466
          %v2928 = vunpack.c.h.b16 %v2466
          %v2929 = vunpack.c.l.b16 %v2467
          %v2930 = vunpack.c.h.b16 %v2467
          %v2931 = vunpack.c.l.b16 %v2468
          %v2932 = vunpack.c.h.b16 %v2468
          %v2933 = vpack.c.b16 %v2925, %v2917
          %v2934 = vpack.c.b16 %v2926, %v2918
          %v2935 = vpack.c.b16 %v2927, %v2919
          %v2936 = vpack.c.b16 %v2928, %v2920
          %v2937 = vpack.c.b16 %v2929, %v2921
          %v2938 = vpack.c.b16 %v2930, %v2922
          %v2939 = vpack.c.b16 %v2931, %v2923
          %v2940 = vpack.c.b16 %v2932, %v2924
          %s2949 = smul.u32 %s1696, 4
          %s2950 = smul.addr %s2949, 4
          %s2951 = scalar_lea.vmem %s3, %s2950
          %v2952 = vld [vmem:[%s2951] sm:$0xff]
          %v2953 = vld [vmem:[%s2951 + $0x8] sm:$0xff]
          %v2956 = vunpack.c.l.b16 %v2952
          %v2957 = vunpack.c.h.b16 %v2952
          %v2958 = vunpack.c.l.b16 %v2953
          %v2959 = vunpack.c.h.b16 %v2953
          %v2960 = vpack.c.b16 %v2958, %v2956
          %v2961 = vpack.c.b16 %v2959, %v2957
          %vm2963 = vcmask 523264
          %v2965 = vsel %vm2963, %v2961, 0
          %2967 = vmatpush.bf16.msra.mxu0 %v2773
          %2968 = vmatpush.bf16.msra.mxu0 %v2733
          %2969 = vmatpush.bf16.msra.mxu0 %v2693
          %2970 = vmatpush.bf16.msra.mxu0 %v2653
          %2971 = vmatpush.bf16.msra.mxu0 %v2613
          %2972 = vmatpush.bf16.msra.mxu0 %v2573
          %2973 = vmatpush.bf16.msra.mxu0 %v2533
          %2974 = vmatpush.bf16.msra.mxu0 %v2493
          %2975 = vmatmul.bf16.gmra.mxu0 %v2960
          %v2976 = vpop.f32.mrf.mxu0
          %v2977 = vadd.f32 0.0, %v2976
          %v2978 = vpop.f32.mrf.mxu0
          %v2979 = vadd.f32 0.0, %v2978
          %2980 = vdwg.mxu0
          %2981 = vmatpush.bf16.msra.mxu0 0
          %2982 = vmatpush.bf16.msra.mxu0 0
          %2983 = vmatpush.bf16.msra.mxu0 0
          %2984 = vmatpush.bf16.msra.mxu0 0
          %2985 = vmatpush.bf16.msra.mxu0 %v2933
          %2986 = vmatpush.bf16.msra.mxu0 %v2893
          %2987 = vmatpush.bf16.msra.mxu0 %v2853
          %2988 = vmatpush.bf16.msra.mxu0 %v2813
          %2989 = vmatmul.bf16.gmra.mxu0 %v2965
          %v2990 = vpop.f32.mrf.mxu0
          %v2991 = vadd.f32 %v2977, %v2990
          %v2992 = vpop.f32.mrf.mxu0
          %v2993 = vadd.f32 %v2979, %v2992
          %2994 = vdwg.mxu0
          %2995 = vmatpush.bf16.msra.mxu0 %v2774
          %2996 = vmatpush.bf16.msra.mxu0 %v2734
          %2997 = vmatpush.bf16.msra.mxu0 %v2694
          %2998 = vmatpush.bf16.msra.mxu0 %v2654
          %2999 = vmatpush.bf16.msra.mxu0 %v2614
          %3000 = vmatpush.bf16.msra.mxu0 %v2574
          %3001 = vmatpush.bf16.msra.mxu0 %v2534
          %3002 = vmatpush.bf16.msra.mxu0 %v2494
          %3003 = vmatmul.bf16.gmra.mxu0 %v2960
          %v3004 = vpop.f32.mrf.mxu0
          %v3005 = vadd.f32 0.0, %v3004
          %v3006 = vpop.f32.mrf.mxu0
          %v3007 = vadd.f32 0.0, %v3006
          %3008 = vdwg.mxu0
          %3009 = vmatpush.bf16.msra.mxu0 0
          %3010 = vmatpush.bf16.msra.mxu0 0
          %3011 = vmatpush.bf16.msra.mxu0 0
          %3012 = vmatpush.bf16.msra.mxu0 0
          %3013 = vmatpush.bf16.msra.mxu0 %v2934
          %3014 = vmatpush.bf16.msra.mxu0 %v2894
          %3015 = vmatpush.bf16.msra.mxu0 %v2854
          %3016 = vmatpush.bf16.msra.mxu0 %v2814
          %3017 = vmatmul.bf16.gmra.mxu0 %v2965
          %v3018 = vpop.f32.mrf.mxu0
          %v3019 = vadd.f32 %v3005, %v3018
          %v3020 = vpop.f32.mrf.mxu0
          %v3021 = vadd.f32 %v3007, %v3020
          %3022 = vdwg.mxu0
          %3023 = vmatpush.bf16.msra.mxu0 %v2775
          %3024 = vmatpush.bf16.msra.mxu0 %v2735
          %3025 = vmatpush.bf16.msra.mxu0 %v2695
          %3026 = vmatpush.bf16.msra.mxu0 %v2655
          %3027 = vmatpush.bf16.msra.mxu0 %v2615
          %3028 = vmatpush.bf16.msra.mxu0 %v2575
          %3029 = vmatpush.bf16.msra.mxu0 %v2535
          %3030 = vmatpush.bf16.msra.mxu0 %v2495
          %3031 = vmatmul.bf16.gmra.mxu0 %v2960
          %v3032 = vpop.f32.mrf.mxu0
          %v3033 = vadd.f32 0.0, %v3032
          %v3034 = vpop.f32.mrf.mxu0
          %v3035 = vadd.f32 0.0, %v3034
          %3036 = vdwg.mxu0
          %3037 = vmatpush.bf16.msra.mxu0 0
          %3038 = vmatpush.bf16.msra.mxu0 0
          %3039 = vmatpush.bf16.msra.mxu0 0
          %3040 = vmatpush.bf16.msra.mxu0 0
          %3041 = vmatpush.bf16.msra.mxu0 %v2935
          %3042 = vmatpush.bf16.msra.mxu0 %v2895
          %3043 = vmatpush.bf16.msra.mxu0 %v2855
          %3044 = vmatpush.bf16.msra.mxu0 %v2815
          %3045 = vmatmul.bf16.gmra.mxu0 %v2965
          %v3046 = vpop.f32.mrf.mxu0
          %v3047 = vadd.f32 %v3033, %v3046
          %v3048 = vpop.f32.mrf.mxu0
          %v3049 = vadd.f32 %v3035, %v3048
          %3050 = vdwg.mxu0
          %3051 = vmatpush.bf16.msra.mxu0 %v2776
          %3052 = vmatpush.bf16.msra.mxu0 %v2736
          %3053 = vmatpush.bf16.msra.mxu0 %v2696
          %3054 = vmatpush.bf16.msra.mxu0 %v2656
          %3055 = vmatpush.bf16.msra.mxu0 %v2616
          %3056 = vmatpush.bf16.msra.mxu0 %v2576
          %3057 = vmatpush.bf16.msra.mxu0 %v2536
          %3058 = vmatpush.bf16.msra.mxu0 %v2496
          %3059 = vmatmul.bf16.gmra.mxu0 %v2960
          %v3060 = vpop.f32.mrf.mxu0
          %v3061 = vadd.f32 0.0, %v3060
          %v3062 = vpop.f32.mrf.mxu0
          %v3063 = vadd.f32 0.0, %v3062
          %3064 = vdwg.mxu0
          %3065 = vmatpush.bf16.msra.mxu0 0
          %3066 = vmatpush.bf16.msra.mxu0 0
          %3067 = vmatpush.bf16.msra.mxu0 0
          %3068 = vmatpush.bf16.msra.mxu0 0
          %3069 = vmatpush.bf16.msra.mxu0 %v2936
          %3070 = vmatpush.bf16.msra.mxu0 %v2896
          %3071 = vmatpush.bf16.msra.mxu0 %v2856
          %3072 = vmatpush.bf16.msra.mxu0 %v2816
          %3073 = vmatmul.bf16.gmra.mxu0 %v2965
          %v3074 = vpop.f32.mrf.mxu0
          %v3075 = vadd.f32 %v3061, %v3074
          %v3076 = vpop.f32.mrf.mxu0
          %v3077 = vadd.f32 %v3063, %v3076
          %3078 = vdwg.mxu0
          %3079 = vmatpush.bf16.msra.mxu0 %v2777
          %3080 = vmatpush.bf16.msra.mxu0 %v2737
          %3081 = vmatpush.bf16.msra.mxu0 %v2697
          %3082 = vmatpush.bf16.msra.mxu0 %v2657
          %3083 = vmatpush.bf16.msra.mxu0 %v2617
          %3084 = vmatpush.bf16.msra.mxu0 %v2577
          %3085 = vmatpush.bf16.msra.mxu0 %v2537
          %3086 = vmatpush.bf16.msra.mxu0 %v2497
          %3087 = vmatmul.bf16.gmra.mxu0 %v2960
          %v3088 = vpop.f32.mrf.mxu0
          %v3089 = vadd.f32 0.0, %v3088
          %v3090 = vpop.f32.mrf.mxu0
          %v3091 = vadd.f32 0.0, %v3090
          %3092 = vdwg.mxu0
          %3093 = vmatpush.bf16.msra.mxu0 0
          %3094 = vmatpush.bf16.msra.mxu0 0
          %3095 = vmatpush.bf16.msra.mxu0 0
          %3096 = vmatpush.bf16.msra.mxu0 0
          %3097 = vmatpush.bf16.msra.mxu0 %v2937
          %3098 = vmatpush.bf16.msra.mxu0 %v2897
          %3099 = vmatpush.bf16.msra.mxu0 %v2857
          %3100 = vmatpush.bf16.msra.mxu0 %v2817
          %3101 = vmatmul.bf16.gmra.mxu0 %v2965
          %v3102 = vpop.f32.mrf.mxu0
          %v3103 = vadd.f32 %v3089, %v3102
          %v3104 = vpop.f32.mrf.mxu0
          %v3105 = vadd.f32 %v3091, %v3104
          %3106 = vdwg.mxu0
          %3107 = vmatpush.bf16.msra.mxu0 %v2778
          %3108 = vmatpush.bf16.msra.mxu0 %v2738
          %3109 = vmatpush.bf16.msra.mxu0 %v2698
          %3110 = vmatpush.bf16.msra.mxu0 %v2658
          %3111 = vmatpush.bf16.msra.mxu0 %v2618
          %3112 = vmatpush.bf16.msra.mxu0 %v2578
          %3113 = vmatpush.bf16.msra.mxu0 %v2538
          %3114 = vmatpush.bf16.msra.mxu0 %v2498
          %3115 = vmatmul.bf16.gmra.mxu0 %v2960
          %v3116 = vpop.f32.mrf.mxu0
          %v3117 = vadd.f32 0.0, %v3116
          %v3118 = vpop.f32.mrf.mxu0
          %v3119 = vadd.f32 0.0, %v3118
          %3120 = vdwg.mxu0
          %3121 = vmatpush.bf16.msra.mxu0 0
          %3122 = vmatpush.bf16.msra.mxu0 0
          %3123 = vmatpush.bf16.msra.mxu0 0
          %3124 = vmatpush.bf16.msra.mxu0 0
          %3125 = vmatpush.bf16.msra.mxu0 %v2938
          %3126 = vmatpush.bf16.msra.mxu0 %v2898
          %3127 = vmatpush.bf16.msra.mxu0 %v2858
          %3128 = vmatpush.bf16.msra.mxu0 %v2818
          %3129 = vmatmul.bf16.gmra.mxu0 %v2965
          %v3130 = vpop.f32.mrf.mxu0
          %v3131 = vadd.f32 %v3117, %v3130
          %v3132 = vpop.f32.mrf.mxu0
          %v3133 = vadd.f32 %v3119, %v3132
          %3134 = vdwg.mxu0
          %3135 = vmatpush.bf16.msra.mxu0 %v2779
          %3136 = vmatpush.bf16.msra.mxu0 %v2739
          %3137 = vmatpush.bf16.msra.mxu0 %v2699
          %3138 = vmatpush.bf16.msra.mxu0 %v2659
          %3139 = vmatpush.bf16.msra.mxu0 %v2619
          %3140 = vmatpush.bf16.msra.mxu0 %v2579
          %3141 = vmatpush.bf16.msra.mxu0 %v2539
          %3142 = vmatpush.bf16.msra.mxu0 %v2499
          %3143 = vmatmul.bf16.gmra.mxu0 %v2960
          %v3144 = vpop.f32.mrf.mxu0
          %v3145 = vadd.f32 0.0, %v3144
          %v3146 = vpop.f32.mrf.mxu0
          %v3147 = vadd.f32 0.0, %v3146
          %3148 = vdwg.mxu0
          %3149 = vmatpush.bf16.msra.mxu0 0
          %3150 = vmatpush.bf16.msra.mxu0 0
          %3151 = vmatpush.bf16.msra.mxu0 0
          %3152 = vmatpush.bf16.msra.mxu0 0
          %3153 = vmatpush.bf16.msra.mxu0 %v2939
          %3154 = vmatpush.bf16.msra.mxu0 %v2899
          %3155 = vmatpush.bf16.msra.mxu0 %v2859
          %3156 = vmatpush.bf16.msra.mxu0 %v2819
          %3157 = vmatmul.bf16.gmra.mxu0 %v2965
          %v3158 = vpop.f32.mrf.mxu0
          %v3159 = vadd.f32 %v3145, %v3158
          %v3160 = vpop.f32.mrf.mxu0
          %v3161 = vadd.f32 %v3147, %v3160
          %3162 = vdwg.mxu0
          %3163 = vmatpush.bf16.msra.mxu0 %v2780
          %3164 = vmatpush.bf16.msra.mxu0 %v2740
          %3165 = vmatpush.bf16.msra.mxu0 %v2700
          %3166 = vmatpush.bf16.msra.mxu0 %v2660
          %3167 = vmatpush.bf16.msra.mxu0 %v2620
          %3168 = vmatpush.bf16.msra.mxu0 %v2580
          %3169 = vmatpush.bf16.msra.mxu0 %v2540
          %3170 = vmatpush.bf16.msra.mxu0 %v2500
          %3171 = vmatmul.bf16.gmra.mxu0 %v2960
          %v3172 = vpop.f32.mrf.mxu0
          %v3173 = vadd.f32 0.0, %v3172
          %v3174 = vpop.f32.mrf.mxu0
          %v3175 = vadd.f32 0.0, %v3174
          %3176 = vdwg.mxu0
          %3177 = vmatpush.bf16.msra.mxu0 0
          %3178 = vmatpush.bf16.msra.mxu0 0
          %3179 = vmatpush.bf16.msra.mxu0 0
          %3180 = vmatpush.bf16.msra.mxu0 0
          %3181 = vmatpush.bf16.msra.mxu0 %v2940
          %3182 = vmatpush.bf16.msra.mxu0 %v2900
          %3183 = vmatpush.bf16.msra.mxu0 %v2860
          %3184 = vmatpush.bf16.msra.mxu0 %v2820
          %3185 = vmatmul.bf16.gmra.mxu0 %v2965
          %v3186 = vpop.f32.mrf.mxu0
          %v3187 = vadd.f32 %v3173, %v3186
          %v3188 = vpop.f32.mrf.mxu0
          %v3189 = vadd.f32 %v3175, %v3188
          %3190 = vdwg.mxu0
        $region41: #{tpu_custom_call.1} parent=35 // loop_footer
          %s1700 = sadd.s32 1, %s1696
        $region42: #{tpu_custom_call.1} parent=35 // loop_footer_branch
          %1695 = sbr.rel target = $region38
        $region43: #{tpu_custom_call.1} parent=35 // loop_exit
          _
        %3191 = vst [vmem:[%s207] sm:$0xff] %v1701
        %3192 = vst [vmem:[%s207 + $0x8] sm:$0xff] %v1702
        %3193 = vst [vmem:[%s207 + $0x10] sm:$0xff] %v1703
        %3194 = vst [vmem:[%s207 + $0x18] sm:$0xff] %v1704
        %3195 = vst [vmem:[%s207 + $0x20] sm:$0xff] %v1705
        %3196 = vst [vmem:[%s207 + $0x28] sm:$0xff] %v1706
        %3197 = vst [vmem:[%s207 + $0x30] sm:$0xff] %v1707
        %3198 = vst [vmem:[%s207 + $0x38] sm:$0xff] %v1708
        %3199 = vst [vmem:[%s207 + $0x40] sm:$0xff] %v1709
        %3200 = vst [vmem:[%s207 + $0x48] sm:$0xff] %v1710
        %3201 = vst [vmem:[%s207 + $0x50] sm:$0xff] %v1711
        %3202 = vst [vmem:[%s207 + $0x58] sm:$0xff] %v1712
        %3203 = vst [vmem:[%s207 + $0x60] sm:$0xff] %v1713
        %3204 = vst [vmem:[%s207 + $0x68] sm:$0xff] %v1714
        %3205 = vst [vmem:[%s207 + $0x70] sm:$0xff] %v1715
        %3206 = vst [vmem:[%s207 + $0x78] sm:$0xff] %v1716
        %s3207 = sand.u32 %s120, 1
        %s3208 = scalar_lea.sflag [#allocation3], %s3207
        %s3209 = sand.u32 %s120, 1
        %s3210 = smul.addr %s3209, 128
        %s3211 = scalar_lea.vmem [#allocation2], %s3210
        // Predicated region
        $region44: #{tpu_custom_call.1} parent=35 // pred_check
          %p3212 = pneg %p130
        $region45: #{tpu_custom_call.1} parent=35 // pred_check_branch
          %3214 = sbr.rel (%p3212) target = $region47
        $region46: #{tpu_custom_call.1} parent=35 // pred_region
          %s3215 = smul.u32 8, %s18
          %3217 = vsyncadd %s3208, 0
          %s3218 = smul.addr %s3215, 8
          %s3219 = scalar_lea.hbm %s4, %s3218
          %s3220 = sshll.u32 %s3211, 4
          %s3221 = int_to_ptr.vmem [resolvable:$true] %s3220
          %s3222 = sshll.u32 %s3219, 4
          %s3223 = int_to_ptr.hbm [resolvable:$true] %s3222
          %3228 = dma.vmem_to_hbm [thread:$0]  %s3221, 2048, %s3223, %s3208, 1024, 4096, 64
        $region47: #{tpu_custom_call.1} parent=35 // pred_fallthru
          _
      $region36: #{tpu_custom_call.1} parent=5 // pred_fallthru
        _
      %p3229 = scmp.le.s32.totalorder 2, %s13
      // Predicated region
      $region48: #{tpu_custom_call.1} parent=5 // pred_check
        %p3230 = pneg %p3229
      $region49: #{tpu_custom_call.1} parent=5 // pred_check_branch
        %3232 = sbr.rel (%p3230) target = $region51
      $region50: #{tpu_custom_call.1} parent=5 // pred_region
        %s3233 = ssub.s32 %s13, 2
        // Predicated region
        $region52: #{tpu_custom_call.1} parent=50 // pred_check
          %p3234 = pneg %p136
        $region53: #{tpu_custom_call.1} parent=50 // pred_check_branch
          %3236 = sbr.rel (%p3234) target = $region55
        $region54: #{tpu_custom_call.1} parent=50 // pred_region
          %s3237 = sand.u32 %s121, 1
          %s3238 = scalar_lea.sflag [#allocation3], %s3237
          %s3239 = sand.u32 %s121, 1
          %s3240 = smul.addr %s3239, 128
          %s3241 = scalar_lea.vmem [#allocation2], %s3240
          %3243 = dma.done %s3238, 2048
        $region55: #{tpu_custom_call.1} parent=50 // pred_fallthru
          _
      $region51: #{tpu_custom_call.1} parent=5 // pred_fallthru
        _
    $region6: #{tpu_custom_call.1} parent=1 // loop_footer
      %s17 = sadd.s32 1, %s13
    $region7: #{tpu_custom_call.1} parent=1 // loop_footer_branch
      %12 = sbr.rel target = $region3
    $region8: #{tpu_custom_call.1} parent=1 // loop_exit
      _
    %3244 = vsyncpa [#allocation3], 1
    %s3245 = scalar_lea.sflag [#allocation3], 1
    %3246 = vsyncpa %s3245, 1

</llo_original>
